<compile_context>
chip_gen: v7x
topology: tpu7x:2x2x1
jax: 0.10.0
libtpu: 0.0.40
codegen_flags: <defaults>
</compile_context>

<pallas_src>
import functools
import numpy as np
import jax
import jax.numpy as jnp
from jax.experimental import pallas as pl
from jax.experimental.pallas import tpu as pltpu

# ---- constants matching the torch reference (small, synthetic) ----
SAMPLE_RATE = 16000
N_FFT = 64
HOP_SIZE = 16
F_MIN = 0.0
F_MAX = 8000.0
N_MELS = 32            # Transcriber input_size

INPUT_SIZE = N_MELS    # n_mels fed to the LSTMs
OUTPUT_SIZE = 32       # LSTM hidden size per direction (positional-arg mapping in reference)
HIDDEN_SIZE = 64       # stored but unused by the reference forward
N_LAYERS = 2
N_KEYS = 88
OUT_PAD = 128          # per-head lane-padded FC width

NSEQ = 4               # sequences: frame-fwd, onset-fwd, frame-bwd, onset-bwd
NGATE = 4              # PyTorch gate order: i, f, g, o
H = OUTPUT_SIZE        # 32
GBLK = NSEQ * H        # 128: packed h width == one gate-block width
GTOT = NGATE * GBLK    # 512: all gates for all 4 sequences

VMEM_SPEC = pl.BlockSpec(memory_space=pltpu.MemorySpace.VMEM)


# ============================ The one fused Pallas kernel ============================

def transcriber_kernel(frames_ref, dft_ref, fb_ref,
                       w0f_ref, w0b_ref, whh0_ref, b0_ref,
                       w1f_ref, w1b_ref, whh1_ref, b1_ref,
                       wfc_ref, bfc_ref,
                       out_ref,
                       hbuf0_ref, hbuf1_ref,
                       *, T, BP):
    """Entire Transcriber_RNN forward in one kernel.

    frames_ref : (T*BP, n_fft)  hann-windowed frames, rows t*BP + b (batch padded to BP=8)
    dft_ref    : (n_fft, 128)   [cos | sin] real-DFT basis, each half lane-padded to 64
    fb_ref     : (64, n_mels)   mel filterbank, freq rows zero-padded 33 -> 64
    w{0,1}f/b  : (D, 512)       wide input->gate weights, gate-major columns
                                (col = g*128 + s*32); fwd / bwd column complements zeroed
    whh{0,1}   : (128, 512)     block-diagonal hidden->gate weights (all 4 sequences)
    b{0,1}     : (1, 512)       b_ih + b_hh, full (both directions)
    wfc        : (128, 256)     fused FC heads (frame -> lanes 0:88, onset -> 128:216)
    bfc        : (1, 256)
    out_ref    : (T*BP, 256)    lane-dense logits; wrapper slices valid batch rows / 88 keys
    hbuf{0,1}  : (T*BP, 128)    scratch: per-time-step hidden states of each layer
    """
    f32 = jnp.float32

    # ---- fused log-mel: merged [cos|sin] DFT GEMM + power + mel + log(clamp) ----
    spec = jnp.dot(frames_ref[...], dft_ref[...], preferred_element_type=f32)   # (T*BP, 128)
    half = dft_ref.shape[1] // 2
    re, im = spec[:, :half], spec[:, half:]
    power = re * re + im * im                                                   # (T*BP, 64)
    mel = jnp.dot(power, fb_ref[...], preferred_element_type=f32)               # (T*BP, n_mels)
    x0 = jnp.log(jnp.maximum(mel, 1e-9))

    def run_layer(x, wf_ref, wb_ref, whh_ref, b_ref, hbuf_ref):
        # Wide, time-batched input projections.  Forward-direction gate columns live
        # in wf (bwd columns zeroed, full bias folded in); backward-direction columns
        # in wb.  Reading the bwd slab at row block (T-1-t) replaces any time flip.
        xgF = jnp.dot(x, wf_ref[...], preferred_element_type=f32) + b_ref[...]  # (T*BP, 512)
        xgB = jnp.dot(x, wb_ref[...], preferred_element_type=f32)               # (T*BP, 512)
        whh = whh_ref[...]                                                      # (128, 512)
        h = jnp.zeros((BP, GBLK), f32)
        c = jnp.zeros((BP, GBLK), f32)
        # TODO(synk): switch to lax.fori_loop(unroll=4-8) + pl.ds / a time-chunk grid
        # once T grows past a few dozen frames (static unroll is fine at T=8).
        for t in range(T):                        # static unroll, all slices aligned
            rF = t * BP
            rB = (T - 1 - t) * BP
            gx = xgF[rF:rF + BP, :] + xgB[rB:rB + BP, :]                        # (BP, 512)
            # ONE block-diagonal recurrent GEMM for all 4 sequences: (BP,128)@(128,512)
            gates = gx + jnp.dot(h, whh, preferred_element_type=f32)
            # gate-major columns -> each activation slice is a full 128-lane slab
            i_g = jax.nn.sigmoid(gates[:, 0 * GBLK:1 * GBLK])
            f_g = jax.nn.sigmoid(gates[:, 1 * GBLK:2 * GBLK])
            g_g = jnp.tanh(gates[:, 2 * GBLK:3 * GBLK])
            o_g = jax.nn.sigmoid(gates[:, 3 * GBLK:4 * GBLK])
            c = f_g * c + i_g * g_g
            h = o_g * jnp.tanh(c)
            # scratch-resident, 8-sublane-aligned h writes; bwd halves land at their
            # true time index so no end-of-layer flip / stack / concat is needed.
            hbuf_ref[rF:rF + BP, 0:2 * H] = h[:, 0:2 * H]          # frame-fwd|onset-fwd @ t
            hbuf_ref[rB:rB + BP, 2 * H:4 * H] = h[:, 2 * H:4 * H]  # frame-bwd|onset-bwd @ T-1-t
        return hbuf_ref[...]                                       # (T*BP, 128) time-correct

    y0 = run_layer(x0, w0f_ref, w0b_ref, whh0_ref, b0_ref, hbuf0_ref)
    y1 = run_layer(y0, w1f_ref, w1b_ref, whh1_ref, b1_ref, hbuf1_ref)

    # fused FC heads: one (T*BP,128)@(128,256) GEMM, lane-dense unmasked store.
    # TODO(synk): cast MXU operands to bf16 on v6e/v7x (keep f32 accum & VPU math in f32,
    # important for v5e) once shapes grow; kept f32 here for exact parity at toy sizes.
    out_ref[...] = jnp.dot(y1, wfc_ref[...], preferred_element_type=f32) + bfc_ref[...]


# ============================ Constants & parameter packing ============================

def _hz_to_mel(f):
    return 2595.0 * np.log10(1.0 + f / 700.0)


def _mel_to_hz(m):
    return 700.0 * (10.0 ** (m / 2595.0) - 1.0)


def make_mel_constants():
    n_freqs = N_FFT // 2 + 1                       # 33
    half = 64                                      # lane-pad each DFT half to 64 -> [cos|sin]=128
    n = np.arange(N_FFT)[:, None]
    k = np.arange(n_freqs)[None, :]
    ang = 2.0 * np.pi * n * k / N_FFT
    cos_b = np.zeros((N_FFT, half), np.float32)
    sin_b = np.zeros((N_FFT, half), np.float32)
    cos_b[:, :n_freqs] = np.cos(ang)
    sin_b[:, :n_freqs] = np.sin(ang)
    cos_sin = np.concatenate([cos_b, sin_b], axis=1)               # (n_fft, 128)
    # torchaudio melscale_fbanks, mel_scale="htk", norm=None
    all_freqs = np.linspace(0.0, SAMPLE_RATE / 2, n_freqs)
    m_pts = np.linspace(_hz_to_mel(F_MIN), _hz_to_mel(F_MAX), N_MELS + 2)
    f_pts = _mel_to_hz(m_pts)
    f_diff = f_pts[1:] - f_pts[:-1]
    slopes = f_pts[None, :] - all_freqs[:, None]                   # (n_freqs, n_mels+2)
    down = -slopes[:, :-2] / f_diff[:-1]
    up = slopes[:, 2:] / f_diff[1:]
    fb = np.maximum(0.0, np.minimum(down, up)).astype(np.float32)  # (n_freqs, n_mels)
    fb_pad = np.zeros((half, N_MELS), np.float32)
    fb_pad[:n_freqs] = fb
    # hann window, periodic (torch default)
    win = (0.5 * (1.0 - np.cos(2.0 * np.pi * np.arange(N_FFT) / N_FFT))).astype(np.float32)
    return jnp.asarray(cos_sin), jnp.asarray(fb_pad), jnp.asarray(win)


def init_lstm_params(key, input_size, hidden, num_layers):
    params = []
    stdv = 1.0 / np.sqrt(hidden)
    for layer in range(num_layers):
        d_in = input_size if layer == 0 else 2 * hidden
        per_dir = []
        for _ in range(2):   # [forward, backward]
            key, k1, k2, k3, k4 = jax.random.split(key, 5)
            w_ih = jax.random.uniform(k1, (4 * hidden, d_in), minval=-stdv, maxval=stdv)
            w_hh = jax.random.uniform(k2, (4 * hidden, hidden), minval=-stdv, maxval=stdv)
            b_ih = jax.random.uniform(k3, (4 * hidden,), minval=-stdv, maxval=stdv)
            b_hh = jax.random.uniform(k4, (4 * hidden,), minval=-stdv, maxval=stdv)
            per_dir.append((w_ih, w_hh, b_ih, b_hh))
        params.append(per_dir)
    return params, key


def init_fc_params(key, in_features, out_features):
    stdv = 1.0 / np.sqrt(in_features)
    key, k1, k2 = jax.random.split(key, 3)
    w = jax.random.uniform(k1, (out_features, in_features), minval=-stdv, maxval=stdv)
    b = jax.random.uniform(k2, (out_features,), minval=-stdv, maxval=stdv)
    return (w, b), key


def pack_params(frame_lstm_p, onset_lstm_p, frame_fc_p, onset_fc_p):
    """Pack weights for the fused kernel:
       * input projections as wide (D,512) matrices with gate-major columns
         (col = g*128 + s*32; gate g in [i,f,g,o], sequence s in
          [frame-fwd, onset-fwd, frame-bwd, onset-bwd]); fwd/bwd column complements
         zero-masked so each time direction gets one wide GEMM,
       * hidden->gate weights as a block-diagonal (128,512) matrix so the whole
         recurrence is one (BP,128)@(128,512) matmul per step,
       * both FC heads folded into a single (128,256) lane-padded matrix."""
    def to_np(x):
        return np.asarray(x, dtype=np.float32)

    def pack_layer(layer):
        seqs = [frame_lstm_p[layer][0], onset_lstm_p[layer][0],
                frame_lstm_p[layer][1], onset_lstm_p[layer][1]]
        d_in = INPUT_SIZE if layer == 0 else GBLK
        W = np.zeros((d_in, GTOT), np.float32)
        Whh = np.zeros((GBLK, GTOT), np.float32)
        bias = np.zeros((1, GTOT), np.float32)
        for s, (w_ih, w_hh, b_ih, b_hh) in enumerate(seqs):
            wT = to_np(w_ih).T          # (D, 4H), gate column blocks [i|f|g|o]
            hT = to_np(w_hh).T          # (H, 4H)
            bb = to_np(b_ih) + to_np(b_hh)
            if layer == 0:
                row_map = [(0, 0, INPUT_SIZE)]            # mel features -> rows 0:32
            else:
                stk = s % 2                               # 0 = frame stack, 1 = onset stack
                # layer-0 hidden layout rows: [frame-fwd | onset-fwd | frame-bwd | onset-bwd]
                row_map = [(stk * H, 0, H), (2 * H + stk * H, H, H)]
            for g in range(NGATE):
                col0 = g * GBLK + s * H
                for dst, src, n in row_map:
                    W[dst:dst + n, col0:col0 + H] = wT[src:src + n, g * H:(g + 1) * H]
                Whh[s * H:(s + 1) * H, col0:col0 + H] = hT[:, g * H:(g + 1) * H]
                bias[0, col0:col0 + H] = bb[g * H:(g + 1) * H]
        fwd_mask = np.zeros((1, GTOT), np.float32)
        for g in range(NGATE):
            fwd_mask[0, g * GBLK:g * GBLK + 2 * H] = 1.0  # seqs 0,1 = forward directions
        Wf = W * fwd_mask
        Wb = W * (1.0 - fwd_mask)
        return (jnp.asarray(Wf), jnp.asarray(Wb), jnp.asarray(Whh), jnp.asarray(bias))

    layers = tuple(pack_layer(layer) for layer in range(N_LAYERS))

    wfc = np.zeros((GBLK, 2 * OUT_PAD), np.float32)
    bfc = np.zeros((1, 2 * OUT_PAD), np.float32)
    for stk, (w, b_) in enumerate([frame_fc_p, onset_fc_p]):
        wT = to_np(w).T                 # (2H, 88)
        o0 = stk * OUT_PAD
        wfc[stk * H:(stk + 1) * H, o0:o0 + N_KEYS] = wT[0:H]                  # fwd half
        wfc[2 * H + stk * H:2 * H + (stk + 1) * H, o0:o0 + N_KEYS] = wT[H:2 * H]  # bwd half
        bfc[0, o0:o0 + N_KEYS] = to_np(b_)
    return layers, (jnp.asarray(wfc), jnp.asarray(bfc))


# ============================ Forward wrapper ============================

def transcriber_rnn_forward(audio, mel_consts, lstm_packed, fc_packed):
    cos_sin, fb_pad, win = mel_consts
    (w0f, w0b, whh0, b0), (w1f, w1b, whh1, b1) = lstm_packed
    wfc, bfc = fc_packed

    b, s = audio.shape
    bp = ((b + 7) // 8) * 8
    pad = N_FFT // 2
    # torchaudio MelSpectrogram: center=True, reflect pad (the reference's F.pad'd
    # copy is dead code; the unpadded audio is what feeds the STFT).
    padded = jnp.pad(audio, ((0, 0), (pad, pad)), mode="reflect")
    n_frames = 1 + s // HOP_SIZE
    t = n_frames - 1            # reference drops frame 0 (mel[:, :, 1:]) — never compute it
    idx = np.arange(1, n_frames)[:, None] * HOP_SIZE + np.arange(N_FFT)[None, :]
    frames = padded[:, idx] * win                                     # (B, T, n_fft)
    # time-major rows, batch padded to 8 sublanes so every per-step tile is aligned
    frames_tm = jnp.transpose(frames, (1, 0, 2))                      # (T, B, n_fft)
    frames_rows = jnp.zeros((t, bp, N_FFT), jnp.float32).at[:, :b, :].set(frames_tm)
    frames_rows = frames_rows.reshape(t * bp, N_FFT)

    kernel = functools.partial(transcriber_kernel, T=t, BP=bp)
    out = pl.pallas_call(
        kernel,
        out_shape=jax.ShapeDtypeStruct((t * bp, 2 * OUT_PAD), jnp.float32),
        in_specs=[VMEM_SPEC] * 13,
        out_specs=VMEM_SPEC,
        scratch_shapes=[pltpu.VMEM((t * bp, GBLK), jnp.float32),
                        pltpu.VMEM((t * bp, GBLK), jnp.float32)],
    )(frames_rows, cos_sin, fb_pad,
      w0f, w0b, whh0, b0, w1f, w1b, whh1, b1, wfc, bfc)

    # TODO(synk): at production T, add a time-chunked grid ("arbitrary") streaming
    # frames/outputs with h/c carried in scratch, and split {frame,onset} across
    # v7x's two TensorCores via a parallel grid axis.
    out = out.reshape(t, bp, 2 * OUT_PAD)[:, :b, :]
    frame_out = jnp.transpose(out[:, :, :N_KEYS], (1, 0, 2))          # (B, T, 88)
    onset_out = jnp.transpose(out[:, :, OUT_PAD:OUT_PAD + N_KEYS], (1, 0, 2))
    return frame_out, onset_out


# ============================ Driver ============================

if __name__ == "__main__":
    key = jax.random.PRNGKey(0)

    frame_lstm_p, key = init_lstm_params(key, INPUT_SIZE, OUTPUT_SIZE, N_LAYERS)
    onset_lstm_p, key = init_lstm_params(key, INPUT_SIZE, OUTPUT_SIZE, N_LAYERS)
    # TODO(synk): the reference declares nn.Linear(output_size, 88) but the
    # bidirectional LSTM emits 2*output_size features (shape bug in the original);
    # we use in_features = 2*output_size so the forward is well-defined.
    frame_fc_p, key = init_fc_params(key, 2 * OUTPUT_SIZE, N_KEYS)
    onset_fc_p, key = init_fc_params(key, 2 * OUTPUT_SIZE, N_KEYS)

    mel_consts = make_mel_constants()
    lstm_packed, fc_packed = pack_params(frame_lstm_p, onset_lstm_p,
                                         frame_fc_p, onset_fc_p)

    # example input: batch=2, 128 audio samples -> T = 128 // HOP_SIZE = 8 frames
    key, k_audio = jax.random.split(key)
    audio = jax.random.normal(k_audio, (2, 128), dtype=jnp.float32)

    fwd = jax.jit(transcriber_rnn_forward)
    frame_out, onset_out = fwd(audio, mel_consts, lstm_packed, fc_packed)

    jax.block_until_ready((frame_out, onset_out))
    assert frame_out.shape == (2, 8, N_KEYS) and onset_out.shape == (2, 8, N_KEYS)
    print("KERNEL_OK")
</pallas_src>

<mosaic_0001>
module attributes {stable_mosaic.version = 11 : i64} {
  func.func @transcriber_kernel(%arg0: memref<64x64xf32, #tpu.memory_space<vmem>>, %arg1: memref<64x128xf32, #tpu.memory_space<vmem>>, %arg2: memref<64x32xf32, #tpu.memory_space<vmem>>, %arg3: memref<32x512xf32, #tpu.memory_space<vmem>>, %arg4: memref<32x512xf32, #tpu.memory_space<vmem>>, %arg5: memref<128x512xf32, #tpu.memory_space<vmem>>, %arg6: memref<1x512xf32, #tpu.memory_space<vmem>>, %arg7: memref<128x512xf32, #tpu.memory_space<vmem>>, %arg8: memref<128x512xf32, #tpu.memory_space<vmem>>, %arg9: memref<128x512xf32, #tpu.memory_space<vmem>>, %arg10: memref<1x512xf32, #tpu.memory_space<vmem>>, %arg11: memref<128x256xf32, #tpu.memory_space<vmem>>, %arg12: memref<1x256xf32, #tpu.memory_space<vmem>>, %arg13: memref<64x256xf32, #tpu.memory_space<vmem>>, %arg14: memref<64x128xf32, #tpu.memory_space<vmem>>, %arg15: memref<64x128xf32, #tpu.memory_space<vmem>>) attributes {dimension_semantics = [], scalar_prefetch = 0 : i64, scratch_operands = 2 : i64, tpu.core_type = #tpu.core_type<tc>} {
    %c0 = arith.constant 0 : index
    %c0_0 = arith.constant 0 : index
    %0 = vector.load %arg0[%c0, %c0_0] : memref<64x64xf32, #tpu.memory_space<vmem>>, vector<64x64xf32>
    %c0_1 = arith.constant 0 : index
    %c0_2 = arith.constant 0 : index
    %1 = vector.load %arg1[%c0_1, %c0_2] : memref<64x128xf32, #tpu.memory_space<vmem>>, vector<64x128xf32>
    %cst = arith.constant dense<0.000000e+00> : vector<64x128xf32>
    %2 = tpu.matmul %0, %1, %cst {dimension_numbers = #tpu.dot_dimension_numbers<[1], [0], [0], [1], [0, 0, 1, 1], [], []>} : vector<64x64xf32>, vector<64x128xf32>, vector<64x128xf32> -> vector<64x128xf32>
    %3 = vector.extract_strided_slice %2 {offsets = [0, 0], sizes = [64, 64], strides = [1, 1]} : vector<64x128xf32> to vector<64x64xf32>
    %4 = vector.extract_strided_slice %2 {offsets = [0, 64], sizes = [64, 64], strides = [1, 1]} : vector<64x128xf32> to vector<64x64xf32>
    %5 = arith.mulf %3, %3 : vector<64x64xf32>
    %6 = arith.mulf %4, %4 : vector<64x64xf32>
    %7 = arith.addf %5, %6 : vector<64x64xf32>
    %c0_3 = arith.constant 0 : index
    %c0_4 = arith.constant 0 : index
    %8 = vector.load %arg2[%c0_3, %c0_4] : memref<64x32xf32, #tpu.memory_space<vmem>>, vector<64x32xf32>
    %cst_5 = arith.constant dense<0.000000e+00> : vector<64x32xf32>
    %9 = tpu.matmul %7, %8, %cst_5 {dimension_numbers = #tpu.dot_dimension_numbers<[1], [0], [0], [1], [0, 0, 1, 1], [], []>} : vector<64x64xf32>, vector<64x32xf32>, vector<64x32xf32> -> vector<64x32xf32>
    %cst_6 = arith.constant 9.99999971E-10 : f32
    %10 = vector.broadcast %cst_6 : f32 to vector<64x32xf32>
    %11 = arith.maximumf %9, %10 : vector<64x32xf32>
    %12 = math.log %11 : vector<64x32xf32>
    %c0_7 = arith.constant 0 : index
    %c0_8 = arith.constant 0 : index
    %13 = vector.load %arg3[%c0_7, %c0_8] : memref<32x512xf32, #tpu.memory_space<vmem>>, vector<32x512xf32>
    %cst_9 = arith.constant dense<0.000000e+00> : vector<64x512xf32>
    %14 = tpu.matmul %12, %13, %cst_9 {dimension_numbers = #tpu.dot_dimension_numbers<[1], [0], [0], [1], [0, 0, 1, 1], [], []>} : vector<64x32xf32>, vector<32x512xf32>, vector<64x512xf32> -> vector<64x512xf32>
    %c0_10 = arith.constant 0 : index
    %c0_11 = arith.constant 0 : index
    %15 = vector.load %arg6[%c0_10, %c0_11] : memref<1x512xf32, #tpu.memory_space<vmem>>, vector<1x512xf32>
    %16 = vector.broadcast %15 : vector<1x512xf32> to vector<64x512xf32>
    %17 = arith.addf %14, %16 : vector<64x512xf32>
    %c0_12 = arith.constant 0 : index
    %c0_13 = arith.constant 0 : index
    %18 = vector.load %arg4[%c0_12, %c0_13] : memref<32x512xf32, #tpu.memory_space<vmem>>, vector<32x512xf32>
    %cst_14 = arith.constant dense<0.000000e+00> : vector<64x512xf32>
    %19 = tpu.matmul %12, %18, %cst_14 {dimension_numbers = #tpu.dot_dimension_numbers<[1], [0], [0], [1], [0, 0, 1, 1], [], []>} : vector<64x32xf32>, vector<32x512xf32>, vector<64x512xf32> -> vector<64x512xf32>
    %c0_15 = arith.constant 0 : index
    %c0_16 = arith.constant 0 : index
    %20 = vector.load %arg5[%c0_15, %c0_16] : memref<128x512xf32, #tpu.memory_space<vmem>>, vector<128x512xf32>
    %cst_17 = arith.constant 0.000000e+00 : f32
    %21 = vector.broadcast %cst_17 : f32 to vector<8x128xf32>
    %cst_18 = arith.constant 0.000000e+00 : f32
    %22 = vector.broadcast %cst_18 : f32 to vector<8x128xf32>
    %23 = vector.extract_strided_slice %17 {offsets = [0, 0], sizes = [8, 512], strides = [1, 1]} : vector<64x512xf32> to vector<8x512xf32>
    %24 = vector.extract_strided_slice %19 {offsets = [56, 0], sizes = [8, 512], strides = [1, 1]} : vector<64x512xf32> to vector<8x512xf32>
    %25 = arith.addf %23, %24 : vector<8x512xf32>
    %cst_19 = arith.constant dense<0.000000e+00> : vector<8x512xf32>
    %26 = tpu.matmul %21, %20, %cst_19 {dimension_numbers = #tpu.dot_dimension_numbers<[1], [0], [0], [1], [0, 0, 1, 1], [], []>} : vector<8x128xf32>, vector<128x512xf32>, vector<8x512xf32> -> vector<8x512xf32>
    %27 = arith.addf %25, %26 : vector<8x512xf32>
    %28 = vector.extract_strided_slice %27 {offsets = [0, 0], sizes = [8, 128], strides = [1, 1]} : vector<8x512xf32> to vector<8x128xf32>
    %29 = arith.negf %28 : vector<8x128xf32>
    %30 = math.exp %29 : vector<8x128xf32>
    %cst_20 = arith.constant 1.000000e+00 : f32
    %31 = vector.broadcast %cst_20 : f32 to vector<8x128xf32>
    %32 = arith.addf %31, %30 : vector<8x128xf32>
    %33 = arith.divf %31, %32 : vector<8x128xf32>
    %34 = vector.extract_strided_slice %27 {offsets = [0, 128], sizes = [8, 128], strides = [1, 1]} : vector<8x512xf32> to vector<8x128xf32>
    %35 = arith.negf %34 : vector<8x128xf32>
    %36 = math.exp %35 : vector<8x128xf32>
    %cst_21 = arith.constant 1.000000e+00 : f32
    %37 = vector.broadcast %cst_21 : f32 to vector<8x128xf32>
    %38 = arith.addf %37, %36 : vector<8x128xf32>
    %39 = arith.divf %37, %38 : vector<8x128xf32>
    %40 = vector.extract_strided_slice %27 {offsets = [0, 256], sizes = [8, 128], strides = [1, 1]} : vector<8x512xf32> to vector<8x128xf32>
    %41 = math.tanh %40 : vector<8x128xf32>
    %42 = vector.extract_strided_slice %27 {offsets = [0, 384], sizes = [8, 128], strides = [1, 1]} : vector<8x512xf32> to vector<8x128xf32>
    %43 = arith.negf %42 : vector<8x128xf32>
    %44 = math.exp %43 : vector<8x128xf32>
    %cst_22 = arith.constant 1.000000e+00 : f32
    %45 = vector.broadcast %cst_22 : f32 to vector<8x128xf32>
    %46 = arith.addf %45, %44 : vector<8x128xf32>
    %47 = arith.divf %45, %46 : vector<8x128xf32>
    %48 = arith.mulf %39, %22 : vector<8x128xf32>
    %49 = arith.mulf %33, %41 : vector<8x128xf32>
    %50 = arith.addf %48, %49 : vector<8x128xf32>
    %51 = math.tanh %50 : vector<8x128xf32>
    %52 = arith.mulf %47, %51 : vector<8x128xf32>
    %53 = vector.extract_strided_slice %52 {offsets = [0, 0], sizes = [8, 64], strides = [1, 1]} : vector<8x128xf32> to vector<8x64xf32>
    %c0_23 = arith.constant 0 : index
    %c0_24 = arith.constant 0 : index
    %54 = vector.load %arg14[%c0_23, %c0_24] : memref<64x128xf32, #tpu.memory_space<vmem>>, vector<8x64xf32>
    tpu.vector_store %arg14[%c0_23, %c0_24], %53 {strides = array<i32>} : memref<64x128xf32, #tpu.memory_space<vmem>>, vector<8x64xf32>,
    %55 = vector.extract_strided_slice %52 {offsets = [0, 64], sizes = [8, 64], strides = [1, 1]} : vector<8x128xf32> to vector<8x64xf32>
    %c56 = arith.constant 56 : index
    %c64 = arith.constant 64 : index
    %56 = vector.load %arg14[%c56, %c64] : memref<64x128xf32, #tpu.memory_space<vmem>>, vector<8x64xf32>
    tpu.vector_store %arg14[%c56, %c64], %55 {strides = array<i32>} : memref<64x128xf32, #tpu.memory_space<vmem>>, vector<8x64xf32>,
    %57 = vector.extract_strided_slice %17 {offsets = [8, 0], sizes = [8, 512], strides = [1, 1]} : vector<64x512xf32> to vector<8x512xf32>
    %58 = vector.extract_strided_slice %19 {offsets = [48, 0], sizes = [8, 512], strides = [1, 1]} : vector<64x512xf32> to vector<8x512xf32>
    %59 = arith.addf %57, %58 : vector<8x512xf32>
    %cst_25 = arith.constant dense<0.000000e+00> : vector<8x512xf32>
    %60 = tpu.matmul %52, %20, %cst_25 {dimension_numbers = #tpu.dot_dimension_numbers<[1], [0], [0], [1], [0, 0, 1, 1], [], []>} : vector<8x128xf32>, vector<128x512xf32>, vector<8x512xf32> -> vector<8x512xf32>
    %61 = arith.addf %59, %60 : vector<8x512xf32>
    %62 = vector.extract_strided_slice %61 {offsets = [0, 0], sizes = [8, 128], strides = [1, 1]} : vector<8x512xf32> to vector<8x128xf32>
    %63 = arith.negf %62 : vector<8x128xf32>
    %64 = math.exp %63 : vector<8x128xf32>
    %cst_26 = arith.constant 1.000000e+00 : f32
    %65 = vector.broadcast %cst_26 : f32 to vector<8x128xf32>
    %66 = arith.addf %65, %64 : vector<8x128xf32>
    %67 = arith.divf %65, %66 : vector<8x128xf32>
    %68 = vector.extract_strided_slice %61 {offsets = [0, 128], sizes = [8, 128], strides = [1, 1]} : vector<8x512xf32> to vector<8x128xf32>
    %69 = arith.negf %68 : vector<8x128xf32>
    %70 = math.exp %69 : vector<8x128xf32>
    %cst_27 = arith.constant 1.000000e+00 : f32
    %71 = vector.broadcast %cst_27 : f32 to vector<8x128xf32>
    %72 = arith.addf %71, %70 : vector<8x128xf32>
    %73 = arith.divf %71, %72 : vector<8x128xf32>
    %74 = vector.extract_strided_slice %61 {offsets = [0, 256], sizes = [8, 128], strides = [1, 1]} : vector<8x512xf32> to vector<8x128xf32>
    %75 = math.tanh %74 : vector<8x128xf32>
    %76 = vector.extract_strided_slice %61 {offsets = [0, 384], sizes = [8, 128], strides = [1, 1]} : vector<8x512xf32> to vector<8x128xf32>
    %77 = arith.negf %76 : vector<8x128xf32>
    %78 = math.exp %77 : vector<8x128xf32>
    %cst_28 = arith.constant 1.000000e+00 : f32
    %79 = vector.broadcast %cst_28 : f32 to vector<8x128xf32>
    %80 = arith.addf %79, %78 : vector<8x128xf32>
    %81 = arith.divf %79, %80 : vector<8x128xf32>
    %82 = arith.mulf %73, %50 : vector<8x128xf32>
    %83 = arith.mulf %67, %75 : vector<8x128xf32>
    %84 = arith.addf %82, %83 : vector<8x128xf32>
    %85 = math.tanh %84 : vector<8x128xf32>
    %86 = arith.mulf %81, %85 : vector<8x128xf32>
    %87 = vector.extract_strided_slice %86 {offsets = [0, 0], sizes = [8, 64], strides = [1, 1]} : vector<8x128xf32> to vector<8x64xf32>
    %c8 = arith.constant 8 : index
    %c0_29 = arith.constant 0 : index
    %88 = vector.load %arg14[%c8, %c0_29] : memref<64x128xf32, #tpu.memory_space<vmem>>, vector<8x64xf32>
    tpu.vector_store %arg14[%c8, %c0_29], %87 {strides = array<i32>} : memref<64x128xf32, #tpu.memory_space<vmem>>, vector<8x64xf32>,
    %89 = vector.extract_strided_slice %86 {offsets = [0, 64], sizes = [8, 64], strides = [1, 1]} : vector<8x128xf32> to vector<8x64xf32>
    %c48 = arith.constant 48 : index
    %c64_30 = arith.constant 64 : index
    %90 = vector.load %arg14[%c48, %c64_30] : memref<64x128xf32, #tpu.memory_space<vmem>>, vector<8x64xf32>
    tpu.vector_store %arg14[%c48, %c64_30], %89 {strides = array<i32>} : memref<64x128xf32, #tpu.memory_space<vmem>>, vector<8x64xf32>,
    %91 = vector.extract_strided_slice %17 {offsets = [16, 0], sizes = [8, 512], strides = [1, 1]} : vector<64x512xf32> to vector<8x512xf32>
    %92 = vector.extract_strided_slice %19 {offsets = [40, 0], sizes = [8, 512], strides = [1, 1]} : vector<64x512xf32> to vector<8x512xf32>
    %93 = arith.addf %91, %92 : vector<8x512xf32>
    %cst_31 = arith.constant dense<0.000000e+00> : vector<8x512xf32>
    %94 = tpu.matmul %86, %20, %cst_31 {dimension_numbers = #tpu.dot_dimension_numbers<[1], [0], [0], [1], [0, 0, 1, 1], [], []>} : vector<8x128xf32>, vector<128x512xf32>, vector<8x512xf32> -> vector<8x512xf32>
    %95 = arith.addf %93, %94 : vector<8x512xf32>
    %96 = vector.extract_strided_slice %95 {offsets = [0, 0], sizes = [8, 128], strides = [1, 1]} : vector<8x512xf32> to vector<8x128xf32>
    %97 = arith.negf %96 : vector<8x128xf32>
    %98 = math.exp %97 : vector<8x128xf32>
    %cst_32 = arith.constant 1.000000e+00 : f32
    %99 = vector.broadcast %cst_32 : f32 to vector<8x128xf32>
    %100 = arith.addf %99, %98 : vector<8x128xf32>
    %101 = arith.divf %99, %100 : vector<8x128xf32>
    %102 = vector.extract_strided_slice %95 {offsets = [0, 128], sizes = [8, 128], strides = [1, 1]} : vector<8x512xf32> to vector<8x128xf32>
    %103 = arith.negf %102 : vector<8x128xf32>
    %104 = math.exp %103 : vector<8x128xf32>
    %cst_33 = arith.constant 1.000000e+00 : f32
    %105 = vector.broadcast %cst_33 : f32 to vector<8x128xf32>
    %106 = arith.addf %105, %104 : vector<8x128xf32>
    %107 = arith.divf %105, %106 : vector<8x128xf32>
    %108 = vector.extract_strided_slice %95 {offsets = [0, 256], sizes = [8, 128], strides = [1, 1]} : vector<8x512xf32> to vector<8x128xf32>
    %109 = math.tanh %108 : vector<8x128xf32>
    %110 = vector.extract_strided_slice %95 {offsets = [0, 384], sizes = [8, 128], strides = [1, 1]} : vector<8x512xf32> to vector<8x128xf32>
    %111 = arith.negf %110 : vector<8x128xf32>
    %112 = math.exp %111 : vector<8x128xf32>
    %cst_34 = arith.constant 1.000000e+00 : f32
    %113 = vector.broadcast %cst_34 : f32 to vector<8x128xf32>
    %114 = arith.addf %113, %112 : vector<8x128xf32>
    %115 = arith.divf %113, %114 : vector<8x128xf32>
    %116 = arith.mulf %107, %84 : vector<8x128xf32>
    %117 = arith.mulf %101, %109 : vector<8x128xf32>
    %118 = arith.addf %116, %117 : vector<8x128xf32>
    %119 = math.tanh %118 : vector<8x128xf32>
    %120 = arith.mulf %115, %119 : vector<8x128xf32>
    %121 = vector.extract_strided_slice %120 {offsets = [0, 0], sizes = [8, 64], strides = [1, 1]} : vector<8x128xf32> to vector<8x64xf32>
    %c16 = arith.constant 16 : index
    %c0_35 = arith.constant 0 : index
    %122 = vector.load %arg14[%c16, %c0_35] : memref<64x128xf32, #tpu.memory_space<vmem>>, vector<8x64xf32>
    tpu.vector_store %arg14[%c16, %c0_35], %121 {strides = array<i32>} : memref<64x128xf32, #tpu.memory_space<vmem>>, vector<8x64xf32>,
    %123 = vector.extract_strided_slice %120 {offsets = [0, 64], sizes = [8, 64], strides = [1, 1]} : vector<8x128xf32> to vector<8x64xf32>
    %c40 = arith.constant 40 : index
    %c64_36 = arith.constant 64 : index
    %124 = vector.load %arg14[%c40, %c64_36] : memref<64x128xf32, #tpu.memory_space<vmem>>, vector<8x64xf32>
    tpu.vector_store %arg14[%c40, %c64_36], %123 {strides = array<i32>} : memref<64x128xf32, #tpu.memory_space<vmem>>, vector<8x64xf32>,
    %125 = vector.extract_strided_slice %17 {offsets = [24, 0], sizes = [8, 512], strides = [1, 1]} : vector<64x512xf32> to vector<8x512xf32>
    %126 = vector.extract_strided_slice %19 {offsets = [32, 0], sizes = [8, 512], strides = [1, 1]} : vector<64x512xf32> to vector<8x512xf32>
    %127 = arith.addf %125, %126 : vector<8x512xf32>
    %cst_37 = arith.constant dense<0.000000e+00> : vector<8x512xf32>
    %128 = tpu.matmul %120, %20, %cst_37 {dimension_numbers = #tpu.dot_dimension_numbers<[1], [0], [0], [1], [0, 0, 1, 1], [], []>} : vector<8x128xf32>, vector<128x512xf32>, vector<8x512xf32> -> vector<8x512xf32>
    %129 = arith.addf %127, %128 : vector<8x512xf32>
    %130 = vector.extract_strided_slice %129 {offsets = [0, 0], sizes = [8, 128], strides = [1, 1]} : vector<8x512xf32> to vector<8x128xf32>
    %131 = arith.negf %130 : vector<8x128xf32>
    %132 = math.exp %131 : vector<8x128xf32>
    %cst_38 = arith.constant 1.000000e+00 : f32
    %133 = vector.broadcast %cst_38 : f32 to vector<8x128xf32>
    %134 = arith.addf %133, %132 : vector<8x128xf32>
    %135 = arith.divf %133, %134 : vector<8x128xf32>
    %136 = vector.extract_strided_slice %129 {offsets = [0, 128], sizes = [8, 128], strides = [1, 1]} : vector<8x512xf32> to vector<8x128xf32>
    %137 = arith.negf %136 : vector<8x128xf32>
    %138 = math.exp %137 : vector<8x128xf32>
    %cst_39 = arith.constant 1.000000e+00 : f32
    %139 = vector.broadcast %cst_39 : f32 to vector<8x128xf32>
    %140 = arith.addf %139, %138 : vector<8x128xf32>
    %141 = arith.divf %139, %140 : vector<8x128xf32>
    %142 = vector.extract_strided_slice %129 {offsets = [0, 256], sizes = [8, 128], strides = [1, 1]} : vector<8x512xf32> to vector<8x128xf32>
    %143 = math.tanh %142 : vector<8x128xf32>
    %144 = vector.extract_strided_slice %129 {offsets = [0, 384], sizes = [8, 128], strides = [1, 1]} : vector<8x512xf32> to vector<8x128xf32>
    %145 = arith.negf %144 : vector<8x128xf32>
    %146 = math.exp %145 : vector<8x128xf32>
    %cst_40 = arith.constant 1.000000e+00 : f32
    %147 = vector.broadcast %cst_40 : f32 to vector<8x128xf32>
    %148 = arith.addf %147, %146 : vector<8x128xf32>
    %149 = arith.divf %147, %148 : vector<8x128xf32>
    %150 = arith.mulf %141, %118 : vector<8x128xf32>
    %151 = arith.mulf %135, %143 : vector<8x128xf32>
    %152 = arith.addf %150, %151 : vector<8x128xf32>
    %153 = math.tanh %152 : vector<8x128xf32>
    %154 = arith.mulf %149, %153 : vector<8x128xf32>
    %155 = vector.extract_strided_slice %154 {offsets = [0, 0], sizes = [8, 64], strides = [1, 1]} : vector<8x128xf32> to vector<8x64xf32>
    %c24 = arith.constant 24 : index
    %c0_41 = arith.constant 0 : index
    %156 = vector.load %arg14[%c24, %c0_41] : memref<64x128xf32, #tpu.memory_space<vmem>>, vector<8x64xf32>
    tpu.vector_store %arg14[%c24, %c0_41], %155 {strides = array<i32>} : memref<64x128xf32, #tpu.memory_space<vmem>>, vector<8x64xf32>,
    %157 = vector.extract_strided_slice %154 {offsets = [0, 64], sizes = [8, 64], strides = [1, 1]} : vector<8x128xf32> to vector<8x64xf32>
    %c32 = arith.constant 32 : index
    %c64_42 = arith.constant 64 : index
    %158 = vector.load %arg14[%c32, %c64_42] : memref<64x128xf32, #tpu.memory_space<vmem>>, vector<8x64xf32>
    tpu.vector_store %arg14[%c32, %c64_42], %157 {strides = array<i32>} : memref<64x128xf32, #tpu.memory_space<vmem>>, vector<8x64xf32>,
    %159 = vector.extract_strided_slice %17 {offsets = [32, 0], sizes = [8, 512], strides = [1, 1]} : vector<64x512xf32> to vector<8x512xf32>
    %160 = vector.extract_strided_slice %19 {offsets = [24, 0], sizes = [8, 512], strides = [1, 1]} : vector<64x512xf32> to vector<8x512xf32>
    %161 = arith.addf %159, %160 : vector<8x512xf32>
    %cst_43 = arith.constant dense<0.000000e+00> : vector<8x512xf32>
    %162 = tpu.matmul %154, %20, %cst_43 {dimension_numbers = #tpu.dot_dimension_numbers<[1], [0], [0], [1], [0, 0, 1, 1], [], []>} : vector<8x128xf32>, vector<128x512xf32>, vector<8x512xf32> -> vector<8x512xf32>
    %163 = arith.addf %161, %162 : vector<8x512xf32>
    %164 = vector.extract_strided_slice %163 {offsets = [0, 0], sizes = [8, 128], strides = [1, 1]} : vector<8x512xf32> to vector<8x128xf32>
    %165 = arith.negf %164 : vector<8x128xf32>
    %166 = math.exp %165 : vector<8x128xf32>
    %cst_44 = arith.constant 1.000000e+00 : f32
    %167 = vector.broadcast %cst_44 : f32 to vector<8x128xf32>
    %168 = arith.addf %167, %166 : vector<8x128xf32>
    %169 = arith.divf %167, %168 : vector<8x128xf32>
    %170 = vector.extract_strided_slice %163 {offsets = [0, 128], sizes = [8, 128], strides = [1, 1]} : vector<8x512xf32> to vector<8x128xf32>
    %171 = arith.negf %170 : vector<8x128xf32>
    %172 = math.exp %171 : vector<8x128xf32>
    %cst_45 = arith.constant 1.000000e+00 : f32
    %173 = vector.broadcast %cst_45 : f32 to vector<8x128xf32>
    %174 = arith.addf %173, %172 : vector<8x128xf32>
    %175 = arith.divf %173, %174 : vector<8x128xf32>
    %176 = vector.extract_strided_slice %163 {offsets = [0, 256], sizes = [8, 128], strides = [1, 1]} : vector<8x512xf32> to vector<8x128xf32>
    %177 = math.tanh %176 : vector<8x128xf32>
    %178 = vector.extract_strided_slice %163 {offsets = [0, 384], sizes = [8, 128], strides = [1, 1]} : vector<8x512xf32> to vector<8x128xf32>
    %179 = arith.negf %178 : vector<8x128xf32>
    %180 = math.exp %179 : vector<8x128xf32>
    %cst_46 = arith.constant 1.000000e+00 : f32
    %181 = vector.broadcast %cst_46 : f32 to vector<8x128xf32>
    %182 = arith.addf %181, %180 : vector<8x128xf32>
    %183 = arith.divf %181, %182 : vector<8x128xf32>
    %184 = arith.mulf %175, %152 : vector<8x128xf32>
    %185 = arith.mulf %169, %177 : vector<8x128xf32>
    %186 = arith.addf %184, %185 : vector<8x128xf32>
    %187 = math.tanh %186 : vector<8x128xf32>
    %188 = arith.mulf %183, %187 : vector<8x128xf32>
    %189 = vector.extract_strided_slice %188 {offsets = [0, 0], sizes = [8, 64], strides = [1, 1]} : vector<8x128xf32> to vector<8x64xf32>
    %c32_47 = arith.constant 32 : index
    %c0_48 = arith.constant 0 : index
    %190 = vector.load %arg14[%c32_47, %c0_48] : memref<64x128xf32, #tpu.memory_space<vmem>>, vector<8x64xf32>
    tpu.vector_store %arg14[%c32_47, %c0_48], %189 {strides = array<i32>} : memref<64x128xf32, #tpu.memory_space<vmem>>, vector<8x64xf32>,
    %191 = vector.extract_strided_slice %188 {offsets = [0, 64], sizes = [8, 64], strides = [1, 1]} : vector<8x128xf32> to vector<8x64xf32>
    %c24_49 = arith.constant 24 : index
    %c64_50 = arith.constant 64 : index
    %192 = vector.load %arg14[%c24_49, %c64_50] : memref<64x128xf32, #tpu.memory_space<vmem>>, vector<8x64xf32>
    tpu.vector_store %arg14[%c24_49, %c64_50], %191 {strides = array<i32>} : memref<64x128xf32, #tpu.memory_space<vmem>>, vector<8x64xf32>,
    %193 = vector.extract_strided_slice %17 {offsets = [40, 0], sizes = [8, 512], strides = [1, 1]} : vector<64x512xf32> to vector<8x512xf32>
    %194 = vector.extract_strided_slice %19 {offsets = [16, 0], sizes = [8, 512], strides = [1, 1]} : vector<64x512xf32> to vector<8x512xf32>
    %195 = arith.addf %193, %194 : vector<8x512xf32>
    %cst_51 = arith.constant dense<0.000000e+00> : vector<8x512xf32>
    %196 = tpu.matmul %188, %20, %cst_51 {dimension_numbers = #tpu.dot_dimension_numbers<[1], [0], [0], [1], [0, 0, 1, 1], [], []>} : vector<8x128xf32>, vector<128x512xf32>, vector<8x512xf32> -> vector<8x512xf32>
    %197 = arith.addf %195, %196 : vector<8x512xf32>
    %198 = vector.extract_strided_slice %197 {offsets = [0, 0], sizes = [8, 128], strides = [1, 1]} : vector<8x512xf32> to vector<8x128xf32>
    %199 = arith.negf %198 : vector<8x128xf32>
    %200 = math.exp %199 : vector<8x128xf32>
    %cst_52 = arith.constant 1.000000e+00 : f32
    %201 = vector.broadcast %cst_52 : f32 to vector<8x128xf32>
    %202 = arith.addf %201, %200 : vector<8x128xf32>
    %203 = arith.divf %201, %202 : vector<8x128xf32>
    %204 = vector.extract_strided_slice %197 {offsets = [0, 128], sizes = [8, 128], strides = [1, 1]} : vector<8x512xf32> to vector<8x128xf32>
    %205 = arith.negf %204 : vector<8x128xf32>
    %206 = math.exp %205 : vector<8x128xf32>
    %cst_53 = arith.constant 1.000000e+00 : f32
    %207 = vector.broadcast %cst_53 : f32 to vector<8x128xf32>
    %208 = arith.addf %207, %206 : vector<8x128xf32>
    %209 = arith.divf %207, %208 : vector<8x128xf32>
    %210 = vector.extract_strided_slice %197 {offsets = [0, 256], sizes = [8, 128], strides = [1, 1]} : vector<8x512xf32> to vector<8x128xf32>
    %211 = math.tanh %210 : vector<8x128xf32>
    %212 = vector.extract_strided_slice %197 {offsets = [0, 384], sizes = [8, 128], strides = [1, 1]} : vector<8x512xf32> to vector<8x128xf32>
    %213 = arith.negf %212 : vector<8x128xf32>
    %214 = math.exp %213 : vector<8x128xf32>
    %cst_54 = arith.constant 1.000000e+00 : f32
    %215 = vector.broadcast %cst_54 : f32 to vector<8x128xf32>
    %216 = arith.addf %215, %214 : vector<8x128xf32>
    %217 = arith.divf %215, %216 : vector<8x128xf32>
    %218 = arith.mulf %209, %186 : vector<8x128xf32>
    %219 = arith.mulf %203, %211 : vector<8x128xf32>
    %220 = arith.addf %218, %219 : vector<8x128xf32>
    %221 = math.tanh %220 : vector<8x128xf32>
    %222 = arith.mulf %217, %221 : vector<8x128xf32>
    %223 = vector.extract_strided_slice %222 {offsets = [0, 0], sizes = [8, 64], strides = [1, 1]} : vector<8x128xf32> to vector<8x64xf32>
    %c40_55 = arith.constant 40 : index
    %c0_56 = arith.constant 0 : index
    %224 = vector.load %arg14[%c40_55, %c0_56] : memref<64x128xf32, #tpu.memory_space<vmem>>, vector<8x64xf32>
    tpu.vector_store %arg14[%c40_55, %c0_56], %223 {strides = array<i32>} : memref<64x128xf32, #tpu.memory_space<vmem>>, vector<8x64xf32>,
    %225 = vector.extract_strided_slice %222 {offsets = [0, 64], sizes = [8, 64], strides = [1, 1]} : vector<8x128xf32> to vector<8x64xf32>
    %c16_57 = arith.constant 16 : index
    %c64_58 = arith.constant 64 : index
    %226 = vector.load %arg14[%c16_57, %c64_58] : memref<64x128xf32, #tpu.memory_space<vmem>>, vector<8x64xf32>
    tpu.vector_store %arg14[%c16_57, %c64_58], %225 {strides = array<i32>} : memref<64x128xf32, #tpu.memory_space<vmem>>, vector<8x64xf32>,
    %227 = vector.extract_strided_slice %17 {offsets = [48, 0], sizes = [8, 512], strides = [1, 1]} : vector<64x512xf32> to vector<8x512xf32>
    %228 = vector.extract_strided_slice %19 {offsets = [8, 0], sizes = [8, 512], strides = [1, 1]} : vector<64x512xf32> to vector<8x512xf32>
    %229 = arith.addf %227, %228 : vector<8x512xf32>
    %cst_59 = arith.constant dense<0.000000e+00> : vector<8x512xf32>
    %230 = tpu.matmul %222, %20, %cst_59 {dimension_numbers = #tpu.dot_dimension_numbers<[1], [0], [0], [1], [0, 0, 1, 1], [], []>} : vector<8x128xf32>, vector<128x512xf32>, vector<8x512xf32> -> vector<8x512xf32>
    %231 = arith.addf %229, %230 : vector<8x512xf32>
    %232 = vector.extract_strided_slice %231 {offsets = [0, 0], sizes = [8, 128], strides = [1, 1]} : vector<8x512xf32> to vector<8x128xf32>
    %233 = arith.negf %232 : vector<8x128xf32>
    %234 = math.exp %233 : vector<8x128xf32>
    %cst_60 = arith.constant 1.000000e+00 : f32
    %235 = vector.broadcast %cst_60 : f32 to vector<8x128xf32>
    %236 = arith.addf %235, %234 : vector<8x128xf32>
    %237 = arith.divf %235, %236 : vector<8x128xf32>
    %238 = vector.extract_strided_slice %231 {offsets = [0, 128], sizes = [8, 128], strides = [1, 1]} : vector<8x512xf32> to vector<8x128xf32>
    %239 = arith.negf %238 : vector<8x128xf32>
    %240 = math.exp %239 : vector<8x128xf32>
    %cst_61 = arith.constant 1.000000e+00 : f32
    %241 = vector.broadcast %cst_61 : f32 to vector<8x128xf32>
    %242 = arith.addf %241, %240 : vector<8x128xf32>
    %243 = arith.divf %241, %242 : vector<8x128xf32>
    %244 = vector.extract_strided_slice %231 {offsets = [0, 256], sizes = [8, 128], strides = [1, 1]} : vector<8x512xf32> to vector<8x128xf32>
    %245 = math.tanh %244 : vector<8x128xf32>
    %246 = vector.extract_strided_slice %231 {offsets = [0, 384], sizes = [8, 128], strides = [1, 1]} : vector<8x512xf32> to vector<8x128xf32>
    %247 = arith.negf %246 : vector<8x128xf32>
    %248 = math.exp %247 : vector<8x128xf32>
    %cst_62 = arith.constant 1.000000e+00 : f32
    %249 = vector.broadcast %cst_62 : f32 to vector<8x128xf32>
    %250 = arith.addf %249, %248 : vector<8x128xf32>
    %251 = arith.divf %249, %250 : vector<8x128xf32>
    %252 = arith.mulf %243, %220 : vector<8x128xf32>
    %253 = arith.mulf %237, %245 : vector<8x128xf32>
    %254 = arith.addf %252, %253 : vector<8x128xf32>
    %255 = math.tanh %254 : vector<8x128xf32>
    %256 = arith.mulf %251, %255 : vector<8x128xf32>
    %257 = vector.extract_strided_slice %256 {offsets = [0, 0], sizes = [8, 64], strides = [1, 1]} : vector<8x128xf32> to vector<8x64xf32>
    %c48_63 = arith.constant 48 : index
    %c0_64 = arith.constant 0 : index
    %258 = vector.load %arg14[%c48_63, %c0_64] : memref<64x128xf32, #tpu.memory_space<vmem>>, vector<8x64xf32>
    tpu.vector_store %arg14[%c48_63, %c0_64], %257 {strides = array<i32>} : memref<64x128xf32, #tpu.memory_space<vmem>>, vector<8x64xf32>,
    %259 = vector.extract_strided_slice %256 {offsets = [0, 64], sizes = [8, 64], strides = [1, 1]} : vector<8x128xf32> to vector<8x64xf32>
    %c8_65 = arith.constant 8 : index
    %c64_66 = arith.constant 64 : index
    %260 = vector.load %arg14[%c8_65, %c64_66] : memref<64x128xf32, #tpu.memory_space<vmem>>, vector<8x64xf32>
    tpu.vector_store %arg14[%c8_65, %c64_66], %259 {strides = array<i32>} : memref<64x128xf32, #tpu.memory_space<vmem>>, vector<8x64xf32>,
    %261 = vector.extract_strided_slice %17 {offsets = [56, 0], sizes = [8, 512], strides = [1, 1]} : vector<64x512xf32> to vector<8x512xf32>
    %262 = vector.extract_strided_slice %19 {offsets = [0, 0], sizes = [8, 512], strides = [1, 1]} : vector<64x512xf32> to vector<8x512xf32>
    %263 = arith.addf %261, %262 : vector<8x512xf32>
    %cst_67 = arith.constant dense<0.000000e+00> : vector<8x512xf32>
    %264 = tpu.matmul %256, %20, %cst_67 {dimension_numbers = #tpu.dot_dimension_numbers<[1], [0], [0], [1], [0, 0, 1, 1], [], []>} : vector<8x128xf32>, vector<128x512xf32>, vector<8x512xf32> -> vector<8x512xf32>
    %265 = arith.addf %263, %264 : vector<8x512xf32>
    %266 = vector.extract_strided_slice %265 {offsets = [0, 0], sizes = [8, 128], strides = [1, 1]} : vector<8x512xf32> to vector<8x128xf32>
    %267 = arith.negf %266 : vector<8x128xf32>
    %268 = math.exp %267 : vector<8x128xf32>
    %cst_68 = arith.constant 1.000000e+00 : f32
    %269 = vector.broadcast %cst_68 : f32 to vector<8x128xf32>
    %270 = arith.addf %269, %268 : vector<8x128xf32>
    %271 = arith.divf %269, %270 : vector<8x128xf32>
    %272 = vector.extract_strided_slice %265 {offsets = [0, 128], sizes = [8, 128], strides = [1, 1]} : vector<8x512xf32> to vector<8x128xf32>
    %273 = arith.negf %272 : vector<8x128xf32>
    %274 = math.exp %273 : vector<8x128xf32>
    %cst_69 = arith.constant 1.000000e+00 : f32
    %275 = vector.broadcast %cst_69 : f32 to vector<8x128xf32>
    %276 = arith.addf %275, %274 : vector<8x128xf32>
    %277 = arith.divf %275, %276 : vector<8x128xf32>
    %278 = vector.extract_strided_slice %265 {offsets = [0, 256], sizes = [8, 128], strides = [1, 1]} : vector<8x512xf32> to vector<8x128xf32>
    %279 = math.tanh %278 : vector<8x128xf32>
    %280 = vector.extract_strided_slice %265 {offsets = [0, 384], sizes = [8, 128], strides = [1, 1]} : vector<8x512xf32> to vector<8x128xf32>
    %281 = arith.negf %280 : vector<8x128xf32>
    %282 = math.exp %281 : vector<8x128xf32>
    %cst_70 = arith.constant 1.000000e+00 : f32
    %283 = vector.broadcast %cst_70 : f32 to vector<8x128xf32>
    %284 = arith.addf %283, %282 : vector<8x128xf32>
    %285 = arith.divf %283, %284 : vector<8x128xf32>
    %286 = arith.mulf %277, %254 : vector<8x128xf32>
    %287 = arith.mulf %271, %279 : vector<8x128xf32>
    %288 = arith.addf %286, %287 : vector<8x128xf32>
    %289 = math.tanh %288 : vector<8x128xf32>
    %290 = arith.mulf %285, %289 : vector<8x128xf32>
    %291 = vector.extract_strided_slice %290 {offsets = [0, 0], sizes = [8, 64], strides = [1, 1]} : vector<8x128xf32> to vector<8x64xf32>
    %c56_71 = arith.constant 56 : index
    %c0_72 = arith.constant 0 : index
    %292 = vector.load %arg14[%c56_71, %c0_72] : memref<64x128xf32, #tpu.memory_space<vmem>>, vector<8x64xf32>
    tpu.vector_store %arg14[%c56_71, %c0_72], %291 {strides = array<i32>} : memref<64x128xf32, #tpu.memory_space<vmem>>, vector<8x64xf32>,
    %293 = vector.extract_strided_slice %290 {offsets = [0, 64], sizes = [8, 64], strides = [1, 1]} : vector<8x128xf32> to vector<8x64xf32>
    %c0_73 = arith.constant 0 : index
    %c64_74 = arith.constant 64 : index
    %294 = vector.load %arg14[%c0_73, %c64_74] : memref<64x128xf32, #tpu.memory_space<vmem>>, vector<8x64xf32>
    tpu.vector_store %arg14[%c0_73, %c64_74], %293 {strides = array<i32>} : memref<64x128xf32, #tpu.memory_space<vmem>>, vector<8x64xf32>,
    %c0_75 = arith.constant 0 : index
    %c0_76 = arith.constant 0 : index
    %295 = vector.load %arg14[%c0_75, %c0_76] : memref<64x128xf32, #tpu.memory_space<vmem>>, vector<64x128xf32>
    %c0_77 = arith.constant 0 : index
    %c0_78 = arith.constant 0 : index
    %296 = vector.load %arg7[%c0_77, %c0_78] : memref<128x512xf32, #tpu.memory_space<vmem>>, vector<128x512xf32>
    %cst_79 = arith.constant dense<0.000000e+00> : vector<64x512xf32>
    %297 = tpu.matmul %295, %296, %cst_79 {dimension_numbers = #tpu.dot_dimension_numbers<[1], [0], [0], [1], [0, 0, 1, 1], [], []>} : vector<64x128xf32>, vector<128x512xf32>, vector<64x512xf32> -> vector<64x512xf32>
    %c0_80 = arith.constant 0 : index
    %c0_81 = arith.constant 0 : index
    %298 = vector.load %arg10[%c0_80, %c0_81] : memref<1x512xf32, #tpu.memory_space<vmem>>, vector<1x512xf32>
    %299 = vector.broadcast %298 : vector<1x512xf32> to vector<64x512xf32>
    %300 = arith.addf %297, %299 : vector<64x512xf32>
    %c0_82 = arith.constant 0 : index
    %c0_83 = arith.constant 0 : index
    %301 = vector.load %arg8[%c0_82, %c0_83] : memref<128x512xf32, #tpu.memory_space<vmem>>, vector<128x512xf32>
    %cst_84 = arith.constant dense<0.000000e+00> : vector<64x512xf32>
    %302 = tpu.matmul %295, %301, %cst_84 {dimension_numbers = #tpu.dot_dimension_numbers<[1], [0], [0], [1], [0, 0, 1, 1], [], []>} : vector<64x128xf32>, vector<128x512xf32>, vector<64x512xf32> -> vector<64x512xf32>
    %c0_85 = arith.constant 0 : index
    %c0_86 = arith.constant 0 : index
    %303 = vector.load %arg9[%c0_85, %c0_86] : memref<128x512xf32, #tpu.memory_space<vmem>>, vector<128x512xf32>
    %cst_87 = arith.constant 0.000000e+00 : f32
    %304 = vector.broadcast %cst_87 : f32 to vector<8x128xf32>
    %cst_88 = arith.constant 0.000000e+00 : f32
    %305 = vector.broadcast %cst_88 : f32 to vector<8x128xf32>
    %306 = vector.extract_strided_slice %300 {offsets = [0, 0], sizes = [8, 512], strides = [1, 1]} : vector<64x512xf32> to vector<8x512xf32>
    %307 = vector.extract_strided_slice %302 {offsets = [56, 0], sizes = [8, 512], strides = [1, 1]} : vector<64x512xf32> to vector<8x512xf32>
    %308 = arith.addf %306, %307 : vector<8x512xf32>
    %cst_89 = arith.constant dense<0.000000e+00> : vector<8x512xf32>
    %309 = tpu.matmul %304, %303, %cst_89 {dimension_numbers = #tpu.dot_dimension_numbers<[1], [0], [0], [1], [0, 0, 1, 1], [], []>} : vector<8x128xf32>, vector<128x512xf32>, vector<8x512xf32> -> vector<8x512xf32>
    %310 = arith.addf %308, %309 : vector<8x512xf32>
    %311 = vector.extract_strided_slice %310 {offsets = [0, 0], sizes = [8, 128], strides = [1, 1]} : vector<8x512xf32> to vector<8x128xf32>
    %312 = arith.negf %311 : vector<8x128xf32>
    %313 = math.exp %312 : vector<8x128xf32>
    %cst_90 = arith.constant 1.000000e+00 : f32
    %314 = vector.broadcast %cst_90 : f32 to vector<8x128xf32>
    %315 = arith.addf %314, %313 : vector<8x128xf32>
    %316 = arith.divf %314, %315 : vector<8x128xf32>
    %317 = vector.extract_strided_slice %310 {offsets = [0, 128], sizes = [8, 128], strides = [1, 1]} : vector<8x512xf32> to vector<8x128xf32>
    %318 = arith.negf %317 : vector<8x128xf32>
    %319 = math.exp %318 : vector<8x128xf32>
    %cst_91 = arith.constant 1.000000e+00 : f32
    %320 = vector.broadcast %cst_91 : f32 to vector<8x128xf32>
    %321 = arith.addf %320, %319 : vector<8x128xf32>
    %322 = arith.divf %320, %321 : vector<8x128xf32>
    %323 = vector.extract_strided_slice %310 {offsets = [0, 256], sizes = [8, 128], strides = [1, 1]} : vector<8x512xf32> to vector<8x128xf32>
    %324 = math.tanh %323 : vector<8x128xf32>
    %325 = vector.extract_strided_slice %310 {offsets = [0, 384], sizes = [8, 128], strides = [1, 1]} : vector<8x512xf32> to vector<8x128xf32>
    %326 = arith.negf %325 : vector<8x128xf32>
    %327 = math.exp %326 : vector<8x128xf32>
    %cst_92 = arith.constant 1.000000e+00 : f32
    %328 = vector.broadcast %cst_92 : f32 to vector<8x128xf32>
    %329 = arith.addf %328, %327 : vector<8x128xf32>
    %330 = arith.divf %328, %329 : vector<8x128xf32>
    %331 = arith.mulf %322, %305 : vector<8x128xf32>
    %332 = arith.mulf %316, %324 : vector<8x128xf32>
    %333 = arith.addf %331, %332 : vector<8x128xf32>
    %334 = math.tanh %333 : vector<8x128xf32>
    %335 = arith.mulf %330, %334 : vector<8x128xf32>
    %336 = vector.extract_strided_slice %335 {offsets = [0, 0], sizes = [8, 64], strides = [1, 1]} : vector<8x128xf32> to vector<8x64xf32>
    %c0_93 = arith.constant 0 : index
    %c0_94 = arith.constant 0 : index
    %337 = vector.load %arg15[%c0_93, %c0_94] : memref<64x128xf32, #tpu.memory_space<vmem>>, vector<8x64xf32>
    tpu.vector_store %arg15[%c0_93, %c0_94], %336 {strides = array<i32>} : memref<64x128xf32, #tpu.memory_space<vmem>>, vector<8x64xf32>,
    %338 = vector.extract_strided_slice %335 {offsets = [0, 64], sizes = [8, 64], strides = [1, 1]} : vector<8x128xf32> to vector<8x64xf32>
    %c56_95 = arith.constant 56 : index
    %c64_96 = arith.constant 64 : index
    %339 = vector.load %arg15[%c56_95, %c64_96] : memref<64x128xf32, #tpu.memory_space<vmem>>, vector<8x64xf32>
    tpu.vector_store %arg15[%c56_95, %c64_96], %338 {strides = array<i32>} : memref<64x128xf32, #tpu.memory_space<vmem>>, vector<8x64xf32>,
    %340 = vector.extract_strided_slice %300 {offsets = [8, 0], sizes = [8, 512], strides = [1, 1]} : vector<64x512xf32> to vector<8x512xf32>
    %341 = vector.extract_strided_slice %302 {offsets = [48, 0], sizes = [8, 512], strides = [1, 1]} : vector<64x512xf32> to vector<8x512xf32>
    %342 = arith.addf %340, %341 : vector<8x512xf32>
    %cst_97 = arith.constant dense<0.000000e+00> : vector<8x512xf32>
    %343 = tpu.matmul %335, %303, %cst_97 {dimension_numbers = #tpu.dot_dimension_numbers<[1], [0], [0], [1], [0, 0, 1, 1], [], []>} : vector<8x128xf32>, vector<128x512xf32>, vector<8x512xf32> -> vector<8x512xf32>
    %344 = arith.addf %342, %343 : vector<8x512xf32>
    %345 = vector.extract_strided_slice %344 {offsets = [0, 0], sizes = [8, 128], strides = [1, 1]} : vector<8x512xf32> to vector<8x128xf32>
    %346 = arith.negf %345 : vector<8x128xf32>
    %347 = math.exp %346 : vector<8x128xf32>
    %cst_98 = arith.constant 1.000000e+00 : f32
    %348 = vector.broadcast %cst_98 : f32 to vector<8x128xf32>
    %349 = arith.addf %348, %347 : vector<8x128xf32>
    %350 = arith.divf %348, %349 : vector<8x128xf32>
    %351 = vector.extract_strided_slice %344 {offsets = [0, 128], sizes = [8, 128], strides = [1, 1]} : vector<8x512xf32> to vector<8x128xf32>
    %352 = arith.negf %351 : vector<8x128xf32>
    %353 = math.exp %352 : vector<8x128xf32>
    %cst_99 = arith.constant 1.000000e+00 : f32
    %354 = vector.broadcast %cst_99 : f32 to vector<8x128xf32>
    %355 = arith.addf %354, %353 : vector<8x128xf32>
    %356 = arith.divf %354, %355 : vector<8x128xf32>
    %357 = vector.extract_strided_slice %344 {offsets = [0, 256], sizes = [8, 128], strides = [1, 1]} : vector<8x512xf32> to vector<8x128xf32>
    %358 = math.tanh %357 : vector<8x128xf32>
    %359 = vector.extract_strided_slice %344 {offsets = [0, 384], sizes = [8, 128], strides = [1, 1]} : vector<8x512xf32> to vector<8x128xf32>
    %360 = arith.negf %359 : vector<8x128xf32>
    %361 = math.exp %360 : vector<8x128xf32>
    %cst_100 = arith.constant 1.000000e+00 : f32
    %362 = vector.broadcast %cst_100 : f32 to vector<8x128xf32>
    %363 = arith.addf %362, %361 : vector<8x128xf32>
    %364 = arith.divf %362, %363 : vector<8x128xf32>
    %365 = arith.mulf %356, %333 : vector<8x128xf32>
    %366 = arith.mulf %350, %358 : vector<8x128xf32>
    %367 = arith.addf %365, %366 : vector<8x128xf32>
    %368 = math.tanh %367 : vector<8x128xf32>
    %369 = arith.mulf %364, %368 : vector<8x128xf32>
    %370 = vector.extract_strided_slice %369 {offsets = [0, 0], sizes = [8, 64], strides = [1, 1]} : vector<8x128xf32> to vector<8x64xf32>
    %c8_101 = arith.constant 8 : index
    %c0_102 = arith.constant 0 : index
    %371 = vector.load %arg15[%c8_101, %c0_102] : memref<64x128xf32, #tpu.memory_space<vmem>>, vector<8x64xf32>
    tpu.vector_store %arg15[%c8_101, %c0_102], %370 {strides = array<i32>} : memref<64x128xf32, #tpu.memory_space<vmem>>, vector<8x64xf32>,
    %372 = vector.extract_strided_slice %369 {offsets = [0, 64], sizes = [8, 64], strides = [1, 1]} : vector<8x128xf32> to vector<8x64xf32>
    %c48_103 = arith.constant 48 : index
    %c64_104 = arith.constant 64 : index
    %373 = vector.load %arg15[%c48_103, %c64_104] : memref<64x128xf32, #tpu.memory_space<vmem>>, vector<8x64xf32>
    tpu.vector_store %arg15[%c48_103, %c64_104], %372 {strides = array<i32>} : memref<64x128xf32, #tpu.memory_space<vmem>>, vector<8x64xf32>,
    %374 = vector.extract_strided_slice %300 {offsets = [16, 0], sizes = [8, 512], strides = [1, 1]} : vector<64x512xf32> to vector<8x512xf32>
    %375 = vector.extract_strided_slice %302 {offsets = [40, 0], sizes = [8, 512], strides = [1, 1]} : vector<64x512xf32> to vector<8x512xf32>
    %376 = arith.addf %374, %375 : vector<8x512xf32>
    %cst_105 = arith.constant dense<0.000000e+00> : vector<8x512xf32>
    %377 = tpu.matmul %369, %303, %cst_105 {dimension_numbers = #tpu.dot_dimension_numbers<[1], [0], [0], [1], [0, 0, 1, 1], [], []>} : vector<8x128xf32>, vector<128x512xf32>, vector<8x512xf32> -> vector<8x512xf32>
    %378 = arith.addf %376, %377 : vector<8x512xf32>
    %379 = vector.extract_strided_slice %378 {offsets = [0, 0], sizes = [8, 128], strides = [1, 1]} : vector<8x512xf32> to vector<8x128xf32>
    %380 = arith.negf %379 : vector<8x128xf32>
    %381 = math.exp %380 : vector<8x128xf32>
    %cst_106 = arith.constant 1.000000e+00 : f32
    %382 = vector.broadcast %cst_106 : f32 to vector<8x128xf32>
    %383 = arith.addf %382, %381 : vector<8x128xf32>
    %384 = arith.divf %382, %383 : vector<8x128xf32>
    %385 = vector.extract_strided_slice %378 {offsets = [0, 128], sizes = [8, 128], strides = [1, 1]} : vector<8x512xf32> to vector<8x128xf32>
    %386 = arith.negf %385 : vector<8x128xf32>
    %387 = math.exp %386 : vector<8x128xf32>
    %cst_107 = arith.constant 1.000000e+00 : f32
    %388 = vector.broadcast %cst_107 : f32 to vector<8x128xf32>
    %389 = arith.addf %388, %387 : vector<8x128xf32>
    %390 = arith.divf %388, %389 : vector<8x128xf32>
    %391 = vector.extract_strided_slice %378 {offsets = [0, 256], sizes = [8, 128], strides = [1, 1]} : vector<8x512xf32> to vector<8x128xf32>
    %392 = math.tanh %391 : vector<8x128xf32>
    %393 = vector.extract_strided_slice %378 {offsets = [0, 384], sizes = [8, 128], strides = [1, 1]} : vector<8x512xf32> to vector<8x128xf32>
    %394 = arith.negf %393 : vector<8x128xf32>
    %395 = math.exp %394 : vector<8x128xf32>
    %cst_108 = arith.constant 1.000000e+00 : f32
    %396 = vector.broadcast %cst_108 : f32 to vector<8x128xf32>
    %397 = arith.addf %396, %395 : vector<8x128xf32>
    %398 = arith.divf %396, %397 : vector<8x128xf32>
    %399 = arith.mulf %390, %367 : vector<8x128xf32>
    %400 = arith.mulf %384, %392 : vector<8x128xf32>
    %401 = arith.addf %399, %400 : vector<8x128xf32>
    %402 = math.tanh %401 : vector<8x128xf32>
    %403 = arith.mulf %398, %402 : vector<8x128xf32>
    %404 = vector.extract_strided_slice %403 {offsets = [0, 0], sizes = [8, 64], strides = [1, 1]} : vector<8x128xf32> to vector<8x64xf32>
    %c16_109 = arith.constant 16 : index
    %c0_110 = arith.constant 0 : index
    %405 = vector.load %arg15[%c16_109, %c0_110] : memref<64x128xf32, #tpu.memory_space<vmem>>, vector<8x64xf32>
    tpu.vector_store %arg15[%c16_109, %c0_110], %404 {strides = array<i32>} : memref<64x128xf32, #tpu.memory_space<vmem>>, vector<8x64xf32>,
    %406 = vector.extract_strided_slice %403 {offsets = [0, 64], sizes = [8, 64], strides = [1, 1]} : vector<8x128xf32> to vector<8x64xf32>
    %c40_111 = arith.constant 40 : index
    %c64_112 = arith.constant 64 : index
    %407 = vector.load %arg15[%c40_111, %c64_112] : memref<64x128xf32, #tpu.memory_space<vmem>>, vector<8x64xf32>
    tpu.vector_store %arg15[%c40_111, %c64_112], %406 {strides = array<i32>} : memref<64x128xf32, #tpu.memory_space<vmem>>, vector<8x64xf32>,
    %408 = vector.extract_strided_slice %300 {offsets = [24, 0], sizes = [8, 512], strides = [1, 1]} : vector<64x512xf32> to vector<8x512xf32>
    %409 = vector.extract_strided_slice %302 {offsets = [32, 0], sizes = [8, 512], strides = [1, 1]} : vector<64x512xf32> to vector<8x512xf32>
    %410 = arith.addf %408, %409 : vector<8x512xf32>
    %cst_113 = arith.constant dense<0.000000e+00> : vector<8x512xf32>
    %411 = tpu.matmul %403, %303, %cst_113 {dimension_numbers = #tpu.dot_dimension_numbers<[1], [0], [0], [1], [0, 0, 1, 1], [], []>} : vector<8x128xf32>, vector<128x512xf32>, vector<8x512xf32> -> vector<8x512xf32>
    %412 = arith.addf %410, %411 : vector<8x512xf32>
    %413 = vector.extract_strided_slice %412 {offsets = [0, 0], sizes = [8, 128], strides = [1, 1]} : vector<8x512xf32> to vector<8x128xf32>
    %414 = arith.negf %413 : vector<8x128xf32>
    %415 = math.exp %414 : vector<8x128xf32>
    %cst_114 = arith.constant 1.000000e+00 : f32
    %416 = vector.broadcast %cst_114 : f32 to vector<8x128xf32>
    %417 = arith.addf %416, %415 : vector<8x128xf32>
    %418 = arith.divf %416, %417 : vector<8x128xf32>
    %419 = vector.extract_strided_slice %412 {offsets = [0, 128], sizes = [8, 128], strides = [1, 1]} : vector<8x512xf32> to vector<8x128xf32>
    %420 = arith.negf %419 : vector<8x128xf32>
    %421 = math.exp %420 : vector<8x128xf32>
    %cst_115 = arith.constant 1.000000e+00 : f32
    %422 = vector.broadcast %cst_115 : f32 to vector<8x128xf32>
    %423 = arith.addf %422, %421 : vector<8x128xf32>
    %424 = arith.divf %422, %423 : vector<8x128xf32>
    %425 = vector.extract_strided_slice %412 {offsets = [0, 256], sizes = [8, 128], strides = [1, 1]} : vector<8x512xf32> to vector<8x128xf32>
    %426 = math.tanh %425 : vector<8x128xf32>
    %427 = vector.extract_strided_slice %412 {offsets = [0, 384], sizes = [8, 128], strides = [1, 1]} : vector<8x512xf32> to vector<8x128xf32>
    %428 = arith.negf %427 : vector<8x128xf32>
    %429 = math.exp %428 : vector<8x128xf32>
    %cst_116 = arith.constant 1.000000e+00 : f32
    %430 = vector.broadcast %cst_116 : f32 to vector<8x128xf32>
    %431 = arith.addf %430, %429 : vector<8x128xf32>
    %432 = arith.divf %430, %431 : vector<8x128xf32>
    %433 = arith.mulf %424, %401 : vector<8x128xf32>
    %434 = arith.mulf %418, %426 : vector<8x128xf32>
    %435 = arith.addf %433, %434 : vector<8x128xf32>
    %436 = math.tanh %435 : vector<8x128xf32>
    %437 = arith.mulf %432, %436 : vector<8x128xf32>
    %438 = vector.extract_strided_slice %437 {offsets = [0, 0], sizes = [8, 64], strides = [1, 1]} : vector<8x128xf32> to vector<8x64xf32>
    %c24_117 = arith.constant 24 : index
    %c0_118 = arith.constant 0 : index
    %439 = vector.load %arg15[%c24_117, %c0_118] : memref<64x128xf32, #tpu.memory_space<vmem>>, vector<8x64xf32>
    tpu.vector_store %arg15[%c24_117, %c0_118], %438 {strides = array<i32>} : memref<64x128xf32, #tpu.memory_space<vmem>>, vector<8x64xf32>,
    %440 = vector.extract_strided_slice %437 {offsets = [0, 64], sizes = [8, 64], strides = [1, 1]} : vector<8x128xf32> to vector<8x64xf32>
    %c32_119 = arith.constant 32 : index
    %c64_120 = arith.constant 64 : index
    %441 = vector.load %arg15[%c32_119, %c64_120] : memref<64x128xf32, #tpu.memory_space<vmem>>, vector<8x64xf32>
    tpu.vector_store %arg15[%c32_119, %c64_120], %440 {strides = array<i32>} : memref<64x128xf32, #tpu.memory_space<vmem>>, vector<8x64xf32>,
    %442 = vector.extract_strided_slice %300 {offsets = [32, 0], sizes = [8, 512], strides = [1, 1]} : vector<64x512xf32> to vector<8x512xf32>
    %443 = vector.extract_strided_slice %302 {offsets = [24, 0], sizes = [8, 512], strides = [1, 1]} : vector<64x512xf32> to vector<8x512xf32>
    %444 = arith.addf %442, %443 : vector<8x512xf32>
    %cst_121 = arith.constant dense<0.000000e+00> : vector<8x512xf32>
    %445 = tpu.matmul %437, %303, %cst_121 {dimension_numbers = #tpu.dot_dimension_numbers<[1], [0], [0], [1], [0, 0, 1, 1], [], []>} : vector<8x128xf32>, vector<128x512xf32>, vector<8x512xf32> -> vector<8x512xf32>
    %446 = arith.addf %444, %445 : vector<8x512xf32>
    %447 = vector.extract_strided_slice %446 {offsets = [0, 0], sizes = [8, 128], strides = [1, 1]} : vector<8x512xf32> to vector<8x128xf32>
    %448 = arith.negf %447 : vector<8x128xf32>
    %449 = math.exp %448 : vector<8x128xf32>
    %cst_122 = arith.constant 1.000000e+00 : f32
    %450 = vector.broadcast %cst_122 : f32 to vector<8x128xf32>
    %451 = arith.addf %450, %449 : vector<8x128xf32>
    %452 = arith.divf %450, %451 : vector<8x128xf32>
    %453 = vector.extract_strided_slice %446 {offsets = [0, 128], sizes = [8, 128], strides = [1, 1]} : vector<8x512xf32> to vector<8x128xf32>
    %454 = arith.negf %453 : vector<8x128xf32>
    %455 = math.exp %454 : vector<8x128xf32>
    %cst_123 = arith.constant 1.000000e+00 : f32
    %456 = vector.broadcast %cst_123 : f32 to vector<8x128xf32>
    %457 = arith.addf %456, %455 : vector<8x128xf32>
    %458 = arith.divf %456, %457 : vector<8x128xf32>
    %459 = vector.extract_strided_slice %446 {offsets = [0, 256], sizes = [8, 128], strides = [1, 1]} : vector<8x512xf32> to vector<8x128xf32>
    %460 = math.tanh %459 : vector<8x128xf32>
    %461 = vector.extract_strided_slice %446 {offsets = [0, 384], sizes = [8, 128], strides = [1, 1]} : vector<8x512xf32> to vector<8x128xf32>
    %462 = arith.negf %461 : vector<8x128xf32>
    %463 = math.exp %462 : vector<8x128xf32>
    %cst_124 = arith.constant 1.000000e+00 : f32
    %464 = vector.broadcast %cst_124 : f32 to vector<8x128xf32>
    %465 = arith.addf %464, %463 : vector<8x128xf32>
    %466 = arith.divf %464, %465 : vector<8x128xf32>
    %467 = arith.mulf %458, %435 : vector<8x128xf32>
    %468 = arith.mulf %452, %460 : vector<8x128xf32>
    %469 = arith.addf %467, %468 : vector<8x128xf32>
    %470 = math.tanh %469 : vector<8x128xf32>
    %471 = arith.mulf %466, %470 : vector<8x128xf32>
    %472 = vector.extract_strided_slice %471 {offsets = [0, 0], sizes = [8, 64], strides = [1, 1]} : vector<8x128xf32> to vector<8x64xf32>
    %c32_125 = arith.constant 32 : index
    %c0_126 = arith.constant 0 : index
    %473 = vector.load %arg15[%c32_125, %c0_126] : memref<64x128xf32, #tpu.memory_space<vmem>>, vector<8x64xf32>
    tpu.vector_store %arg15[%c32_125, %c0_126], %472 {strides = array<i32>} : memref<64x128xf32, #tpu.memory_space<vmem>>, vector<8x64xf32>,
    %474 = vector.extract_strided_slice %471 {offsets = [0, 64], sizes = [8, 64], strides = [1, 1]} : vector<8x128xf32> to vector<8x64xf32>
    %c24_127 = arith.constant 24 : index
    %c64_128 = arith.constant 64 : index
    %475 = vector.load %arg15[%c24_127, %c64_128] : memref<64x128xf32, #tpu.memory_space<vmem>>, vector<8x64xf32>
    tpu.vector_store %arg15[%c24_127, %c64_128], %474 {strides = array<i32>} : memref<64x128xf32, #tpu.memory_space<vmem>>, vector<8x64xf32>,
    %476 = vector.extract_strided_slice %300 {offsets = [40, 0], sizes = [8, 512], strides = [1, 1]} : vector<64x512xf32> to vector<8x512xf32>
    %477 = vector.extract_strided_slice %302 {offsets = [16, 0], sizes = [8, 512], strides = [1, 1]} : vector<64x512xf32> to vector<8x512xf32>
    %478 = arith.addf %476, %477 : vector<8x512xf32>
    %cst_129 = arith.constant dense<0.000000e+00> : vector<8x512xf32>
    %479 = tpu.matmul %471, %303, %cst_129 {dimension_numbers = #tpu.dot_dimension_numbers<[1], [0], [0], [1], [0, 0, 1, 1], [], []>} : vector<8x128xf32>, vector<128x512xf32>, vector<8x512xf32> -> vector<8x512xf32>
    %480 = arith.addf %478, %479 : vector<8x512xf32>
    %481 = vector.extract_strided_slice %480 {offsets = [0, 0], sizes = [8, 128], strides = [1, 1]} : vector<8x512xf32> to vector<8x128xf32>
    %482 = arith.negf %481 : vector<8x128xf32>
    %483 = math.exp %482 : vector<8x128xf32>
    %cst_130 = arith.constant 1.000000e+00 : f32
    %484 = vector.broadcast %cst_130 : f32 to vector<8x128xf32>
    %485 = arith.addf %484, %483 : vector<8x128xf32>
    %486 = arith.divf %484, %485 : vector<8x128xf32>
    %487 = vector.extract_strided_slice %480 {offsets = [0, 128], sizes = [8, 128], strides = [1, 1]} : vector<8x512xf32> to vector<8x128xf32>
    %488 = arith.negf %487 : vector<8x128xf32>
    %489 = math.exp %488 : vector<8x128xf32>
    %cst_131 = arith.constant 1.000000e+00 : f32
    %490 = vector.broadcast %cst_131 : f32 to vector<8x128xf32>
    %491 = arith.addf %490, %489 : vector<8x128xf32>
    %492 = arith.divf %490, %491 : vector<8x128xf32>
    %493 = vector.extract_strided_slice %480 {offsets = [0, 256], sizes = [8, 128], strides = [1, 1]} : vector<8x512xf32> to vector<8x128xf32>
    %494 = math.tanh %493 : vector<8x128xf32>
    %495 = vector.extract_strided_slice %480 {offsets = [0, 384], sizes = [8, 128], strides = [1, 1]} : vector<8x512xf32> to vector<8x128xf32>
    %496 = arith.negf %495 : vector<8x128xf32>
    %497 = math.exp %496 : vector<8x128xf32>
    %cst_132 = arith.constant 1.000000e+00 : f32
    %498 = vector.broadcast %cst_132 : f32 to vector<8x128xf32>
    %499 = arith.addf %498, %497 : vector<8x128xf32>
    %500 = arith.divf %498, %499 : vector<8x128xf32>
    %501 = arith.mulf %492, %469 : vector<8x128xf32>
    %502 = arith.mulf %486, %494 : vector<8x128xf32>
    %503 = arith.addf %501, %502 : vector<8x128xf32>
    %504 = math.tanh %503 : vector<8x128xf32>
    %505 = arith.mulf %500, %504 : vector<8x128xf32>
    %506 = vector.extract_strided_slice %505 {offsets = [0, 0], sizes = [8, 64], strides = [1, 1]} : vector<8x128xf32> to vector<8x64xf32>
    %c40_133 = arith.constant 40 : index
    %c0_134 = arith.constant 0 : index
    %507 = vector.load %arg15[%c40_133, %c0_134] : memref<64x128xf32, #tpu.memory_space<vmem>>, vector<8x64xf32>
    tpu.vector_store %arg15[%c40_133, %c0_134], %506 {strides = array<i32>} : memref<64x128xf32, #tpu.memory_space<vmem>>, vector<8x64xf32>,
    %508 = vector.extract_strided_slice %505 {offsets = [0, 64], sizes = [8, 64], strides = [1, 1]} : vector<8x128xf32> to vector<8x64xf32>
    %c16_135 = arith.constant 16 : index
    %c64_136 = arith.constant 64 : index
    %509 = vector.load %arg15[%c16_135, %c64_136] : memref<64x128xf32, #tpu.memory_space<vmem>>, vector<8x64xf32>
    tpu.vector_store %arg15[%c16_135, %c64_136], %508 {strides = array<i32>} : memref<64x128xf32, #tpu.memory_space<vmem>>, vector<8x64xf32>,
    %510 = vector.extract_strided_slice %300 {offsets = [48, 0], sizes = [8, 512], strides = [1, 1]} : vector<64x512xf32> to vector<8x512xf32>
    %511 = vector.extract_strided_slice %302 {offsets = [8, 0], sizes = [8, 512], strides = [1, 1]} : vector<64x512xf32> to vector<8x512xf32>
    %512 = arith.addf %510, %511 : vector<8x512xf32>
    %cst_137 = arith.constant dense<0.000000e+00> : vector<8x512xf32>
    %513 = tpu.matmul %505, %303, %cst_137 {dimension_numbers = #tpu.dot_dimension_numbers<[1], [0], [0], [1], [0, 0, 1, 1], [], []>} : vector<8x128xf32>, vector<128x512xf32>, vector<8x512xf32> -> vector<8x512xf32>
    %514 = arith.addf %512, %513 : vector<8x512xf32>
    %515 = vector.extract_strided_slice %514 {offsets = [0, 0], sizes = [8, 128], strides = [1, 1]} : vector<8x512xf32> to vector<8x128xf32>
    %516 = arith.negf %515 : vector<8x128xf32>
    %517 = math.exp %516 : vector<8x128xf32>
    %cst_138 = arith.constant 1.000000e+00 : f32
    %518 = vector.broadcast %cst_138 : f32 to vector<8x128xf32>
    %519 = arith.addf %518, %517 : vector<8x128xf32>
    %520 = arith.divf %518, %519 : vector<8x128xf32>
    %521 = vector.extract_strided_slice %514 {offsets = [0, 128], sizes = [8, 128], strides = [1, 1]} : vector<8x512xf32> to vector<8x128xf32>
    %522 = arith.negf %521 : vector<8x128xf32>
    %523 = math.exp %522 : vector<8x128xf32>
    %cst_139 = arith.constant 1.000000e+00 : f32
    %524 = vector.broadcast %cst_139 : f32 to vector<8x128xf32>
    %525 = arith.addf %524, %523 : vector<8x128xf32>
    %526 = arith.divf %524, %525 : vector<8x128xf32>
    %527 = vector.extract_strided_slice %514 {offsets = [0, 256], sizes = [8, 128], strides = [1, 1]} : vector<8x512xf32> to vector<8x128xf32>
    %528 = math.tanh %527 : vector<8x128xf32>
    %529 = vector.extract_strided_slice %514 {offsets = [0, 384], sizes = [8, 128], strides = [1, 1]} : vector<8x512xf32> to vector<8x128xf32>
    %530 = arith.negf %529 : vector<8x128xf32>
    %531 = math.exp %530 : vector<8x128xf32>
    %cst_140 = arith.constant 1.000000e+00 : f32
    %532 = vector.broadcast %cst_140 : f32 to vector<8x128xf32>
    %533 = arith.addf %532, %531 : vector<8x128xf32>
    %534 = arith.divf %532, %533 : vector<8x128xf32>
    %535 = arith.mulf %526, %503 : vector<8x128xf32>
    %536 = arith.mulf %520, %528 : vector<8x128xf32>
    %537 = arith.addf %535, %536 : vector<8x128xf32>
    %538 = math.tanh %537 : vector<8x128xf32>
    %539 = arith.mulf %534, %538 : vector<8x128xf32>
    %540 = vector.extract_strided_slice %539 {offsets = [0, 0], sizes = [8, 64], strides = [1, 1]} : vector<8x128xf32> to vector<8x64xf32>
    %c48_141 = arith.constant 48 : index
    %c0_142 = arith.constant 0 : index
    %541 = vector.load %arg15[%c48_141, %c0_142] : memref<64x128xf32, #tpu.memory_space<vmem>>, vector<8x64xf32>
    tpu.vector_store %arg15[%c48_141, %c0_142], %540 {strides = array<i32>} : memref<64x128xf32, #tpu.memory_space<vmem>>, vector<8x64xf32>,
    %542 = vector.extract_strided_slice %539 {offsets = [0, 64], sizes = [8, 64], strides = [1, 1]} : vector<8x128xf32> to vector<8x64xf32>
    %c8_143 = arith.constant 8 : index
    %c64_144 = arith.constant 64 : index
    %543 = vector.load %arg15[%c8_143, %c64_144] : memref<64x128xf32, #tpu.memory_space<vmem>>, vector<8x64xf32>
    tpu.vector_store %arg15[%c8_143, %c64_144], %542 {strides = array<i32>} : memref<64x128xf32, #tpu.memory_space<vmem>>, vector<8x64xf32>,
    %544 = vector.extract_strided_slice %300 {offsets = [56, 0], sizes = [8, 512], strides = [1, 1]} : vector<64x512xf32> to vector<8x512xf32>
    %545 = vector.extract_strided_slice %302 {offsets = [0, 0], sizes = [8, 512], strides = [1, 1]} : vector<64x512xf32> to vector<8x512xf32>
    %546 = arith.addf %544, %545 : vector<8x512xf32>
    %cst_145 = arith.constant dense<0.000000e+00> : vector<8x512xf32>
    %547 = tpu.matmul %539, %303, %cst_145 {dimension_numbers = #tpu.dot_dimension_numbers<[1], [0], [0], [1], [0, 0, 1, 1], [], []>} : vector<8x128xf32>, vector<128x512xf32>, vector<8x512xf32> -> vector<8x512xf32>
    %548 = arith.addf %546, %547 : vector<8x512xf32>
    %549 = vector.extract_strided_slice %548 {offsets = [0, 0], sizes = [8, 128], strides = [1, 1]} : vector<8x512xf32> to vector<8x128xf32>
    %550 = arith.negf %549 : vector<8x128xf32>
    %551 = math.exp %550 : vector<8x128xf32>
    %cst_146 = arith.constant 1.000000e+00 : f32
    %552 = vector.broadcast %cst_146 : f32 to vector<8x128xf32>
    %553 = arith.addf %552, %551 : vector<8x128xf32>
    %554 = arith.divf %552, %553 : vector<8x128xf32>
    %555 = vector.extract_strided_slice %548 {offsets = [0, 128], sizes = [8, 128], strides = [1, 1]} : vector<8x512xf32> to vector<8x128xf32>
    %556 = arith.negf %555 : vector<8x128xf32>
    %557 = math.exp %556 : vector<8x128xf32>
    %cst_147 = arith.constant 1.000000e+00 : f32
    %558 = vector.broadcast %cst_147 : f32 to vector<8x128xf32>
    %559 = arith.addf %558, %557 : vector<8x128xf32>
    %560 = arith.divf %558, %559 : vector<8x128xf32>
    %561 = vector.extract_strided_slice %548 {offsets = [0, 256], sizes = [8, 128], strides = [1, 1]} : vector<8x512xf32> to vector<8x128xf32>
    %562 = math.tanh %561 : vector<8x128xf32>
    %563 = vector.extract_strided_slice %548 {offsets = [0, 384], sizes = [8, 128], strides = [1, 1]} : vector<8x512xf32> to vector<8x128xf32>
    %564 = arith.negf %563 : vector<8x128xf32>
    %565 = math.exp %564 : vector<8x128xf32>
    %cst_148 = arith.constant 1.000000e+00 : f32
    %566 = vector.broadcast %cst_148 : f32 to vector<8x128xf32>
    %567 = arith.addf %566, %565 : vector<8x128xf32>
    %568 = arith.divf %566, %567 : vector<8x128xf32>
    %569 = arith.mulf %560, %537 : vector<8x128xf32>
    %570 = arith.mulf %554, %562 : vector<8x128xf32>
    %571 = arith.addf %569, %570 : vector<8x128xf32>
    %572 = math.tanh %571 : vector<8x128xf32>
    %573 = arith.mulf %568, %572 : vector<8x128xf32>
    %574 = vector.extract_strided_slice %573 {offsets = [0, 0], sizes = [8, 64], strides = [1, 1]} : vector<8x128xf32> to vector<8x64xf32>
    %c56_149 = arith.constant 56 : index
    %c0_150 = arith.constant 0 : index
    %575 = vector.load %arg15[%c56_149, %c0_150] : memref<64x128xf32, #tpu.memory_space<vmem>>, vector<8x64xf32>
    tpu.vector_store %arg15[%c56_149, %c0_150], %574 {strides = array<i32>} : memref<64x128xf32, #tpu.memory_space<vmem>>, vector<8x64xf32>,
    %576 = vector.extract_strided_slice %573 {offsets = [0, 64], sizes = [8, 64], strides = [1, 1]} : vector<8x128xf32> to vector<8x64xf32>
    %c0_151 = arith.constant 0 : index
    %c64_152 = arith.constant 64 : index
    %577 = vector.load %arg15[%c0_151, %c64_152] : memref<64x128xf32, #tpu.memory_space<vmem>>, vector<8x64xf32>
    tpu.vector_store %arg15[%c0_151, %c64_152], %576 {strides = array<i32>} : memref<64x128xf32, #tpu.memory_space<vmem>>, vector<8x64xf32>,
    %c0_153 = arith.constant 0 : index
    %c0_154 = arith.constant 0 : index
    %578 = vector.load %arg15[%c0_153, %c0_154] : memref<64x128xf32, #tpu.memory_space<vmem>>, vector<64x128xf32>
    %c0_155 = arith.constant 0 : index
    %c0_156 = arith.constant 0 : index
    %579 = vector.load %arg11[%c0_155, %c0_156] : memref<128x256xf32, #tpu.memory_space<vmem>>, vector<128x256xf32>
    %cst_157 = arith.constant dense<0.000000e+00> : vector<64x256xf32>
    %580 = tpu.matmul %578, %579, %cst_157 {dimension_numbers = #tpu.dot_dimension_numbers<[1], [0], [0], [1], [0, 0, 1, 1], [], []>} : vector<64x128xf32>, vector<128x256xf32>, vector<64x256xf32> -> vector<64x256xf32>
    %c0_158 = arith.constant 0 : index
    %c0_159 = arith.constant 0 : index
    %581 = vector.load %arg12[%c0_158, %c0_159] : memref<1x256xf32, #tpu.memory_space<vmem>>, vector<1x256xf32>
    %582 = vector.broadcast %581 : vector<1x256xf32> to vector<64x256xf32>
    %583 = arith.addf %580, %582 : vector<64x256xf32>
    %c0_160 = arith.constant 0 : index
    %c0_161 = arith.constant 0 : index
    %584 = vector.load %arg13[%c0_160, %c0_161] : memref<64x256xf32, #tpu.memory_space<vmem>>, vector<64x256xf32>
    tpu.vector_store %arg13[%c0_160, %c0_161], %583 {strides = array<i32>} : memref<64x256xf32, #tpu.memory_space<vmem>>, vector<64x256xf32>,
    return
  }
}

</mosaic_0001>

<llo_original>
// kernel: transcriber_rnn_forward.1
$region0: #{transcriber_rnn_forward.1}
  #allocation0 [shape = 'u32[]', space=smem, size = 0x4, offset = 0x4, fixed_abs, tag = 'smem constant byte address 0x4 - core index']
  #allocation1 [shape = 'u32[144,128]{1,0:T(1,128)}', space=vmem, size = 0x12000, scoped, tag = 'internal scratch']
  #allocation2 [shape = 'f32[64,128]{1,0:T(8,128)}', space=vmem, size = 0x8000, scoped, tag = 'scratch operand']
  #allocation3 [shape = 'f32[64,128]{1,0:T(8,128)}', space=vmem, size = 0x8000, scoped, tag = 'scratch operand']
  %s0 = inlined_call_operand.vmem [shape: f32[64,64], index: 0, kind: input, shape index: {}]
  %s1 = inlined_call_operand.hbm [shape: f32[64,128], index: 1, kind: input, shape index: {}]
  %s2 = inlined_call_operand.vmem [shape: f32[64,32], index: 2, kind: input, shape index: {}]
  %s3 = inlined_call_operand.vmem [shape: f32[32,512], index: 3, kind: input, shape index: {}]
  %s4 = inlined_call_operand.hbm [shape: f32[32,512], index: 4, kind: input, shape index: {}]
  %s5 = inlined_call_operand.vmem [shape: f32[128,512], index: 5, kind: input, shape index: {}]
  %s6 = inlined_call_operand.vmem [shape: f32[1,512], index: 6, kind: input, shape index: {}]
  %s7 = inlined_call_operand.vmem [shape: f32[128,512], index: 7, kind: input, shape index: {}]
  %s8 = inlined_call_operand.hbm [shape: f32[128,512], index: 8, kind: input, shape index: {}]
  %s9 = inlined_call_operand.hbm [shape: f32[128,512], index: 9, kind: input, shape index: {}]
  %s10 = inlined_call_operand.vmem [shape: f32[1,512], index: 10, kind: input, shape index: {}]
  %s11 = inlined_call_operand.hbm [shape: f32[128,256], index: 11, kind: input, shape index: {}]
  %s12 = inlined_call_operand.vmem [shape: f32[1,256], index: 12, kind: input, shape index: {}]
  %s13 = inlined_call_operand.vmem [shape: f32[64,256], index: 13, kind: output, shape index: {}]
  %s14 = sld [smem:[#allocation0]]
  $region82: #{transcriber_rnn_forward.1} parent=0
    _
  %s16 = ssub.s32 1, %s14
  %s17 = scalar_select 0, %s16, %s14
  $region1: #{transcriber_rnn_forward.1} parent=0
    #allocation4 [shape = 'u8[32768]{0}', space=vmem, size = 0x8000, scoped, tag = 'input window, operand 1, single buffered']
    #allocation5 [shape = 's32[1]{0}', space=sflag, size = 0x4, scoped, tag = 'scoped memory for transcriber_rnn_forward.1']
    #allocation6 [shape = 'u8[65536]{0}', space=vmem, size = 0x10000, scoped, tag = 'input window, operand 4, single buffered']
    #allocation7 [shape = 's32[1]{0}', space=sflag, size = 0x4, scoped, tag = 'scoped memory for transcriber_rnn_forward.1']
    #allocation8 [shape = 'u8[262144]{0}', space=vmem, size = 0x40000, scoped, tag = 'input window, operand 8, single buffered']
    #allocation9 [shape = 'u8[262144]{0}', space=vmem, size = 0x40000, scoped, tag = 'input window, operand 9, single buffered']
    #allocation10 [shape = 's32[1]{0}', space=sflag, size = 0x4, scoped, tag = 'scoped memory for transcriber_rnn_forward.1']
    #allocation11 [shape = 'u8[131072]{0}', space=vmem, size = 0x20000, scoped, tag = 'input window, operand 11, single buffered']
    %18 = vsyncpa [#allocation5], 0
    %19 = vsyncpa [#allocation7], 0
    %20 = vsyncpa [#allocation10], 0
    // Predicated region
    $region2: #{transcriber_rnn_forward.1} parent=1 // pred_check
      _
    $region3: #{transcriber_rnn_forward.1} parent=1 // pred_check_branch
      %22 = sbr.rel (0) target = $region5
    $region4: #{transcriber_rnn_forward.1} parent=1 // pred_region
      _
    $region5: #{transcriber_rnn_forward.1} parent=1 // pred_fallthru
      _
    // Predicated region
    $region6: #{transcriber_rnn_forward.1} parent=1 // pred_check
      _
    $region7: #{transcriber_rnn_forward.1} parent=1 // pred_check_branch
      %24 = sbr.rel (0) target = $region9
    $region8: #{transcriber_rnn_forward.1} parent=1 // pred_region
      %s26 = ssub.s32 1024, 1024
      %27 = vsyncadd [#allocation5], %s26
      %s28 = sshll.u32 [#allocation4], 4
      %s29 = int_to_ptr.vmem [resolvable:$true] %s28
      %34 = dma.hbm_to_vmem [thread:$0]  %s1, 1024, %s29, [#allocation5], 128, 128, 8
    $region9: #{transcriber_rnn_forward.1} parent=1 // pred_fallthru
      _
    // Predicated region
    $region10: #{transcriber_rnn_forward.1} parent=1 // pred_check
      _
    $region11: #{transcriber_rnn_forward.1} parent=1 // pred_check_branch
      %36 = sbr.rel (0) target = $region13
    $region12: #{transcriber_rnn_forward.1} parent=1 // pred_region
      _
    $region13: #{transcriber_rnn_forward.1} parent=1 // pred_fallthru
      _
    // Predicated region
    $region14: #{transcriber_rnn_forward.1} parent=1 // pred_check
      _
    $region15: #{transcriber_rnn_forward.1} parent=1 // pred_check_branch
      %38 = sbr.rel (0) target = $region17
    $region16: #{transcriber_rnn_forward.1} parent=1 // pred_region
      _
    $region17: #{transcriber_rnn_forward.1} parent=1 // pred_fallthru
      _
    // Predicated region
    $region18: #{transcriber_rnn_forward.1} parent=1 // pred_check
      _
    $region19: #{transcriber_rnn_forward.1} parent=1 // pred_check_branch
      %40 = sbr.rel (0) target = $region21
    $region20: #{transcriber_rnn_forward.1} parent=1 // pred_region
      %s42 = ssub.s32 2048, 2048
      %43 = vsyncadd [#allocation7], %s42
      %s44 = sshll.u32 [#allocation6], 4
      %s45 = int_to_ptr.vmem [resolvable:$true] %s44
      %50 = dma.hbm_to_vmem [thread:$0]  %s4, 2048, %s45, [#allocation7], 512, 512, 32
    $region21: #{transcriber_rnn_forward.1} parent=1 // pred_fallthru
      _
    // Predicated region
    $region22: #{transcriber_rnn_forward.1} parent=1 // pred_check
      _
    $region23: #{transcriber_rnn_forward.1} parent=1 // pred_check_branch
      %52 = sbr.rel (0) target = $region25
    $region24: #{transcriber_rnn_forward.1} parent=1 // pred_region
      _
    $region25: #{transcriber_rnn_forward.1} parent=1 // pred_fallthru
      _
    // Predicated region
    $region26: #{transcriber_rnn_forward.1} parent=1 // pred_check
      _
    $region27: #{transcriber_rnn_forward.1} parent=1 // pred_check_branch
      %54 = sbr.rel (0) target = $region29
    $region28: #{transcriber_rnn_forward.1} parent=1 // pred_region
      _
    $region29: #{transcriber_rnn_forward.1} parent=1 // pred_fallthru
      _
    // Predicated region
    $region30: #{transcriber_rnn_forward.1} parent=1 // pred_check
      _
    $region31: #{transcriber_rnn_forward.1} parent=1 // pred_check_branch
      %56 = sbr.rel (0) target = $region33
    $region32: #{transcriber_rnn_forward.1} parent=1 // pred_region
      _
    $region33: #{transcriber_rnn_forward.1} parent=1 // pred_fallthru
      _
    // Predicated region
    $region34: #{transcriber_rnn_forward.1} parent=1 // pred_check
      _
    $region35: #{transcriber_rnn_forward.1} parent=1 // pred_check_branch
      %58 = sbr.rel (0) target = $region37
    $region36: #{transcriber_rnn_forward.1} parent=1 // pred_region
      %s60 = ssub.s32 8192, 8192
      %61 = vsyncadd [#allocation7], %s60
      %s62 = sshll.u32 [#allocation8], 4
      %s63 = int_to_ptr.vmem [resolvable:$true] %s62
      %68 = dma.hbm_to_vmem [thread:$0]  %s8, 8192, %s63, [#allocation7], 512, 512, 32
    $region37: #{transcriber_rnn_forward.1} parent=1 // pred_fallthru
      _
    // Predicated region
    $region38: #{transcriber_rnn_forward.1} parent=1 // pred_check
      _
    $region39: #{transcriber_rnn_forward.1} parent=1 // pred_check_branch
      %70 = sbr.rel (0) target = $region41
    $region40: #{transcriber_rnn_forward.1} parent=1 // pred_region
      %s72 = ssub.s32 8192, 8192
      %73 = vsyncadd [#allocation10], %s72
      %s74 = sshll.u32 [#allocation9], 4
      %s75 = int_to_ptr.vmem [resolvable:$true] %s74
      %80 = dma.hbm_to_vmem [thread:$0]  %s9, 8192, %s75, [#allocation10], 512, 512, 32
    $region41: #{transcriber_rnn_forward.1} parent=1 // pred_fallthru
      _
    // Predicated region
    $region42: #{transcriber_rnn_forward.1} parent=1 // pred_check
      _
    $region43: #{transcriber_rnn_forward.1} parent=1 // pred_check_branch
      %82 = sbr.rel (0) target = $region45
    $region44: #{transcriber_rnn_forward.1} parent=1 // pred_region
      _
    $region45: #{transcriber_rnn_forward.1} parent=1 // pred_fallthru
      _
    // Predicated region
    $region46: #{transcriber_rnn_forward.1} parent=1 // pred_check
      _
    $region47: #{transcriber_rnn_forward.1} parent=1 // pred_check_branch
      %84 = sbr.rel (0) target = $region49
    $region48: #{transcriber_rnn_forward.1} parent=1 // pred_region
      %s86 = ssub.s32 4096, 4096
      %87 = vsyncadd [#allocation10], %s86
      %s88 = sshll.u32 [#allocation11], 4
      %s89 = int_to_ptr.vmem [resolvable:$true] %s88
      %94 = dma.hbm_to_vmem [thread:$0]  %s11, 4096, %s89, [#allocation10], 256, 256, 16
    $region49: #{transcriber_rnn_forward.1} parent=1 // pred_fallthru
      _
    // Predicated region
    $region50: #{transcriber_rnn_forward.1} parent=1 // pred_check
      _
    $region51: #{transcriber_rnn_forward.1} parent=1 // pred_check_branch
      %96 = sbr.rel (0) target = $region53
    $region52: #{transcriber_rnn_forward.1} parent=1 // pred_region
      _
    $region53: #{transcriber_rnn_forward.1} parent=1 // pred_fallthru
      _
    // Predicated region
    $region54: #{transcriber_rnn_forward.1} parent=1 // pred_check
      _
    $region55: #{transcriber_rnn_forward.1} parent=1 // pred_check_branch
      %98 = sbr.rel (0) target = $region57
    $region56: #{transcriber_rnn_forward.1} parent=1 // pred_region
      %99 = dma.done [#allocation5], 1024
    $region57: #{transcriber_rnn_forward.1} parent=1 // pred_fallthru
      _
    // Predicated region
    $region58: #{transcriber_rnn_forward.1} parent=1 // pred_check
      _
    $region59: #{transcriber_rnn_forward.1} parent=1 // pred_check_branch
      %101 = sbr.rel (0) target = $region61
    $region60: #{transcriber_rnn_forward.1} parent=1 // pred_region
      %102 = dma.done [#allocation7], 2048
    $region61: #{transcriber_rnn_forward.1} parent=1 // pred_fallthru
      _
    // Predicated region
    $region62: #{transcriber_rnn_forward.1} parent=1 // pred_check
      _
    $region63: #{transcriber_rnn_forward.1} parent=1 // pred_check_branch
      %104 = sbr.rel (0) target = $region65
    $region64: #{transcriber_rnn_forward.1} parent=1 // pred_region
      %105 = dma.done [#allocation7], 8192
    $region65: #{transcriber_rnn_forward.1} parent=1 // pred_fallthru
      _
    // Predicated region
    $region66: #{transcriber_rnn_forward.1} parent=1 // pred_check
      _
    $region67: #{transcriber_rnn_forward.1} parent=1 // pred_check_branch
      %107 = sbr.rel (0) target = $region69
    $region68: #{transcriber_rnn_forward.1} parent=1 // pred_region
      %108 = dma.done [#allocation10], 8192
    $region69: #{transcriber_rnn_forward.1} parent=1 // pred_fallthru
      _
    // Predicated region
    $region70: #{transcriber_rnn_forward.1} parent=1 // pred_check
      _
    $region71: #{transcriber_rnn_forward.1} parent=1 // pred_check_branch
      %110 = sbr.rel (0) target = $region73
    $region72: #{transcriber_rnn_forward.1} parent=1 // pred_region
      %111 = dma.done [#allocation10], 4096
    $region73: #{transcriber_rnn_forward.1} parent=1 // pred_fallthru
      _
    %v112 = vld [vmem:[%s0] sm:$0xff]
    %v113 = vld [vmem:[%s0 + $0x8] sm:$0xff]
    %v114 = vld [vmem:[%s0 + $0x10] sm:$0xff]
    %v115 = vld [vmem:[%s0 + $0x18] sm:$0xff]
    %v116 = vld [vmem:[%s0 + $0x20] sm:$0xff]
    %v117 = vld [vmem:[%s0 + $0x28] sm:$0xff]
    %v118 = vld [vmem:[%s0 + $0x30] sm:$0xff]
    %v119 = vld [vmem:[%s0 + $0x38] sm:$0xff]
    %v120 = vld [vmem:[#allocation4] sm:$0xff]
    %v121 = vld [vmem:[#allocation4 + $0x8] sm:$0xff]
    %v122 = vld [vmem:[#allocation4 + $0x10] sm:$0xff]
    %v123 = vld [vmem:[#allocation4 + $0x18] sm:$0xff]
    %v124 = vld [vmem:[#allocation4 + $0x20] sm:$0xff]
    %v125 = vld [vmem:[#allocation4 + $0x28] sm:$0xff]
    %v126 = vld [vmem:[#allocation4 + $0x30] sm:$0xff]
    %v127 = vld [vmem:[#allocation4 + $0x38] sm:$0xff]
    %vm128 = vcmask 523264
    %v130 = vsel %vm128, %v112, 0
    %v133 = vsel %vm128, %v113, 0
    %v136 = vsel %vm128, %v114, 0
    %v139 = vsel %vm128, %v115, 0
    %v142 = vsel %vm128, %v116, 0
    %v145 = vsel %vm128, %v117, 0
    %v148 = vsel %vm128, %v118, 0
    %v151 = vsel %vm128, %v119, 0
    %153 = vmatprep.subr.mxu0 0.0
    %154 = vmatpush1.msra.mxu0 %v120
    %155 = vmatprep.subr.mxu0 0.0
    %156 = vmatpush1.msra.mxu0 %v121
    %157 = vmatprep.subr.mxu0 0.0
    %158 = vmatpush1.msra.mxu0 %v122
    %159 = vmatprep.subr.mxu0 0.0
    %160 = vmatpush1.msra.mxu0 %v123
    %161 = vmatprep.subr.mxu0 0.0
    %162 = vmatpush1.msra.mxu0 %v124
    %163 = vmatprep.subr.mxu0 0.0
    %164 = vmatpush1.msra.mxu0 %v125
    %165 = vmatprep.subr.mxu0 0.0
    %166 = vmatpush1.msra.mxu0 %v126
    %167 = vmatprep.subr.mxu0 0.0
    %168 = vmatpush1.msra.mxu0 %v127
    %169 = vmatprep.subr.mxu0 0.0
    %170 = vmatpush1.msra.mxu0 0.0
    %171 = vmatprep.subr.mxu0 0.0
    %172 = vmatpush1.msra.mxu0 0.0
    %173 = vmatprep.subr.mxu0 0.0
    %174 = vmatpush1.msra.mxu0 0.0
    %175 = vmatprep.subr.mxu0 0.0
    %176 = vmatpush1.msra.mxu0 0.0
    %177 = vmatprep.subr.mxu0 0.0
    %178 = vmatpush1.msra.mxu0 0.0
    %179 = vmatprep.subr.mxu0 0.0
    %180 = vmatpush1.msra.mxu0 0.0
    %181 = vmatprep.subr.mxu0 0.0
    %182 = vmatpush1.msra.mxu0 0.0
    %183 = vmatprep.subr.mxu0 0.0
    %184 = vmatpush1.msra.mxu0 0.0
    %185 = vmatprep.subr.mxu0 0.0
    %186 = vmatpush1.msra.mxu0 0.0
    %187 = vmatprep.subr.mxu0 0.0
    %188 = vmatpush1.msra.mxu0 0.0
    %189 = vmatprep.subr.mxu0 0.0
    %190 = vmatpush1.msra.mxu0 0.0
    %191 = vmatprep.subr.mxu0 0.0
    %192 = vmatpush1.msra.mxu0 0.0
    %193 = vmatprep.subr.mxu0 0.0
    %194 = vmatpush1.msra.mxu0 0.0
    %195 = vmatprep.subr.mxu0 0.0
    %196 = vmatpush1.msra.mxu0 0.0
    %197 = vmatprep.subr.mxu0 0.0
    %198 = vmatpush1.msra.mxu0 0.0
    %199 = vmatprep.subr.mxu0 0.0
    %200 = vmatpush1.msra.mxu0 0.0
    %201 = vmatprep.subr.mxu0 0.0
    %202 = vmatpush1.msra.mxu0 0.0
    %203 = vmatprep.subr.mxu0 0.0
    %204 = vmatpush1.msra.mxu0 0.0
    %205 = vmatprep.subr.mxu0 0.0
    %206 = vmatpush1.msra.mxu0 0.0
    %207 = vmatprep.subr.mxu0 0.0
    %208 = vmatpush1.msra.mxu0 0.0
    %209 = vmatprep.subr.mxu0 0.0
    %210 = vmatpush1.msra.mxu0 0.0
    %211 = vmatprep.subr.mxu0 0.0
    %212 = vmatpush1.msra.mxu0 0.0
    %213 = vmatprep.subr.mxu0 0.0
    %214 = vmatpush1.msra.mxu0 0.0
    %215 = vmatprep.subr.mxu0 0.0
    %216 = vmatpush1.msra.mxu0 0.0
    %217 = vmatprep.mubr.f32.mxu0 0.0
    %218 = vmatmul.mubr.f32.gmra.mrb[0].mxu0 %v130
    %v219 = vpop.f32.mrb[0].mxu0
    %v220 = vadd.f32 0.0, %v219
    %v221 = vpop.f32.mrb[0].mxu0
    %222 = vmatprep.mubr.f32.mxu0 0.0
    %223 = vmatmul.mubr.f32.gmra.mrb[0].mxu0 %v133
    %v224 = vpop.f32.mrb[0].mxu0
    %v225 = vadd.f32 0.0, %v224
    %v226 = vpop.f32.mrb[0].mxu0
    %227 = vmatprep.mubr.f32.mxu0 0.0
    %228 = vmatmul.mubr.f32.gmra.mrb[0].mxu0 %v136
    %v229 = vpop.f32.mrb[0].mxu0
    %v230 = vadd.f32 0.0, %v229
    %v231 = vpop.f32.mrb[0].mxu0
    %232 = vmatprep.mubr.f32.mxu0 0.0
    %233 = vmatmul.mubr.f32.gmra.mrb[0].mxu0 %v139
    %v234 = vpop.f32.mrb[0].mxu0
    %v235 = vadd.f32 0.0, %v234
    %v236 = vpop.f32.mrb[0].mxu0
    %237 = vmatprep.mubr.f32.mxu0 0.0
    %238 = vmatmul.mubr.f32.gmra.mrb[0].mxu0 %v142
    %v239 = vpop.f32.mrb[0].mxu0
    %v240 = vadd.f32 0.0, %v239
    %v241 = vpop.f32.mrb[0].mxu0
    %242 = vmatprep.mubr.f32.mxu0 0.0
    %243 = vmatmul.mubr.f32.gmra.mrb[0].mxu0 %v145
    %v244 = vpop.f32.mrb[0].mxu0
    %v245 = vadd.f32 0.0, %v244
    %v246 = vpop.f32.mrb[0].mxu0
    %247 = vmatprep.mubr.f32.mxu0 0.0
    %248 = vmatmul.mubr.f32.gmra.mrb[0].mxu0 %v148
    %v249 = vpop.f32.mrb[0].mxu0
    %v250 = vadd.f32 0.0, %v249
    %v251 = vpop.f32.mrb[0].mxu0
    %252 = vmatprep.mubr.f32.mxu0 0.0
    %253 = vmatmul.mubr.f32.gmra.mrb[0].mxu0 %v151
    %v254 = vpop.f32.mrb[0].mxu0
    %v255 = vadd.f32 0.0, %v254
    %v256 = vpop.f32.mrb[0].mxu0
    %257 = vdwg.mxu0
    %v258 = vmul.f32 %v220, %v220
    %v259 = vmul.f32 %v225, %v225
    %v260 = vmul.f32 %v230, %v230
    %v261 = vmul.f32 %v235, %v235
    %v262 = vmul.f32 %v240, %v240
    %v263 = vmul.f32 %v245, %v245
    %v264 = vmul.f32 %v250, %v250
    %v265 = vmul.f32 %v255, %v255
    %274 = vrot.lane.b32.xlu0 %v258, 64
    %v275 = vpop.permute.xlu0 %274
    %276 = vrot.lane.b32.xlu0 %v259, 64
    %v277 = vpop.permute.xlu0 %276
    %278 = vrot.lane.b32.xlu0 %v260, 64
    %v279 = vpop.permute.xlu0 %278
    %280 = vrot.lane.b32.xlu0 %v261, 64
    %v281 = vpop.permute.xlu0 %280
    %282 = vrot.lane.b32.xlu0 %v262, 64
    %v283 = vpop.permute.xlu0 %282
    %284 = vrot.lane.b32.xlu0 %v263, 64
    %v285 = vpop.permute.xlu0 %284
    %286 = vrot.lane.b32.xlu0 %v264, 64
    %v287 = vpop.permute.xlu0 %286
    %288 = vrot.lane.b32.xlu0 %v265, 64
    %v289 = vpop.permute.xlu0 %288
    %v298 = vadd.f32 %v258, %v275
    %v299 = vadd.f32 %v259, %v277
    %v300 = vadd.f32 %v260, %v279
    %v301 = vadd.f32 %v261, %v281
    %v302 = vadd.f32 %v262, %v283
    %v303 = vadd.f32 %v263, %v285
    %v304 = vadd.f32 %v264, %v287
    %v305 = vadd.f32 %v265, %v289
    %v306 = vld [vmem:[%s2] sm:$0xff]
    %v307 = vld [vmem:[%s2 + $0x8] sm:$0xff]
    %v308 = vld [vmem:[%s2 + $0x10] sm:$0xff]
    %v309 = vld [vmem:[%s2 + $0x18] sm:$0xff]
    %v310 = vld [vmem:[%s2 + $0x20] sm:$0xff]
    %v311 = vld [vmem:[%s2 + $0x28] sm:$0xff]
    %v312 = vld [vmem:[%s2 + $0x30] sm:$0xff]
    %v313 = vld [vmem:[%s2 + $0x38] sm:$0xff]
    %v315 = vsel %vm128, %v298, 0
    %v318 = vsel %vm128, %v299, 0
    %v321 = vsel %vm128, %v300, 0
    %v324 = vsel %vm128, %v301, 0
    %v327 = vsel %vm128, %v302, 0
    %v330 = vsel %vm128, %v303, 0
    %v333 = vsel %vm128, %v304, 0
    %v336 = vsel %vm128, %v305, 0
    %338 = vmatprep.subr.mxu0 0.0
    %339 = vmatpush1.msra.mxu0 %v306
    %340 = vmatprep.subr.mxu0 0.0
    %341 = vmatpush1.msra.mxu0 %v307
    %342 = vmatprep.subr.mxu0 0.0
    %343 = vmatpush1.msra.mxu0 %v308
    %344 = vmatprep.subr.mxu0 0.0
    %345 = vmatpush1.msra.mxu0 %v309
    %346 = vmatprep.subr.mxu0 0.0
    %347 = vmatpush1.msra.mxu0 %v310
    %348 = vmatprep.subr.mxu0 0.0
    %349 = vmatpush1.msra.mxu0 %v311
    %350 = vmatprep.subr.mxu0 0.0
    %351 = vmatpush1.msra.mxu0 %v312
    %352 = vmatprep.subr.mxu0 0.0
    %353 = vmatpush1.msra.mxu0 %v313
    %354 = vmatprep.subr.mxu0 0.0
    %355 = vmatpush1.msra.mxu0 0.0
    %356 = vmatprep.subr.mxu0 0.0
    %357 = vmatpush1.msra.mxu0 0.0
    %358 = vmatprep.subr.mxu0 0.0
    %359 = vmatpush1.msra.mxu0 0.0
    %360 = vmatprep.subr.mxu0 0.0
    %361 = vmatpush1.msra.mxu0 0.0
    %362 = vmatprep.subr.mxu0 0.0
    %363 = vmatpush1.msra.mxu0 0.0
    %364 = vmatprep.subr.mxu0 0.0
    %365 = vmatpush1.msra.mxu0 0.0
    %366 = vmatprep.subr.mxu0 0.0
    %367 = vmatpush1.msra.mxu0 0.0
    %368 = vmatprep.subr.mxu0 0.0
    %369 = vmatpush1.msra.mxu0 0.0
    %370 = vmatprep.subr.mxu0 0.0
    %371 = vmatpush1.msra.mxu0 0.0
    %372 = vmatprep.subr.mxu0 0.0
    %373 = vmatpush1.msra.mxu0 0.0
    %374 = vmatprep.subr.mxu0 0.0
    %375 = vmatpush1.msra.mxu0 0.0
    %376 = vmatprep.subr.mxu0 0.0
    %377 = vmatpush1.msra.mxu0 0.0
    %378 = vmatprep.subr.mxu0 0.0
    %379 = vmatpush1.msra.mxu0 0.0
    %380 = vmatprep.subr.mxu0 0.0
    %381 = vmatpush1.msra.mxu0 0.0
    %382 = vmatprep.subr.mxu0 0.0
    %383 = vmatpush1.msra.mxu0 0.0
    %384 = vmatprep.subr.mxu0 0.0
    %385 = vmatpush1.msra.mxu0 0.0
    %386 = vmatprep.subr.mxu0 0.0
    %387 = vmatpush1.msra.mxu0 0.0
    %388 = vmatprep.subr.mxu0 0.0
    %389 = vmatpush1.msra.mxu0 0.0
    %390 = vmatprep.subr.mxu0 0.0
    %391 = vmatpush1.msra.mxu0 0.0
    %392 = vmatprep.subr.mxu0 0.0
    %393 = vmatpush1.msra.mxu0 0.0
    %394 = vmatprep.subr.mxu0 0.0
    %395 = vmatpush1.msra.mxu0 0.0
    %396 = vmatprep.subr.mxu0 0.0
    %397 = vmatpush1.msra.mxu0 0.0
    %398 = vmatprep.subr.mxu0 0.0
    %399 = vmatpush1.msra.mxu0 0.0
    %400 = vmatprep.subr.mxu0 0.0
    %401 = vmatpush1.msra.mxu0 0.0
    %402 = vmatprep.mubr.f32.mxu0 0.0
    %403 = vmatmul.mubr.f32.gmra.mrb[0].mxu0 %v315
    %v404 = vpop.f32.mrb[0].mxu0
    %v405 = vadd.f32 0.0, %v404
    %v406 = vpop.f32.mrb[0].mxu0
    %407 = vmatprep.mubr.f32.mxu0 0.0
    %408 = vmatmul.mubr.f32.gmra.mrb[0].mxu0 %v318
    %v409 = vpop.f32.mrb[0].mxu0
    %v410 = vadd.f32 0.0, %v409
    %v411 = vpop.f32.mrb[0].mxu0
    %412 = vmatprep.mubr.f32.mxu0 0.0
    %413 = vmatmul.mubr.f32.gmra.mrb[0].mxu0 %v321
    %v414 = vpop.f32.mrb[0].mxu0
    %v415 = vadd.f32 0.0, %v414
    %v416 = vpop.f32.mrb[0].mxu0
    %417 = vmatprep.mubr.f32.mxu0 0.0
    %418 = vmatmul.mubr.f32.gmra.mrb[0].mxu0 %v324
    %v419 = vpop.f32.mrb[0].mxu0
    %v420 = vadd.f32 0.0, %v419
    %v421 = vpop.f32.mrb[0].mxu0
    %422 = vmatprep.mubr.f32.mxu0 0.0
    %423 = vmatmul.mubr.f32.gmra.mrb[0].mxu0 %v327
    %v424 = vpop.f32.mrb[0].mxu0
    %v425 = vadd.f32 0.0, %v424
    %v426 = vpop.f32.mrb[0].mxu0
    %427 = vmatprep.mubr.f32.mxu0 0.0
    %428 = vmatmul.mubr.f32.gmra.mrb[0].mxu0 %v330
    %v429 = vpop.f32.mrb[0].mxu0
    %v430 = vadd.f32 0.0, %v429
    %v431 = vpop.f32.mrb[0].mxu0
    %432 = vmatprep.mubr.f32.mxu0 0.0
    %433 = vmatmul.mubr.f32.gmra.mrb[0].mxu0 %v333
    %v434 = vpop.f32.mrb[0].mxu0
    %v435 = vadd.f32 0.0, %v434
    %v436 = vpop.f32.mrb[0].mxu0
    %437 = vmatprep.mubr.f32.mxu0 0.0
    %438 = vmatmul.mubr.f32.gmra.mrb[0].mxu0 %v336
    %v439 = vpop.f32.mrb[0].mxu0
    %v440 = vadd.f32 0.0, %v439
    %v441 = vpop.f32.mrb[0].mxu0
    %442 = vdwg.mxu0
    %v443 = vmax.f32 %v405, 1e-09
    %v444 = vmax.f32 %v410, 1e-09
    %v445 = vmax.f32 %v415, 1e-09
    %v446 = vmax.f32 %v420, 1e-09
    %v447 = vmax.f32 %v425, 1e-09
    %v448 = vmax.f32 %v430, 1e-09
    %v449 = vmax.f32 %v435, 1e-09
    %v450 = vmax.f32 %v440, 1e-09
    %v451 = vlog2.pop %v443
    %v452 = vmul.f32 %v451, 0.6931472
    %v453 = vlog2.pop %v444
    %v454 = vmul.f32 %v453, 0.6931472
    %v455 = vlog2.pop %v445
    %v456 = vmul.f32 %v455, 0.6931472
    %v457 = vlog2.pop %v446
    %v458 = vmul.f32 %v457, 0.6931472
    %v459 = vlog2.pop %v447
    %v460 = vmul.f32 %v459, 0.6931472
    %v461 = vlog2.pop %v448
    %v462 = vmul.f32 %v461, 0.6931472
    %v463 = vlog2.pop %v449
    %v464 = vmul.f32 %v463, 0.6931472
    %v465 = vlog2.pop %v450
    %v466 = vmul.f32 %v465, 0.6931472
    %v467 = vld [vmem:[%s3] sm:$0xff]
    %v468 = vld [vmem:[%s3 + $0x8] sm:$0xff]
    %v469 = vld [vmem:[%s3 + $0x10] sm:$0xff]
    %v470 = vld [vmem:[%s3 + $0x18] sm:$0xff]
    %v471 = vld [vmem:[%s3 + $0x20] sm:$0xff]
    %v472 = vld [vmem:[%s3 + $0x28] sm:$0xff]
    %v473 = vld [vmem:[%s3 + $0x30] sm:$0xff]
    %v474 = vld [vmem:[%s3 + $0x38] sm:$0xff]
    %v475 = vld [vmem:[%s3 + $0x40] sm:$0xff]
    %v476 = vld [vmem:[%s3 + $0x48] sm:$0xff]
    %v477 = vld [vmem:[%s3 + $0x50] sm:$0xff]
    %v478 = vld [vmem:[%s3 + $0x58] sm:$0xff]
    %v479 = vld [vmem:[%s3 + $0x60] sm:$0xff]
    %v480 = vld [vmem:[%s3 + $0x68] sm:$0xff]
    %v481 = vld [vmem:[%s3 + $0x70] sm:$0xff]
    %v482 = vld [vmem:[%s3 + $0x78] sm:$0xff]
    %v483 = vld [vmem:[%s6] sm:$0xf]
    %v485 = vlaneseq
    %v486 = vshrl.u32 %v485, 7
    %v487 = vsub.s32 0, %v486
    %v488 = vrot.slane %v483, %v487
    %v489 = vlaneseq
    %v490 = vshrl.u32 %v489, 7
    %v491 = vsub.s32 1, %v490
    %v492 = vrot.slane %v483, %v491
    %v493 = vlaneseq
    %v494 = vshrl.u32 %v493, 7
    %v495 = vsub.s32 2, %v494
    %v496 = vrot.slane %v483, %v495
    %v497 = vlaneseq
    %v498 = vshrl.u32 %v497, 7
    %v499 = vsub.s32 3, %v498
    %v500 = vrot.slane %v483, %v499
    %vm505 = vcmask 261120
    %v507 = vsel %vm505, %v452, 0
    %v510 = vsel %vm505, %v454, 0
    %v513 = vsel %vm505, %v456, 0
    %v516 = vsel %vm505, %v458, 0
    %v519 = vsel %vm505, %v460, 0
    %v522 = vsel %vm505, %v462, 0
    %v525 = vsel %vm505, %v464, 0
    %v528 = vsel %vm505, %v466, 0
    %530 = vmatprep.subr.mxu0 %v468
    %531 = vmatpush1.msra.mxu0 %v467
    %532 = vmatprep.subr.mxu0 %v472
    %533 = vmatpush1.msra.mxu0 %v471
    %534 = vmatprep.subr.mxu0 %v476
    %535 = vmatpush1.msra.mxu0 %v475
    %536 = vmatprep.subr.mxu0 %v480
    %537 = vmatpush1.msra.mxu0 %v479
    %538 = vmatprep.subr.mxu0 0.0
    %539 = vmatpush1.msra.mxu0 0.0
    %540 = vmatprep.subr.mxu0 0.0
    %541 = vmatpush1.msra.mxu0 0.0
    %542 = vmatprep.subr.mxu0 0.0
    %543 = vmatpush1.msra.mxu0 0.0
    %544 = vmatprep.subr.mxu0 0.0
    %545 = vmatpush1.msra.mxu0 0.0
    %546 = vmatprep.subr.mxu0 0.0
    %547 = vmatpush1.msra.mxu0 0.0
    %548 = vmatprep.subr.mxu0 0.0
    %549 = vmatpush1.msra.mxu0 0.0
    %550 = vmatprep.subr.mxu0 0.0
    %551 = vmatpush1.msra.mxu0 0.0
    %552 = vmatprep.subr.mxu0 0.0
    %553 = vmatpush1.msra.mxu0 0.0
    %554 = vmatprep.subr.mxu0 0.0
    %555 = vmatpush1.msra.mxu0 0.0
    %556 = vmatprep.subr.mxu0 0.0
    %557 = vmatpush1.msra.mxu0 0.0
    %558 = vmatprep.subr.mxu0 0.0
    %559 = vmatpush1.msra.mxu0 0.0
    %560 = vmatprep.subr.mxu0 0.0
    %561 = vmatpush1.msra.mxu0 0.0
    %562 = vmatprep.subr.mxu0 0.0
    %563 = vmatpush1.msra.mxu0 0.0
    %564 = vmatprep.subr.mxu0 0.0
    %565 = vmatpush1.msra.mxu0 0.0
    %566 = vmatprep.subr.mxu0 0.0
    %567 = vmatpush1.msra.mxu0 0.0
    %568 = vmatprep.subr.mxu0 0.0
    %569 = vmatpush1.msra.mxu0 0.0
    %570 = vmatprep.subr.mxu0 0.0
    %571 = vmatpush1.msra.mxu0 0.0
    %572 = vmatprep.subr.mxu0 0.0
    %573 = vmatpush1.msra.mxu0 0.0
    %574 = vmatprep.subr.mxu0 0.0
    %575 = vmatpush1.msra.mxu0 0.0
    %576 = vmatprep.subr.mxu0 0.0
    %577 = vmatpush1.msra.mxu0 0.0
    %578 = vmatprep.subr.mxu0 0.0
    %579 = vmatpush1.msra.mxu0 0.0
    %580 = vmatprep.subr.mxu0 0.0
    %581 = vmatpush1.msra.mxu0 0.0
    %582 = vmatprep.subr.mxu0 0.0
    %583 = vmatpush1.msra.mxu0 0.0
    %584 = vmatprep.subr.mxu0 0.0
    %585 = vmatpush1.msra.mxu0 0.0
    %586 = vmatprep.subr.mxu0 0.0
    %587 = vmatpush1.msra.mxu0 0.0
    %588 = vmatprep.subr.mxu0 0.0
    %589 = vmatpush1.msra.mxu0 0.0
    %590 = vmatprep.subr.mxu0 0.0
    %591 = vmatpush1.msra.mxu0 0.0
    %592 = vmatprep.subr.mxu0 0.0
    %593 = vmatpush1.msra.mxu0 0.0
    %594 = vmatprep.mubr.f32.mxu0 0.0
    %595 = vmatmul.mubr.f32.gmra.mrb[0].mxu0 %v507
    %v596 = vpop.f32.mrb[0].mxu0
    %v597 = vadd.f32 %v488, %v596
    %v598 = vpop.f32.mrb[0].mxu0
    %v599 = vadd.f32 %v492, %v598
    %600 = vmatprep.mubr.f32.mxu0 0.0
    %601 = vmatmul.mubr.f32.gmra.mrb[0].mxu0 %v510
    %v602 = vpop.f32.mrb[0].mxu0
    %v603 = vadd.f32 %v488, %v602
    %v604 = vpop.f32.mrb[0].mxu0
    %v605 = vadd.f32 %v492, %v604
    %606 = vmatprep.mubr.f32.mxu0 0.0
    %607 = vmatmul.mubr.f32.gmra.mrb[0].mxu0 %v513
    %v608 = vpop.f32.mrb[0].mxu0
    %v609 = vadd.f32 %v488, %v608
    %v610 = vpop.f32.mrb[0].mxu0
    %v611 = vadd.f32 %v492, %v610
    %612 = vmatprep.mubr.f32.mxu0 0.0
    %613 = vmatmul.mubr.f32.gmra.mrb[0].mxu0 %v516
    %v614 = vpop.f32.mrb[0].mxu0
    %v615 = vadd.f32 %v488, %v614
    %v616 = vpop.f32.mrb[0].mxu0
    %v617 = vadd.f32 %v492, %v616
    %618 = vmatprep.mubr.f32.mxu0 0.0
    %619 = vmatmul.mubr.f32.gmra.mrb[0].mxu0 %v519
    %v620 = vpop.f32.mrb[0].mxu0
    %v621 = vadd.f32 %v488, %v620
    %v622 = vpop.f32.mrb[0].mxu0
    %v623 = vadd.f32 %v492, %v622
    %624 = vmatprep.mubr.f32.mxu0 0.0
    %625 = vmatmul.mubr.f32.gmra.mrb[0].mxu0 %v522
    %v626 = vpop.f32.mrb[0].mxu0
    %v627 = vadd.f32 %v488, %v626
    %v628 = vpop.f32.mrb[0].mxu0
    %v629 = vadd.f32 %v492, %v628
    %630 = vmatprep.mubr.f32.mxu0 0.0
    %631 = vmatmul.mubr.f32.gmra.mrb[0].mxu0 %v525
    %v632 = vpop.f32.mrb[0].mxu0
    %v633 = vadd.f32 %v488, %v632
    %v634 = vpop.f32.mrb[0].mxu0
    %v635 = vadd.f32 %v492, %v634
    %636 = vmatprep.mubr.f32.mxu0 0.0
    %637 = vmatmul.mubr.f32.gmra.mrb[0].mxu0 %v528
    %v638 = vpop.f32.mrb[0].mxu0
    %v639 = vadd.f32 %v488, %v638
    %v640 = vpop.f32.mrb[0].mxu0
    %v641 = vadd.f32 %v492, %v640
    %642 = vdwg.mxu0
    %643 = vmatprep.subr.mxu0 %v470
    %644 = vmatpush1.msra.mxu0 %v469
    %645 = vmatprep.subr.mxu0 %v474
    %646 = vmatpush1.msra.mxu0 %v473
    %647 = vmatprep.subr.mxu0 %v478
    %648 = vmatpush1.msra.mxu0 %v477
    %649 = vmatprep.subr.mxu0 %v482
    %650 = vmatpush1.msra.mxu0 %v481
    %651 = vmatprep.subr.mxu0 0.0
    %652 = vmatpush1.msra.mxu0 0.0
    %653 = vmatprep.subr.mxu0 0.0
    %654 = vmatpush1.msra.mxu0 0.0
    %655 = vmatprep.subr.mxu0 0.0
    %656 = vmatpush1.msra.mxu0 0.0
    %657 = vmatprep.subr.mxu0 0.0
    %658 = vmatpush1.msra.mxu0 0.0
    %659 = vmatprep.subr.mxu0 0.0
    %660 = vmatpush1.msra.mxu0 0.0
    %661 = vmatprep.subr.mxu0 0.0
    %662 = vmatpush1.msra.mxu0 0.0
    %663 = vmatprep.subr.mxu0 0.0
    %664 = vmatpush1.msra.mxu0 0.0
    %665 = vmatprep.subr.mxu0 0.0
    %666 = vmatpush1.msra.mxu0 0.0
    %667 = vmatprep.subr.mxu0 0.0
    %668 = vmatpush1.msra.mxu0 0.0
    %669 = vmatprep.subr.mxu0 0.0
    %670 = vmatpush1.msra.mxu0 0.0
    %671 = vmatprep.subr.mxu0 0.0
    %672 = vmatpush1.msra.mxu0 0.0
    %673 = vmatprep.subr.mxu0 0.0
    %674 = vmatpush1.msra.mxu0 0.0
    %675 = vmatprep.subr.mxu0 0.0
    %676 = vmatpush1.msra.mxu0 0.0
    %677 = vmatprep.subr.mxu0 0.0
    %678 = vmatpush1.msra.mxu0 0.0
    %679 = vmatprep.subr.mxu0 0.0
    %680 = vmatpush1.msra.mxu0 0.0
    %681 = vmatprep.subr.mxu0 0.0
    %682 = vmatpush1.msra.mxu0 0.0
    %683 = vmatprep.subr.mxu0 0.0
    %684 = vmatpush1.msra.mxu0 0.0
    %685 = vmatprep.subr.mxu0 0.0
    %686 = vmatpush1.msra.mxu0 0.0
    %687 = vmatprep.subr.mxu0 0.0
    %688 = vmatpush1.msra.mxu0 0.0
    %689 = vmatprep.subr.mxu0 0.0
    %690 = vmatpush1.msra.mxu0 0.0
    %691 = vmatprep.subr.mxu0 0.0
    %692 = vmatpush1.msra.mxu0 0.0
    %693 = vmatprep.subr.mxu0 0.0
    %694 = vmatpush1.msra.mxu0 0.0
    %695 = vmatprep.subr.mxu0 0.0
    %696 = vmatpush1.msra.mxu0 0.0
    %697 = vmatprep.subr.mxu0 0.0
    %698 = vmatpush1.msra.mxu0 0.0
    %699 = vmatprep.subr.mxu0 0.0
    %700 = vmatpush1.msra.mxu0 0.0
    %701 = vmatprep.subr.mxu0 0.0
    %702 = vmatpush1.msra.mxu0 0.0
    %703 = vmatprep.subr.mxu0 0.0
    %704 = vmatpush1.msra.mxu0 0.0
    %705 = vmatprep.subr.mxu0 0.0
    %706 = vmatpush1.msra.mxu0 0.0
    %707 = vmatprep.mubr.f32.mxu0 0.0
    %708 = vmatmul.mubr.f32.gmra.mrb[0].mxu0 %v507
    %v709 = vpop.f32.mrb[0].mxu0
    %v710 = vadd.f32 %v496, %v709
    %v711 = vpop.f32.mrb[0].mxu0
    %v712 = vadd.f32 %v500, %v711
    %713 = vmatprep.mubr.f32.mxu0 0.0
    %714 = vmatmul.mubr.f32.gmra.mrb[0].mxu0 %v510
    %v715 = vpop.f32.mrb[0].mxu0
    %v716 = vadd.f32 %v496, %v715
    %v717 = vpop.f32.mrb[0].mxu0
    %v718 = vadd.f32 %v500, %v717
    %719 = vmatprep.mubr.f32.mxu0 0.0
    %720 = vmatmul.mubr.f32.gmra.mrb[0].mxu0 %v513
    %v721 = vpop.f32.mrb[0].mxu0
    %v722 = vadd.f32 %v496, %v721
    %v723 = vpop.f32.mrb[0].mxu0
    %v724 = vadd.f32 %v500, %v723
    %725 = vmatprep.mubr.f32.mxu0 0.0
    %726 = vmatmul.mubr.f32.gmra.mrb[0].mxu0 %v516
    %v727 = vpop.f32.mrb[0].mxu0
    %v728 = vadd.f32 %v496, %v727
    %v729 = vpop.f32.mrb[0].mxu0
    %v730 = vadd.f32 %v500, %v729
    %731 = vmatprep.mubr.f32.mxu0 0.0
    %732 = vmatmul.mubr.f32.gmra.mrb[0].mxu0 %v519
    %v733 = vpop.f32.mrb[0].mxu0
    %v734 = vadd.f32 %v496, %v733
    %v735 = vpop.f32.mrb[0].mxu0
    %v736 = vadd.f32 %v500, %v735
    %737 = vmatprep.mubr.f32.mxu0 0.0
    %738 = vmatmul.mubr.f32.gmra.mrb[0].mxu0 %v522
    %v739 = vpop.f32.mrb[0].mxu0
    %v740 = vadd.f32 %v496, %v739
    %v741 = vpop.f32.mrb[0].mxu0
    %v742 = vadd.f32 %v500, %v741
    %743 = vmatprep.mubr.f32.mxu0 0.0
    %744 = vmatmul.mubr.f32.gmra.mrb[0].mxu0 %v525
    %v745 = vpop.f32.mrb[0].mxu0
    %v746 = vadd.f32 %v496, %v745
    %v747 = vpop.f32.mrb[0].mxu0
    %v748 = vadd.f32 %v500, %v747
    %749 = vmatprep.mubr.f32.mxu0 0.0
    %750 = vmatmul.mubr.f32.gmra.mrb[0].mxu0 %v528
    %v751 = vpop.f32.mrb[0].mxu0
    %v752 = vadd.f32 %v496, %v751
    %v753 = vpop.f32.mrb[0].mxu0
    %v754 = vadd.f32 %v500, %v753
    %755 = vdwg.mxu0
    %v756 = vld [vmem:[#allocation6] sm:$0xff]
    %v757 = vld [vmem:[#allocation6 + $0x8] sm:$0xff]
    %v758 = vld [vmem:[#allocation6 + $0x10] sm:$0xff]
    %v759 = vld [vmem:[#allocation6 + $0x18] sm:$0xff]
    %v760 = vld [vmem:[#allocation6 + $0x20] sm:$0xff]
    %v761 = vld [vmem:[#allocation6 + $0x28] sm:$0xff]
    %v762 = vld [vmem:[#allocation6 + $0x30] sm:$0xff]
    %v763 = vld [vmem:[#allocation6 + $0x38] sm:$0xff]
    %v764 = vld [vmem:[#allocation6 + $0x40] sm:$0xff]
    %v765 = vld [vmem:[#allocation6 + $0x48] sm:$0xff]
    %v766 = vld [vmem:[#allocation6 + $0x50] sm:$0xff]
    %v767 = vld [vmem:[#allocation6 + $0x58] sm:$0xff]
    %v768 = vld [vmem:[#allocation6 + $0x60] sm:$0xff]
    %v769 = vld [vmem:[#allocation6 + $0x68] sm:$0xff]
    %v770 = vld [vmem:[#allocation6 + $0x70] sm:$0xff]
    %v771 = vld [vmem:[#allocation6 + $0x78] sm:$0xff]
    %772 = vmatprep.subr.mxu0 %v757
    %773 = vmatpush1.msra.mxu0 %v756
    %774 = vmatprep.subr.mxu0 %v761
    %775 = vmatpush1.msra.mxu0 %v760
    %776 = vmatprep.subr.mxu0 %v765
    %777 = vmatpush1.msra.mxu0 %v764
    %778 = vmatprep.subr.mxu0 %v769
    %779 = vmatpush1.msra.mxu0 %v768
    %780 = vmatprep.subr.mxu0 0.0
    %781 = vmatpush1.msra.mxu0 0.0
    %782 = vmatprep.subr.mxu0 0.0
    %783 = vmatpush1.msra.mxu0 0.0
    %784 = vmatprep.subr.mxu0 0.0
    %785 = vmatpush1.msra.mxu0 0.0
    %786 = vmatprep.subr.mxu0 0.0
    %787 = vmatpush1.msra.mxu0 0.0
    %788 = vmatprep.subr.mxu0 0.0
    %789 = vmatpush1.msra.mxu0 0.0
    %790 = vmatprep.subr.mxu0 0.0
    %791 = vmatpush1.msra.mxu0 0.0
    %792 = vmatprep.subr.mxu0 0.0
    %793 = vmatpush1.msra.mxu0 0.0
    %794 = vmatprep.subr.mxu0 0.0
    %795 = vmatpush1.msra.mxu0 0.0
    %796 = vmatprep.subr.mxu0 0.0
    %797 = vmatpush1.msra.mxu0 0.0
    %798 = vmatprep.subr.mxu0 0.0
    %799 = vmatpush1.msra.mxu0 0.0
    %800 = vmatprep.subr.mxu0 0.0
    %801 = vmatpush1.msra.mxu0 0.0
    %802 = vmatprep.subr.mxu0 0.0
    %803 = vmatpush1.msra.mxu0 0.0
    %804 = vmatprep.subr.mxu0 0.0
    %805 = vmatpush1.msra.mxu0 0.0
    %806 = vmatprep.subr.mxu0 0.0
    %807 = vmatpush1.msra.mxu0 0.0
    %808 = vmatprep.subr.mxu0 0.0
    %809 = vmatpush1.msra.mxu0 0.0
    %810 = vmatprep.subr.mxu0 0.0
    %811 = vmatpush1.msra.mxu0 0.0
    %812 = vmatprep.subr.mxu0 0.0
    %813 = vmatpush1.msra.mxu0 0.0
    %814 = vmatprep.subr.mxu0 0.0
    %815 = vmatpush1.msra.mxu0 0.0
    %816 = vmatprep.subr.mxu0 0.0
    %817 = vmatpush1.msra.mxu0 0.0
    %818 = vmatprep.subr.mxu0 0.0
    %819 = vmatpush1.msra.mxu0 0.0
    %820 = vmatprep.subr.mxu0 0.0
    %821 = vmatpush1.msra.mxu0 0.0
    %822 = vmatprep.subr.mxu0 0.0
    %823 = vmatpush1.msra.mxu0 0.0
    %824 = vmatprep.subr.mxu0 0.0
    %825 = vmatpush1.msra.mxu0 0.0
    %826 = vmatprep.subr.mxu0 0.0
    %827 = vmatpush1.msra.mxu0 0.0
    %828 = vmatprep.subr.mxu0 0.0
    %829 = vmatpush1.msra.mxu0 0.0
    %830 = vmatprep.subr.mxu0 0.0
    %831 = vmatpush1.msra.mxu0 0.0
    %832 = vmatprep.subr.mxu0 0.0
    %833 = vmatpush1.msra.mxu0 0.0
    %834 = vmatprep.subr.mxu0 0.0
    %835 = vmatpush1.msra.mxu0 0.0
    %836 = vmatprep.mubr.f32.mxu0 0.0
    %837 = vmatmul.mubr.f32.gmra.mrb[0].mxu0 %v507
    %v838 = vpop.f32.mrb[0].mxu0
    %v839 = vadd.f32 0.0, %v838
    %v840 = vpop.f32.mrb[0].mxu0
    %v841 = vadd.f32 0.0, %v840
    %842 = vmatprep.mubr.f32.mxu0 0.0
    %843 = vmatmul.mubr.f32.gmra.mrb[0].mxu0 %v510
    %v844 = vpop.f32.mrb[0].mxu0
    %v845 = vadd.f32 0.0, %v844
    %v846 = vpop.f32.mrb[0].mxu0
    %v847 = vadd.f32 0.0, %v846
    %848 = vmatprep.mubr.f32.mxu0 0.0
    %849 = vmatmul.mubr.f32.gmra.mrb[0].mxu0 %v513
    %v850 = vpop.f32.mrb[0].mxu0
    %v851 = vadd.f32 0.0, %v850
    %v852 = vpop.f32.mrb[0].mxu0
    %v853 = vadd.f32 0.0, %v852
    %854 = vmatprep.mubr.f32.mxu0 0.0
    %855 = vmatmul.mubr.f32.gmra.mrb[0].mxu0 %v516
    %v856 = vpop.f32.mrb[0].mxu0
    %v857 = vadd.f32 0.0, %v856
    %v858 = vpop.f32.mrb[0].mxu0
    %v859 = vadd.f32 0.0, %v858
    %860 = vmatprep.mubr.f32.mxu0 0.0
    %861 = vmatmul.mubr.f32.gmra.mrb[0].mxu0 %v519
    %v862 = vpop.f32.mrb[0].mxu0
    %v863 = vadd.f32 0.0, %v862
    %v864 = vpop.f32.mrb[0].mxu0
    %v865 = vadd.f32 0.0, %v864
    %866 = vmatprep.mubr.f32.mxu0 0.0
    %867 = vmatmul.mubr.f32.gmra.mrb[0].mxu0 %v522
    %v868 = vpop.f32.mrb[0].mxu0
    %v869 = vadd.f32 0.0, %v868
    %v870 = vpop.f32.mrb[0].mxu0
    %v871 = vadd.f32 0.0, %v870
    %872 = vmatprep.mubr.f32.mxu0 0.0
    %873 = vmatmul.mubr.f32.gmra.mrb[0].mxu0 %v525
    %v874 = vpop.f32.mrb[0].mxu0
    %v875 = vadd.f32 0.0, %v874
    %v876 = vpop.f32.mrb[0].mxu0
    %v877 = vadd.f32 0.0, %v876
    %878 = vmatprep.mubr.f32.mxu0 0.0
    %879 = vmatmul.mubr.f32.gmra.mrb[0].mxu0 %v528
    %v880 = vpop.f32.mrb[0].mxu0
    %v881 = vadd.f32 0.0, %v880
    %v882 = vpop.f32.mrb[0].mxu0
    %v883 = vadd.f32 0.0, %v882
    %884 = vdwg.mxu0
    %885 = vmatprep.subr.mxu0 %v759
    %886 = vmatpush1.msra.mxu0 %v758
    %887 = vmatprep.subr.mxu0 %v763
    %888 = vmatpush1.msra.mxu0 %v762
    %889 = vmatprep.subr.mxu0 %v767
    %890 = vmatpush1.msra.mxu0 %v766
    %891 = vmatprep.subr.mxu0 %v771
    %892 = vmatpush1.msra.mxu0 %v770
    %893 = vmatprep.subr.mxu0 0.0
    %894 = vmatpush1.msra.mxu0 0.0
    %895 = vmatprep.subr.mxu0 0.0
    %896 = vmatpush1.msra.mxu0 0.0
    %897 = vmatprep.subr.mxu0 0.0
    %898 = vmatpush1.msra.mxu0 0.0
    %899 = vmatprep.subr.mxu0 0.0
    %900 = vmatpush1.msra.mxu0 0.0
    %901 = vmatprep.subr.mxu0 0.0
    %902 = vmatpush1.msra.mxu0 0.0
    %903 = vmatprep.subr.mxu0 0.0
    %904 = vmatpush1.msra.mxu0 0.0
    %905 = vmatprep.subr.mxu0 0.0
    %906 = vmatpush1.msra.mxu0 0.0
    %907 = vmatprep.subr.mxu0 0.0
    %908 = vmatpush1.msra.mxu0 0.0
    %909 = vmatprep.subr.mxu0 0.0
    %910 = vmatpush1.msra.mxu0 0.0
    %911 = vmatprep.subr.mxu0 0.0
    %912 = vmatpush1.msra.mxu0 0.0
    %913 = vmatprep.subr.mxu0 0.0
    %914 = vmatpush1.msra.mxu0 0.0
    %915 = vmatprep.subr.mxu0 0.0
    %916 = vmatpush1.msra.mxu0 0.0
    %917 = vmatprep.subr.mxu0 0.0
    %918 = vmatpush1.msra.mxu0 0.0
    %919 = vmatprep.subr.mxu0 0.0
    %920 = vmatpush1.msra.mxu0 0.0
    %921 = vmatprep.subr.mxu0 0.0
    %922 = vmatpush1.msra.mxu0 0.0
    %923 = vmatprep.subr.mxu0 0.0
    %924 = vmatpush1.msra.mxu0 0.0
    %925 = vmatprep.subr.mxu0 0.0
    %926 = vmatpush1.msra.mxu0 0.0
    %927 = vmatprep.subr.mxu0 0.0
    %928 = vmatpush1.msra.mxu0 0.0
    %929 = vmatprep.subr.mxu0 0.0
    %930 = vmatpush1.msra.mxu0 0.0
    %931 = vmatprep.subr.mxu0 0.0
    %932 = vmatpush1.msra.mxu0 0.0
    %933 = vmatprep.subr.mxu0 0.0
    %934 = vmatpush1.msra.mxu0 0.0
    %935 = vmatprep.subr.mxu0 0.0
    %936 = vmatpush1.msra.mxu0 0.0
    %937 = vmatprep.subr.mxu0 0.0
    %938 = vmatpush1.msra.mxu0 0.0
    %939 = vmatprep.subr.mxu0 0.0
    %940 = vmatpush1.msra.mxu0 0.0
    %941 = vmatprep.subr.mxu0 0.0
    %942 = vmatpush1.msra.mxu0 0.0
    %943 = vmatprep.subr.mxu0 0.0
    %944 = vmatpush1.msra.mxu0 0.0
    %945 = vmatprep.subr.mxu0 0.0
    %946 = vmatpush1.msra.mxu0 0.0
    %947 = vmatprep.subr.mxu0 0.0
    %948 = vmatpush1.msra.mxu0 0.0
    %949 = vmatprep.mubr.f32.mxu0 0.0
    %950 = vmatmul.mubr.f32.gmra.mrb[0].mxu0 %v507
    %v951 = vpop.f32.mrb[0].mxu0
    %v952 = vadd.f32 0.0, %v951
    %v953 = vpop.f32.mrb[0].mxu0
    %v954 = vadd.f32 0.0, %v953
    %955 = vmatprep.mubr.f32.mxu0 0.0
    %956 = vmatmul.mubr.f32.gmra.mrb[0].mxu0 %v510
    %v957 = vpop.f32.mrb[0].mxu0
    %v958 = vadd.f32 0.0, %v957
    %v959 = vpop.f32.mrb[0].mxu0
    %v960 = vadd.f32 0.0, %v959
    %961 = vmatprep.mubr.f32.mxu0 0.0
    %962 = vmatmul.mubr.f32.gmra.mrb[0].mxu0 %v513
    %v963 = vpop.f32.mrb[0].mxu0
    %v964 = vadd.f32 0.0, %v963
    %v965 = vpop.f32.mrb[0].mxu0
    %v966 = vadd.f32 0.0, %v965
    %967 = vmatprep.mubr.f32.mxu0 0.0
    %968 = vmatmul.mubr.f32.gmra.mrb[0].mxu0 %v516
    %v969 = vpop.f32.mrb[0].mxu0
    %v970 = vadd.f32 0.0, %v969
    %v971 = vpop.f32.mrb[0].mxu0
    %v972 = vadd.f32 0.0, %v971
    %973 = vmatprep.mubr.f32.mxu0 0.0
    %974 = vmatmul.mubr.f32.gmra.mrb[0].mxu0 %v519
    %v975 = vpop.f32.mrb[0].mxu0
    %v976 = vadd.f32 0.0, %v975
    %v977 = vpop.f32.mrb[0].mxu0
    %v978 = vadd.f32 0.0, %v977
    %979 = vmatprep.mubr.f32.mxu0 0.0
    %980 = vmatmul.mubr.f32.gmra.mrb[0].mxu0 %v522
    %v981 = vpop.f32.mrb[0].mxu0
    %v982 = vadd.f32 0.0, %v981
    %v983 = vpop.f32.mrb[0].mxu0
    %v984 = vadd.f32 0.0, %v983
    %985 = vmatprep.mubr.f32.mxu0 0.0
    %986 = vmatmul.mubr.f32.gmra.mrb[0].mxu0 %v525
    %v987 = vpop.f32.mrb[0].mxu0
    %v988 = vadd.f32 0.0, %v987
    %v989 = vpop.f32.mrb[0].mxu0
    %v990 = vadd.f32 0.0, %v989
    %991 = vmatprep.mubr.f32.mxu0 0.0
    %992 = vmatmul.mubr.f32.gmra.mrb[0].mxu0 %v528
    %v993 = vpop.f32.mrb[0].mxu0
    %v994 = vadd.f32 0.0, %v993
    %v995 = vpop.f32.mrb[0].mxu0
    %v996 = vadd.f32 0.0, %v995
    %997 = vdwg.mxu0
    %v998 = vld [vmem:[%s5] sm:$0xff]
    %v999 = vld [vmem:[%s5 + $0x8] sm:$0xff]
    %v1000 = vld [vmem:[%s5 + $0x10] sm:$0xff]
    %v1001 = vld [vmem:[%s5 + $0x18] sm:$0xff]
    %v1002 = vld [vmem:[%s5 + $0x20] sm:$0xff]
    %v1003 = vld [vmem:[%s5 + $0x28] sm:$0xff]
    %v1004 = vld [vmem:[%s5 + $0x30] sm:$0xff]
    %v1005 = vld [vmem:[%s5 + $0x38] sm:$0xff]
    %v1006 = vld [vmem:[%s5 + $0x40] sm:$0xff]
    %v1007 = vld [vmem:[%s5 + $0x48] sm:$0xff]
    %v1008 = vld [vmem:[%s5 + $0x50] sm:$0xff]
    %v1009 = vld [vmem:[%s5 + $0x58] sm:$0xff]
    %v1010 = vld [vmem:[%s5 + $0x60] sm:$0xff]
    %v1011 = vld [vmem:[%s5 + $0x68] sm:$0xff]
    %v1012 = vld [vmem:[%s5 + $0x70] sm:$0xff]
    %v1013 = vld [vmem:[%s5 + $0x78] sm:$0xff]
    %v1014 = vld [vmem:[%s5 + $0x80] sm:$0xff]
    %v1015 = vld [vmem:[%s5 + $0x88] sm:$0xff]
    %v1016 = vld [vmem:[%s5 + $0x90] sm:$0xff]
    %v1017 = vld [vmem:[%s5 + $0x98] sm:$0xff]
    %v1018 = vld [vmem:[%s5 + $0xa0] sm:$0xff]
    %v1019 = vld [vmem:[%s5 + $0xa8] sm:$0xff]
    %v1020 = vld [vmem:[%s5 + $0xb0] sm:$0xff]
    %v1021 = vld [vmem:[%s5 + $0xb8] sm:$0xff]
    %v1022 = vld [vmem:[%s5 + $0xc0] sm:$0xff]
    %v1023 = vld [vmem:[%s5 + $0xc8] sm:$0xff]
    %v1024 = vld [vmem:[%s5 + $0xd0] sm:$0xff]
    %v1025 = vld [vmem:[%s5 + $0xd8] sm:$0xff]
    %v1026 = vld [vmem:[%s5 + $0xe0] sm:$0xff]
    %v1027 = vld [vmem:[%s5 + $0xe8] sm:$0xff]
    %v1028 = vld [vmem:[%s5 + $0xf0] sm:$0xff]
    %v1029 = vld [vmem:[%s5 + $0xf8] sm:$0xff]
    %v1030 = vld [vmem:[%s5 + $0x100] sm:$0xff]
    %v1031 = vld [vmem:[%s5 + $0x108] sm:$0xff]
    %v1032 = vld [vmem:[%s5 + $0x110] sm:$0xff]
    %v1033 = vld [vmem:[%s5 + $0x118] sm:$0xff]
    %v1034 = vld [vmem:[%s5 + $0x120] sm:$0xff]
    %v1035 = vld [vmem:[%s5 + $0x128] sm:$0xff]
    %v1036 = vld [vmem:[%s5 + $0x130] sm:$0xff]
    %v1037 = vld [vmem:[%s5 + $0x138] sm:$0xff]
    %v1038 = vld [vmem:[%s5 + $0x140] sm:$0xff]
    %v1039 = vld [vmem:[%s5 + $0x148] sm:$0xff]
    %v1040 = vld [vmem:[%s5 + $0x150] sm:$0xff]
    %v1041 = vld [vmem:[%s5 + $0x158] sm:$0xff]
    %v1042 = vld [vmem:[%s5 + $0x160] sm:$0xff]
    %v1043 = vld [vmem:[%s5 + $0x168] sm:$0xff]
    %v1044 = vld [vmem:[%s5 + $0x170] sm:$0xff]
    %v1045 = vld [vmem:[%s5 + $0x178] sm:$0xff]
    %v1046 = vld [vmem:[%s5 + $0x180] sm:$0xff]
    %v1047 = vld [vmem:[%s5 + $0x188] sm:$0xff]
    %v1048 = vld [vmem:[%s5 + $0x190] sm:$0xff]
    %v1049 = vld [vmem:[%s5 + $0x198] sm:$0xff]
    %v1050 = vld [vmem:[%s5 + $0x1a0] sm:$0xff]
    %v1051 = vld [vmem:[%s5 + $0x1a8] sm:$0xff]
    %v1052 = vld [vmem:[%s5 + $0x1b0] sm:$0xff]
    %v1053 = vld [vmem:[%s5 + $0x1b8] sm:$0xff]
    %v1054 = vld [vmem:[%s5 + $0x1c0] sm:$0xff]
    %v1055 = vld [vmem:[%s5 + $0x1c8] sm:$0xff]
    %v1056 = vld [vmem:[%s5 + $0x1d0] sm:$0xff]
    %v1057 = vld [vmem:[%s5 + $0x1d8] sm:$0xff]
    %v1058 = vld [vmem:[%s5 + $0x1e0] sm:$0xff]
    %v1059 = vld [vmem:[%s5 + $0x1e8] sm:$0xff]
    %v1060 = vld [vmem:[%s5 + $0x1f0] sm:$0xff]
    %v1061 = vld [vmem:[%s5 + $0x1f8] sm:$0xff]
    %v1062 = vadd.f32 %v597, %v881
    %v1063 = vadd.f32 %v599, %v883
    %v1064 = vadd.f32 %v710, %v994
    %v1065 = vadd.f32 %v712, %v996
    %1066 = vmatprep.subr.mxu0 %v999
    %1067 = vmatpush1.msra.mxu0 %v998
    %1068 = vmatprep.subr.mxu0 %v1003
    %1069 = vmatpush1.msra.mxu0 %v1002
    %1070 = vmatprep.subr.mxu0 %v1007
    %1071 = vmatpush1.msra.mxu0 %v1006
    %1072 = vmatprep.subr.mxu0 %v1011
    %1073 = vmatpush1.msra.mxu0 %v1010
    %1074 = vmatprep.subr.mxu0 %v1015
    %1075 = vmatpush1.msra.mxu0 %v1014
    %1076 = vmatprep.subr.mxu0 %v1019
    %1077 = vmatpush1.msra.mxu0 %v1018
    %1078 = vmatprep.subr.mxu0 %v1023
    %1079 = vmatpush1.msra.mxu0 %v1022
    %1080 = vmatprep.subr.mxu0 %v1027
    %1081 = vmatpush1.msra.mxu0 %v1026
    %1082 = vmatprep.subr.mxu0 %v1031
    %1083 = vmatpush1.msra.mxu0 %v1030
    %1084 = vmatprep.subr.mxu0 %v1035
    %1085 = vmatpush1.msra.mxu0 %v1034
    %1086 = vmatprep.subr.mxu0 %v1039
    %1087 = vmatpush1.msra.mxu0 %v1038
    %1088 = vmatprep.subr.mxu0 %v1043
    %1089 = vmatpush1.msra.mxu0 %v1042
    %1090 = vmatprep.subr.mxu0 %v1047
    %1091 = vmatpush1.msra.mxu0 %v1046
    %1092 = vmatprep.subr.mxu0 %v1051
    %1093 = vmatpush1.msra.mxu0 %v1050
    %1094 = vmatprep.subr.mxu0 %v1055
    %1095 = vmatpush1.msra.mxu0 %v1054
    %1096 = vmatprep.subr.mxu0 %v1059
    %1097 = vmatpush1.msra.mxu0 %v1058
    %1098 = vmatprep.subr.mxu0 0.0
    %1099 = vmatpush1.msra.mxu0 0.0
    %1100 = vmatprep.subr.mxu0 0.0
    %1101 = vmatpush1.msra.mxu0 0.0
    %1102 = vmatprep.subr.mxu0 0.0
    %1103 = vmatpush1.msra.mxu0 0.0
    %1104 = vmatprep.subr.mxu0 0.0
    %1105 = vmatpush1.msra.mxu0 0.0
    %1106 = vmatprep.subr.mxu0 0.0
    %1107 = vmatpush1.msra.mxu0 0.0
    %1108 = vmatprep.subr.mxu0 0.0
    %1109 = vmatpush1.msra.mxu0 0.0
    %1110 = vmatprep.subr.mxu0 0.0
    %1111 = vmatpush1.msra.mxu0 0.0
    %1112 = vmatprep.subr.mxu0 0.0
    %1113 = vmatpush1.msra.mxu0 0.0
    %1114 = vmatprep.subr.mxu0 0.0
    %1115 = vmatpush1.msra.mxu0 0.0
    %1116 = vmatprep.subr.mxu0 0.0
    %1117 = vmatpush1.msra.mxu0 0.0
    %1118 = vmatprep.subr.mxu0 0.0
    %1119 = vmatpush1.msra.mxu0 0.0
    %1120 = vmatprep.subr.mxu0 0.0
    %1121 = vmatpush1.msra.mxu0 0.0
    %1122 = vmatprep.subr.mxu0 0.0
    %1123 = vmatpush1.msra.mxu0 0.0
    %1124 = vmatprep.subr.mxu0 0.0
    %1125 = vmatpush1.msra.mxu0 0.0
    %1126 = vmatprep.subr.mxu0 0.0
    %1127 = vmatpush1.msra.mxu0 0.0
    %1128 = vmatprep.subr.mxu0 0.0
    %1129 = vmatpush1.msra.mxu0 0.0
    %1130 = vmatprep.mubr.f32.mxu0 0.0
    %1131 = vmatmul.mubr.f32.gmra.mrb[0].mxu0 0.0
    %v1132 = vpop.f32.mrb[0].mxu0
    %v1133 = vadd.f32 0.0, %v1132
    %v1134 = vpop.f32.mrb[0].mxu0
    %v1135 = vadd.f32 0.0, %v1134
    %1136 = vdwg.mxu0
    %1137 = vmatprep.subr.mxu0 %v1001
    %1138 = vmatpush1.msra.mxu0 %v1000
    %1139 = vmatprep.subr.mxu0 %v1005
    %1140 = vmatpush1.msra.mxu0 %v1004
    %1141 = vmatprep.subr.mxu0 %v1009
    %1142 = vmatpush1.msra.mxu0 %v1008
    %1143 = vmatprep.subr.mxu0 %v1013
    %1144 = vmatpush1.msra.mxu0 %v1012
    %1145 = vmatprep.subr.mxu0 %v1017
    %1146 = vmatpush1.msra.mxu0 %v1016
    %1147 = vmatprep.subr.mxu0 %v1021
    %1148 = vmatpush1.msra.mxu0 %v1020
    %1149 = vmatprep.subr.mxu0 %v1025
    %1150 = vmatpush1.msra.mxu0 %v1024
    %1151 = vmatprep.subr.mxu0 %v1029
    %1152 = vmatpush1.msra.mxu0 %v1028
    %1153 = vmatprep.subr.mxu0 %v1033
    %1154 = vmatpush1.msra.mxu0 %v1032
    %1155 = vmatprep.subr.mxu0 %v1037
    %1156 = vmatpush1.msra.mxu0 %v1036
    %1157 = vmatprep.subr.mxu0 %v1041
    %1158 = vmatpush1.msra.mxu0 %v1040
    %1159 = vmatprep.subr.mxu0 %v1045
    %1160 = vmatpush1.msra.mxu0 %v1044
    %1161 = vmatprep.subr.mxu0 %v1049
    %1162 = vmatpush1.msra.mxu0 %v1048
    %1163 = vmatprep.subr.mxu0 %v1053
    %1164 = vmatpush1.msra.mxu0 %v1052
    %1165 = vmatprep.subr.mxu0 %v1057
    %1166 = vmatpush1.msra.mxu0 %v1056
    %1167 = vmatprep.subr.mxu0 %v1061
    %1168 = vmatpush1.msra.mxu0 %v1060
    %1169 = vmatprep.subr.mxu0 0.0
    %1170 = vmatpush1.msra.mxu0 0.0
    %1171 = vmatprep.subr.mxu0 0.0
    %1172 = vmatpush1.msra.mxu0 0.0
    %1173 = vmatprep.subr.mxu0 0.0
    %1174 = vmatpush1.msra.mxu0 0.0
    %1175 = vmatprep.subr.mxu0 0.0
    %1176 = vmatpush1.msra.mxu0 0.0
    %1177 = vmatprep.subr.mxu0 0.0
    %1178 = vmatpush1.msra.mxu0 0.0
    %1179 = vmatprep.subr.mxu0 0.0
    %1180 = vmatpush1.msra.mxu0 0.0
    %1181 = vmatprep.subr.mxu0 0.0
    %1182 = vmatpush1.msra.mxu0 0.0
    %1183 = vmatprep.subr.mxu0 0.0
    %1184 = vmatpush1.msra.mxu0 0.0
    %1185 = vmatprep.subr.mxu0 0.0
    %1186 = vmatpush1.msra.mxu0 0.0
    %1187 = vmatprep.subr.mxu0 0.0
    %1188 = vmatpush1.msra.mxu0 0.0
    %1189 = vmatprep.subr.mxu0 0.0
    %1190 = vmatpush1.msra.mxu0 0.0
    %1191 = vmatprep.subr.mxu0 0.0
    %1192 = vmatpush1.msra.mxu0 0.0
    %1193 = vmatprep.subr.mxu0 0.0
    %1194 = vmatpush1.msra.mxu0 0.0
    %1195 = vmatprep.subr.mxu0 0.0
    %1196 = vmatpush1.msra.mxu0 0.0
    %1197 = vmatprep.subr.mxu0 0.0
    %1198 = vmatpush1.msra.mxu0 0.0
    %1199 = vmatprep.subr.mxu0 0.0
    %1200 = vmatpush1.msra.mxu0 0.0
    %1201 = vmatprep.mubr.f32.mxu0 0.0
    %1202 = vmatmul.mubr.f32.gmra.mrb[0].mxu0 0.0
    %v1203 = vpop.f32.mrb[0].mxu0
    %v1204 = vadd.f32 0.0, %v1203
    %v1205 = vpop.f32.mrb[0].mxu0
    %v1206 = vadd.f32 0.0, %v1205
    %1207 = vdwg.mxu0
    %v1208 = vadd.f32 %v1062, %v1133
    %v1209 = vadd.f32 %v1063, %v1135
    %v1210 = vadd.f32 %v1064, %v1204
    %v1211 = vadd.f32 %v1065, %v1206
    %v1212 = vxor.u32 %v1208, 2147483648
    %v1213 = vmul.f32 %v1212, 1.442695
    %v1214 = vpow.pop %v1213
    %v1215 = vadd.f32 %v1214, 1.0
    %v1216 = vrcp.pop %v1215
    %v1217 = vmul.f32 1.0, %v1216
    %v1218 = vxor.u32 %v1209, 2147483648
    %v1219 = vmul.f32 %v1218, 1.442695
    %v1220 = vpow.pop %v1219
    %v1221 = vadd.f32 %v1220, 1.0
    %v1222 = vrcp.pop %v1221
    %v1223 = vmul.f32 1.0, %v1222
    %v1224 = vtanh.pop %v1210
    %v1225 = vxor.u32 %v1211, 2147483648
    %v1226 = vmul.f32 %v1225, 1.442695
    %v1227 = vpow.pop %v1226
    %v1228 = vadd.f32 %v1227, 1.0
    %v1229 = vrcp.pop %v1228
    %v1230 = vmul.f32 1.0, %v1229
    %v1231 = vmul.f32 %v1223, 0.0
    %v1232 = vmul.f32 %v1217, %v1224
    %v1233 = vadd.f32 %v1231, %v1232
    %v1234 = vtanh.pop %v1233
    %v1235 = vmul.f32 %v1230, %v1234
    %1236 = vst.msk [vmem:[#allocation2] sm:$0xff] %vm128, %v1235
    %vm1237 = vcmask 1048064
    %1238 = vst.msk [vmem:[#allocation2 + $0x38] sm:$0xff] %vm1237, %v1235
    %v1239 = vadd.f32 %v603, %v875
    %v1240 = vadd.f32 %v605, %v877
    %v1241 = vadd.f32 %v716, %v988
    %v1242 = vadd.f32 %v718, %v990
    %1243 = vmatprep.subr.mxu0 %v999
    %1244 = vmatpush1.msra.mxu0 %v998
    %1245 = vmatprep.subr.mxu0 %v1003
    %1246 = vmatpush1.msra.mxu0 %v1002
    %1247 = vmatprep.subr.mxu0 %v1007
    %1248 = vmatpush1.msra.mxu0 %v1006
    %1249 = vmatprep.subr.mxu0 %v1011
    %1250 = vmatpush1.msra.mxu0 %v1010
    %1251 = vmatprep.subr.mxu0 %v1015
    %1252 = vmatpush1.msra.mxu0 %v1014
    %1253 = vmatprep.subr.mxu0 %v1019
    %1254 = vmatpush1.msra.mxu0 %v1018
    %1255 = vmatprep.subr.mxu0 %v1023
    %1256 = vmatpush1.msra.mxu0 %v1022
    %1257 = vmatprep.subr.mxu0 %v1027
    %1258 = vmatpush1.msra.mxu0 %v1026
    %1259 = vmatprep.subr.mxu0 %v1031
    %1260 = vmatpush1.msra.mxu0 %v1030
    %1261 = vmatprep.subr.mxu0 %v1035
    %1262 = vmatpush1.msra.mxu0 %v1034
    %1263 = vmatprep.subr.mxu0 %v1039
    %1264 = vmatpush1.msra.mxu0 %v1038
    %1265 = vmatprep.subr.mxu0 %v1043
    %1266 = vmatpush1.msra.mxu0 %v1042
    %1267 = vmatprep.subr.mxu0 %v1047
    %1268 = vmatpush1.msra.mxu0 %v1046
    %1269 = vmatprep.subr.mxu0 %v1051
    %1270 = vmatpush1.msra.mxu0 %v1050
    %1271 = vmatprep.subr.mxu0 %v1055
    %1272 = vmatpush1.msra.mxu0 %v1054
    %1273 = vmatprep.subr.mxu0 %v1059
    %1274 = vmatpush1.msra.mxu0 %v1058
    %1275 = vmatprep.subr.mxu0 0.0
    %1276 = vmatpush1.msra.mxu0 0.0
    %1277 = vmatprep.subr.mxu0 0.0
    %1278 = vmatpush1.msra.mxu0 0.0
    %1279 = vmatprep.subr.mxu0 0.0
    %1280 = vmatpush1.msra.mxu0 0.0
    %1281 = vmatprep.subr.mxu0 0.0
    %1282 = vmatpush1.msra.mxu0 0.0
    %1283 = vmatprep.subr.mxu0 0.0
    %1284 = vmatpush1.msra.mxu0 0.0
    %1285 = vmatprep.subr.mxu0 0.0
    %1286 = vmatpush1.msra.mxu0 0.0
    %1287 = vmatprep.subr.mxu0 0.0
    %1288 = vmatpush1.msra.mxu0 0.0
    %1289 = vmatprep.subr.mxu0 0.0
    %1290 = vmatpush1.msra.mxu0 0.0
    %1291 = vmatprep.subr.mxu0 0.0
    %1292 = vmatpush1.msra.mxu0 0.0
    %1293 = vmatprep.subr.mxu0 0.0
    %1294 = vmatpush1.msra.mxu0 0.0
    %1295 = vmatprep.subr.mxu0 0.0
    %1296 = vmatpush1.msra.mxu0 0.0
    %1297 = vmatprep.subr.mxu0 0.0
    %1298 = vmatpush1.msra.mxu0 0.0
    %1299 = vmatprep.subr.mxu0 0.0
    %1300 = vmatpush1.msra.mxu0 0.0
    %1301 = vmatprep.subr.mxu0 0.0
    %1302 = vmatpush1.msra.mxu0 0.0
    %1303 = vmatprep.subr.mxu0 0.0
    %1304 = vmatpush1.msra.mxu0 0.0
    %1305 = vmatprep.subr.mxu0 0.0
    %1306 = vmatpush1.msra.mxu0 0.0
    %1307 = vmatprep.mubr.f32.mxu0 0.0
    %1308 = vmatmul.mubr.f32.gmra.mrb[0].mxu0 %v1235
    %v1309 = vpop.f32.mrb[0].mxu0
    %v1310 = vadd.f32 0.0, %v1309
    %v1311 = vpop.f32.mrb[0].mxu0
    %v1312 = vadd.f32 0.0, %v1311
    %1313 = vdwg.mxu0
    %1314 = vmatprep.subr.mxu0 %v1001
    %1315 = vmatpush1.msra.mxu0 %v1000
    %1316 = vmatprep.subr.mxu0 %v1005
    %1317 = vmatpush1.msra.mxu0 %v1004
    %1318 = vmatprep.subr.mxu0 %v1009
    %1319 = vmatpush1.msra.mxu0 %v1008
    %1320 = vmatprep.subr.mxu0 %v1013
    %1321 = vmatpush1.msra.mxu0 %v1012
    %1322 = vmatprep.subr.mxu0 %v1017
    %1323 = vmatpush1.msra.mxu0 %v1016
    %1324 = vmatprep.subr.mxu0 %v1021
    %1325 = vmatpush1.msra.mxu0 %v1020
    %1326 = vmatprep.subr.mxu0 %v1025
    %1327 = vmatpush1.msra.mxu0 %v1024
    %1328 = vmatprep.subr.mxu0 %v1029
    %1329 = vmatpush1.msra.mxu0 %v1028
    %1330 = vmatprep.subr.mxu0 %v1033
    %1331 = vmatpush1.msra.mxu0 %v1032
    %1332 = vmatprep.subr.mxu0 %v1037
    %1333 = vmatpush1.msra.mxu0 %v1036
    %1334 = vmatprep.subr.mxu0 %v1041
    %1335 = vmatpush1.msra.mxu0 %v1040
    %1336 = vmatprep.subr.mxu0 %v1045
    %1337 = vmatpush1.msra.mxu0 %v1044
    %1338 = vmatprep.subr.mxu0 %v1049
    %1339 = vmatpush1.msra.mxu0 %v1048
    %1340 = vmatprep.subr.mxu0 %v1053
    %1341 = vmatpush1.msra.mxu0 %v1052
    %1342 = vmatprep.subr.mxu0 %v1057
    %1343 = vmatpush1.msra.mxu0 %v1056
    %1344 = vmatprep.subr.mxu0 %v1061
    %1345 = vmatpush1.msra.mxu0 %v1060
    %1346 = vmatprep.subr.mxu0 0.0
    %1347 = vmatpush1.msra.mxu0 0.0
    %1348 = vmatprep.subr.mxu0 0.0
    %1349 = vmatpush1.msra.mxu0 0.0
    %1350 = vmatprep.subr.mxu0 0.0
    %1351 = vmatpush1.msra.mxu0 0.0
    %1352 = vmatprep.subr.mxu0 0.0
    %1353 = vmatpush1.msra.mxu0 0.0
    %1354 = vmatprep.subr.mxu0 0.0
    %1355 = vmatpush1.msra.mxu0 0.0
    %1356 = vmatprep.subr.mxu0 0.0
    %1357 = vmatpush1.msra.mxu0 0.0
    %1358 = vmatprep.subr.mxu0 0.0
    %1359 = vmatpush1.msra.mxu0 0.0
    %1360 = vmatprep.subr.mxu0 0.0
    %1361 = vmatpush1.msra.mxu0 0.0
    %1362 = vmatprep.subr.mxu0 0.0
    %1363 = vmatpush1.msra.mxu0 0.0
    %1364 = vmatprep.subr.mxu0 0.0
    %1365 = vmatpush1.msra.mxu0 0.0
    %1366 = vmatprep.subr.mxu0 0.0
    %1367 = vmatpush1.msra.mxu0 0.0
    %1368 = vmatprep.subr.mxu0 0.0
    %1369 = vmatpush1.msra.mxu0 0.0
    %1370 = vmatprep.subr.mxu0 0.0
    %1371 = vmatpush1.msra.mxu0 0.0
    %1372 = vmatprep.subr.mxu0 0.0
    %1373 = vmatpush1.msra.mxu0 0.0
    %1374 = vmatprep.subr.mxu0 0.0
    %1375 = vmatpush1.msra.mxu0 0.0
    %1376 = vmatprep.subr.mxu0 0.0
    %1377 = vmatpush1.msra.mxu0 0.0
    %1378 = vmatprep.mubr.f32.mxu0 0.0
    %1379 = vmatmul.mubr.f32.gmra.mrb[0].mxu0 %v1235
    %v1380 = vpop.f32.mrb[0].mxu0
    %v1381 = vadd.f32 0.0, %v1380
    %v1382 = vpop.f32.mrb[0].mxu0
    %v1383 = vadd.f32 0.0, %v1382
    %1384 = vdwg.mxu0
    %v1385 = vadd.f32 %v1239, %v1310
    %v1386 = vadd.f32 %v1240, %v1312
    %v1387 = vadd.f32 %v1241, %v1381
    %v1388 = vadd.f32 %v1242, %v1383
    %v1389 = vxor.u32 %v1385, 2147483648
    %v1390 = vmul.f32 %v1389, 1.442695
    %v1391 = vpow.pop %v1390
    %v1392 = vadd.f32 %v1391, 1.0
    %v1393 = vrcp.pop %v1392
    %v1394 = vmul.f32 1.0, %v1393
    %v1395 = vxor.u32 %v1386, 2147483648
    %v1396 = vmul.f32 %v1395, 1.442695
    %v1397 = vpow.pop %v1396
    %v1398 = vadd.f32 %v1397, 1.0
    %v1399 = vrcp.pop %v1398
    %v1400 = vmul.f32 1.0, %v1399
    %v1401 = vtanh.pop %v1387
    %v1402 = vxor.u32 %v1388, 2147483648
    %v1403 = vmul.f32 %v1402, 1.442695
    %v1404 = vpow.pop %v1403
    %v1405 = vadd.f32 %v1404, 1.0
    %v1406 = vrcp.pop %v1405
    %v1407 = vmul.f32 1.0, %v1406
    %v1408 = vmul.f32 %v1400, %v1233
    %v1409 = vmul.f32 %v1394, %v1401
    %v1410 = vadd.f32 %v1408, %v1409
    %v1411 = vtanh.pop %v1410
    %v1412 = vmul.f32 %v1407, %v1411
    %1413 = vst.msk [vmem:[#allocation2 + $0x8] sm:$0xff] %vm128, %v1412
    %1414 = vst.msk [vmem:[#allocation2 + $0x30] sm:$0xff] %vm1237, %v1412
    %v1415 = vadd.f32 %v609, %v869
    %v1416 = vadd.f32 %v611, %v871
    %v1417 = vadd.f32 %v722, %v982
    %v1418 = vadd.f32 %v724, %v984
    %1419 = vmatprep.subr.mxu0 %v999
    %1420 = vmatpush1.msra.mxu0 %v998
    %1421 = vmatprep.subr.mxu0 %v1003
    %1422 = vmatpush1.msra.mxu0 %v1002
    %1423 = vmatprep.subr.mxu0 %v1007
    %1424 = vmatpush1.msra.mxu0 %v1006
    %1425 = vmatprep.subr.mxu0 %v1011
    %1426 = vmatpush1.msra.mxu0 %v1010
    %1427 = vmatprep.subr.mxu0 %v1015
    %1428 = vmatpush1.msra.mxu0 %v1014
    %1429 = vmatprep.subr.mxu0 %v1019
    %1430 = vmatpush1.msra.mxu0 %v1018
    %1431 = vmatprep.subr.mxu0 %v1023
    %1432 = vmatpush1.msra.mxu0 %v1022
    %1433 = vmatprep.subr.mxu0 %v1027
    %1434 = vmatpush1.msra.mxu0 %v1026
    %1435 = vmatprep.subr.mxu0 %v1031
    %1436 = vmatpush1.msra.mxu0 %v1030
    %1437 = vmatprep.subr.mxu0 %v1035
    %1438 = vmatpush1.msra.mxu0 %v1034
    %1439 = vmatprep.subr.mxu0 %v1039
    %1440 = vmatpush1.msra.mxu0 %v1038
    %1441 = vmatprep.subr.mxu0 %v1043
    %1442 = vmatpush1.msra.mxu0 %v1042
    %1443 = vmatprep.subr.mxu0 %v1047
    %1444 = vmatpush1.msra.mxu0 %v1046
    %1445 = vmatprep.subr.mxu0 %v1051
    %1446 = vmatpush1.msra.mxu0 %v1050
    %1447 = vmatprep.subr.mxu0 %v1055
    %1448 = vmatpush1.msra.mxu0 %v1054
    %1449 = vmatprep.subr.mxu0 %v1059
    %1450 = vmatpush1.msra.mxu0 %v1058
    %1451 = vmatprep.subr.mxu0 0.0
    %1452 = vmatpush1.msra.mxu0 0.0
    %1453 = vmatprep.subr.mxu0 0.0
    %1454 = vmatpush1.msra.mxu0 0.0
    %1455 = vmatprep.subr.mxu0 0.0
    %1456 = vmatpush1.msra.mxu0 0.0
    %1457 = vmatprep.subr.mxu0 0.0
    %1458 = vmatpush1.msra.mxu0 0.0
    %1459 = vmatprep.subr.mxu0 0.0
    %1460 = vmatpush1.msra.mxu0 0.0
    %1461 = vmatprep.subr.mxu0 0.0
    %1462 = vmatpush1.msra.mxu0 0.0
    %1463 = vmatprep.subr.mxu0 0.0
    %1464 = vmatpush1.msra.mxu0 0.0
    %1465 = vmatprep.subr.mxu0 0.0
    %1466 = vmatpush1.msra.mxu0 0.0
    %1467 = vmatprep.subr.mxu0 0.0
    %1468 = vmatpush1.msra.mxu0 0.0
    %1469 = vmatprep.subr.mxu0 0.0
    %1470 = vmatpush1.msra.mxu0 0.0
    %1471 = vmatprep.subr.mxu0 0.0
    %1472 = vmatpush1.msra.mxu0 0.0
    %1473 = vmatprep.subr.mxu0 0.0
    %1474 = vmatpush1.msra.mxu0 0.0
    %1475 = vmatprep.subr.mxu0 0.0
    %1476 = vmatpush1.msra.mxu0 0.0
    %1477 = vmatprep.subr.mxu0 0.0
    %1478 = vmatpush1.msra.mxu0 0.0
    %1479 = vmatprep.subr.mxu0 0.0
    %1480 = vmatpush1.msra.mxu0 0.0
    %1481 = vmatprep.subr.mxu0 0.0
    %1482 = vmatpush1.msra.mxu0 0.0
    %1483 = vmatprep.mubr.f32.mxu0 0.0
    %1484 = vmatmul.mubr.f32.gmra.mrb[0].mxu0 %v1412
    %v1485 = vpop.f32.mrb[0].mxu0
    %v1486 = vadd.f32 0.0, %v1485
    %v1487 = vpop.f32.mrb[0].mxu0
    %v1488 = vadd.f32 0.0, %v1487
    %1489 = vdwg.mxu0
    %1490 = vmatprep.subr.mxu0 %v1001
    %1491 = vmatpush1.msra.mxu0 %v1000
    %1492 = vmatprep.subr.mxu0 %v1005
    %1493 = vmatpush1.msra.mxu0 %v1004
    %1494 = vmatprep.subr.mxu0 %v1009
    %1495 = vmatpush1.msra.mxu0 %v1008
    %1496 = vmatprep.subr.mxu0 %v1013
    %1497 = vmatpush1.msra.mxu0 %v1012
    %1498 = vmatprep.subr.mxu0 %v1017
    %1499 = vmatpush1.msra.mxu0 %v1016
    %1500 = vmatprep.subr.mxu0 %v1021
    %1501 = vmatpush1.msra.mxu0 %v1020
    %1502 = vmatprep.subr.mxu0 %v1025
    %1503 = vmatpush1.msra.mxu0 %v1024
    %1504 = vmatprep.subr.mxu0 %v1029
    %1505 = vmatpush1.msra.mxu0 %v1028
    %1506 = vmatprep.subr.mxu0 %v1033
    %1507 = vmatpush1.msra.mxu0 %v1032
    %1508 = vmatprep.subr.mxu0 %v1037
    %1509 = vmatpush1.msra.mxu0 %v1036
    %1510 = vmatprep.subr.mxu0 %v1041
    %1511 = vmatpush1.msra.mxu0 %v1040
    %1512 = vmatprep.subr.mxu0 %v1045
    %1513 = vmatpush1.msra.mxu0 %v1044
    %1514 = vmatprep.subr.mxu0 %v1049
    %1515 = vmatpush1.msra.mxu0 %v1048
    %1516 = vmatprep.subr.mxu0 %v1053
    %1517 = vmatpush1.msra.mxu0 %v1052
    %1518 = vmatprep.subr.mxu0 %v1057
    %1519 = vmatpush1.msra.mxu0 %v1056
    %1520 = vmatprep.subr.mxu0 %v1061
    %1521 = vmatpush1.msra.mxu0 %v1060
    %1522 = vmatprep.subr.mxu0 0.0
    %1523 = vmatpush1.msra.mxu0 0.0
    %1524 = vmatprep.subr.mxu0 0.0
    %1525 = vmatpush1.msra.mxu0 0.0
    %1526 = vmatprep.subr.mxu0 0.0
    %1527 = vmatpush1.msra.mxu0 0.0
    %1528 = vmatprep.subr.mxu0 0.0
    %1529 = vmatpush1.msra.mxu0 0.0
    %1530 = vmatprep.subr.mxu0 0.0
    %1531 = vmatpush1.msra.mxu0 0.0
    %1532 = vmatprep.subr.mxu0 0.0
    %1533 = vmatpush1.msra.mxu0 0.0
    %1534 = vmatprep.subr.mxu0 0.0
    %1535 = vmatpush1.msra.mxu0 0.0
    %1536 = vmatprep.subr.mxu0 0.0
    %1537 = vmatpush1.msra.mxu0 0.0
    %1538 = vmatprep.subr.mxu0 0.0
    %1539 = vmatpush1.msra.mxu0 0.0
    %1540 = vmatprep.subr.mxu0 0.0
    %1541 = vmatpush1.msra.mxu0 0.0
    %1542 = vmatprep.subr.mxu0 0.0
    %1543 = vmatpush1.msra.mxu0 0.0
    %1544 = vmatprep.subr.mxu0 0.0
    %1545 = vmatpush1.msra.mxu0 0.0
    %1546 = vmatprep.subr.mxu0 0.0
    %1547 = vmatpush1.msra.mxu0 0.0
    %1548 = vmatprep.subr.mxu0 0.0
    %1549 = vmatpush1.msra.mxu0 0.0
    %1550 = vmatprep.subr.mxu0 0.0
    %1551 = vmatpush1.msra.mxu0 0.0
    %1552 = vmatprep.subr.mxu0 0.0
    %1553 = vmatpush1.msra.mxu0 0.0
    %1554 = vmatprep.mubr.f32.mxu0 0.0
    %1555 = vmatmul.mubr.f32.gmra.mrb[0].mxu0 %v1412
    %v1556 = vpop.f32.mrb[0].mxu0
    %v1557 = vadd.f32 0.0, %v1556
    %v1558 = vpop.f32.mrb[0].mxu0
    %v1559 = vadd.f32 0.0, %v1558
    %1560 = vdwg.mxu0
    %v1561 = vadd.f32 %v1415, %v1486
    %v1562 = vadd.f32 %v1416, %v1488
    %v1563 = vadd.f32 %v1417, %v1557
    %v1564 = vadd.f32 %v1418, %v1559
    %v1565 = vxor.u32 %v1561, 2147483648
    %v1566 = vmul.f32 %v1565, 1.442695
    %v1567 = vpow.pop %v1566
    %v1568 = vadd.f32 %v1567, 1.0
    %v1569 = vrcp.pop %v1568
    %v1570 = vmul.f32 1.0, %v1569
    %v1571 = vxor.u32 %v1562, 2147483648
    %v1572 = vmul.f32 %v1571, 1.442695
    %v1573 = vpow.pop %v1572
    %v1574 = vadd.f32 %v1573, 1.0
    %v1575 = vrcp.pop %v1574
    %v1576 = vmul.f32 1.0, %v1575
    %v1577 = vtanh.pop %v1563
    %v1578 = vxor.u32 %v1564, 2147483648
    %v1579 = vmul.f32 %v1578, 1.442695
    %v1580 = vpow.pop %v1579
    %v1581 = vadd.f32 %v1580, 1.0
    %v1582 = vrcp.pop %v1581
    %v1583 = vmul.f32 1.0, %v1582
    %v1584 = vmul.f32 %v1576, %v1410
    %v1585 = vmul.f32 %v1570, %v1577
    %v1586 = vadd.f32 %v1584, %v1585
    %v1587 = vtanh.pop %v1586
    %v1588 = vmul.f32 %v1583, %v1587
    %1589 = vst.msk [vmem:[#allocation2 + $0x10] sm:$0xff] %vm128, %v1588
    %1590 = vst.msk [vmem:[#allocation2 + $0x28] sm:$0xff] %vm1237, %v1588
    %v1591 = vadd.f32 %v615, %v863
    %v1592 = vadd.f32 %v617, %v865
    %v1593 = vadd.f32 %v728, %v976
    %v1594 = vadd.f32 %v730, %v978
    %1595 = vmatprep.subr.mxu0 %v999
    %1596 = vmatpush1.msra.mxu0 %v998
    %1597 = vmatprep.subr.mxu0 %v1003
    %1598 = vmatpush1.msra.mxu0 %v1002
    %1599 = vmatprep.subr.mxu0 %v1007
    %1600 = vmatpush1.msra.mxu0 %v1006
    %1601 = vmatprep.subr.mxu0 %v1011
    %1602 = vmatpush1.msra.mxu0 %v1010
    %1603 = vmatprep.subr.mxu0 %v1015
    %1604 = vmatpush1.msra.mxu0 %v1014
    %1605 = vmatprep.subr.mxu0 %v1019
    %1606 = vmatpush1.msra.mxu0 %v1018
    %1607 = vmatprep.subr.mxu0 %v1023
    %1608 = vmatpush1.msra.mxu0 %v1022
    %1609 = vmatprep.subr.mxu0 %v1027
    %1610 = vmatpush1.msra.mxu0 %v1026
    %1611 = vmatprep.subr.mxu0 %v1031
    %1612 = vmatpush1.msra.mxu0 %v1030
    %1613 = vmatprep.subr.mxu0 %v1035
    %1614 = vmatpush1.msra.mxu0 %v1034
    %1615 = vmatprep.subr.mxu0 %v1039
    %1616 = vmatpush1.msra.mxu0 %v1038
    %1617 = vmatprep.subr.mxu0 %v1043
    %1618 = vmatpush1.msra.mxu0 %v1042
    %1619 = vmatprep.subr.mxu0 %v1047
    %1620 = vmatpush1.msra.mxu0 %v1046
    %1621 = vmatprep.subr.mxu0 %v1051
    %1622 = vmatpush1.msra.mxu0 %v1050
    %1623 = vmatprep.subr.mxu0 %v1055
    %1624 = vmatpush1.msra.mxu0 %v1054
    %1625 = vmatprep.subr.mxu0 %v1059
    %1626 = vmatpush1.msra.mxu0 %v1058
    %1627 = vmatprep.subr.mxu0 0.0
    %1628 = vmatpush1.msra.mxu0 0.0
    %1629 = vmatprep.subr.mxu0 0.0
    %1630 = vmatpush1.msra.mxu0 0.0
    %1631 = vmatprep.subr.mxu0 0.0
    %1632 = vmatpush1.msra.mxu0 0.0
    %1633 = vmatprep.subr.mxu0 0.0
    %1634 = vmatpush1.msra.mxu0 0.0
    %1635 = vmatprep.subr.mxu0 0.0
    %1636 = vmatpush1.msra.mxu0 0.0
    %1637 = vmatprep.subr.mxu0 0.0
    %1638 = vmatpush1.msra.mxu0 0.0
    %1639 = vmatprep.subr.mxu0 0.0
    %1640 = vmatpush1.msra.mxu0 0.0
    %1641 = vmatprep.subr.mxu0 0.0
    %1642 = vmatpush1.msra.mxu0 0.0
    %1643 = vmatprep.subr.mxu0 0.0
    %1644 = vmatpush1.msra.mxu0 0.0
    %1645 = vmatprep.subr.mxu0 0.0
    %1646 = vmatpush1.msra.mxu0 0.0
    %1647 = vmatprep.subr.mxu0 0.0
    %1648 = vmatpush1.msra.mxu0 0.0
    %1649 = vmatprep.subr.mxu0 0.0
    %1650 = vmatpush1.msra.mxu0 0.0
    %1651 = vmatprep.subr.mxu0 0.0
    %1652 = vmatpush1.msra.mxu0 0.0
    %1653 = vmatprep.subr.mxu0 0.0
    %1654 = vmatpush1.msra.mxu0 0.0
    %1655 = vmatprep.subr.mxu0 0.0
    %1656 = vmatpush1.msra.mxu0 0.0
    %1657 = vmatprep.subr.mxu0 0.0
    %1658 = vmatpush1.msra.mxu0 0.0
    %1659 = vmatprep.mubr.f32.mxu0 0.0
    %1660 = vmatmul.mubr.f32.gmra.mrb[0].mxu0 %v1588
    %v1661 = vpop.f32.mrb[0].mxu0
    %v1662 = vadd.f32 0.0, %v1661
    %v1663 = vpop.f32.mrb[0].mxu0
    %v1664 = vadd.f32 0.0, %v1663
    %1665 = vdwg.mxu0
    %1666 = vmatprep.subr.mxu0 %v1001
    %1667 = vmatpush1.msra.mxu0 %v1000
    %1668 = vmatprep.subr.mxu0 %v1005
    %1669 = vmatpush1.msra.mxu0 %v1004
    %1670 = vmatprep.subr.mxu0 %v1009
    %1671 = vmatpush1.msra.mxu0 %v1008
    %1672 = vmatprep.subr.mxu0 %v1013
    %1673 = vmatpush1.msra.mxu0 %v1012
    %1674 = vmatprep.subr.mxu0 %v1017
    %1675 = vmatpush1.msra.mxu0 %v1016
    %1676 = vmatprep.subr.mxu0 %v1021
    %1677 = vmatpush1.msra.mxu0 %v1020
    %1678 = vmatprep.subr.mxu0 %v1025
    %1679 = vmatpush1.msra.mxu0 %v1024
    %1680 = vmatprep.subr.mxu0 %v1029
    %1681 = vmatpush1.msra.mxu0 %v1028
    %1682 = vmatprep.subr.mxu0 %v1033
    %1683 = vmatpush1.msra.mxu0 %v1032
    %1684 = vmatprep.subr.mxu0 %v1037
    %1685 = vmatpush1.msra.mxu0 %v1036
    %1686 = vmatprep.subr.mxu0 %v1041
    %1687 = vmatpush1.msra.mxu0 %v1040
    %1688 = vmatprep.subr.mxu0 %v1045
    %1689 = vmatpush1.msra.mxu0 %v1044
    %1690 = vmatprep.subr.mxu0 %v1049
    %1691 = vmatpush1.msra.mxu0 %v1048
    %1692 = vmatprep.subr.mxu0 %v1053
    %1693 = vmatpush1.msra.mxu0 %v1052
    %1694 = vmatprep.subr.mxu0 %v1057
    %1695 = vmatpush1.msra.mxu0 %v1056
    %1696 = vmatprep.subr.mxu0 %v1061
    %1697 = vmatpush1.msra.mxu0 %v1060
    %1698 = vmatprep.subr.mxu0 0.0
    %1699 = vmatpush1.msra.mxu0 0.0
    %1700 = vmatprep.subr.mxu0 0.0
    %1701 = vmatpush1.msra.mxu0 0.0
    %1702 = vmatprep.subr.mxu0 0.0
    %1703 = vmatpush1.msra.mxu0 0.0
    %1704 = vmatprep.subr.mxu0 0.0
    %1705 = vmatpush1.msra.mxu0 0.0
    %1706 = vmatprep.subr.mxu0 0.0
    %1707 = vmatpush1.msra.mxu0 0.0
    %1708 = vmatprep.subr.mxu0 0.0
    %1709 = vmatpush1.msra.mxu0 0.0
    %1710 = vmatprep.subr.mxu0 0.0
    %1711 = vmatpush1.msra.mxu0 0.0
    %1712 = vmatprep.subr.mxu0 0.0
    %1713 = vmatpush1.msra.mxu0 0.0
    %1714 = vmatprep.subr.mxu0 0.0
    %1715 = vmatpush1.msra.mxu0 0.0
    %1716 = vmatprep.subr.mxu0 0.0
    %1717 = vmatpush1.msra.mxu0 0.0
    %1718 = vmatprep.subr.mxu0 0.0
    %1719 = vmatpush1.msra.mxu0 0.0
    %1720 = vmatprep.subr.mxu0 0.0
    %1721 = vmatpush1.msra.mxu0 0.0
    %1722 = vmatprep.subr.mxu0 0.0
    %1723 = vmatpush1.msra.mxu0 0.0
    %1724 = vmatprep.subr.mxu0 0.0
    %1725 = vmatpush1.msra.mxu0 0.0
    %1726 = vmatprep.subr.mxu0 0.0
    %1727 = vmatpush1.msra.mxu0 0.0
    %1728 = vmatprep.subr.mxu0 0.0
    %1729 = vmatpush1.msra.mxu0 0.0
    %1730 = vmatprep.mubr.f32.mxu0 0.0
    %1731 = vmatmul.mubr.f32.gmra.mrb[0].mxu0 %v1588
    %v1732 = vpop.f32.mrb[0].mxu0
    %v1733 = vadd.f32 0.0, %v1732
    %v1734 = vpop.f32.mrb[0].mxu0
    %v1735 = vadd.f32 0.0, %v1734
    %1736 = vdwg.mxu0
    %v1737 = vadd.f32 %v1591, %v1662
    %v1738 = vadd.f32 %v1592, %v1664
    %v1739 = vadd.f32 %v1593, %v1733
    %v1740 = vadd.f32 %v1594, %v1735
    %v1741 = vxor.u32 %v1737, 2147483648
    %v1742 = vmul.f32 %v1741, 1.442695
    %v1743 = vpow.pop %v1742
    %v1744 = vadd.f32 %v1743, 1.0
    %v1745 = vrcp.pop %v1744
    %v1746 = vmul.f32 1.0, %v1745
    %v1747 = vxor.u32 %v1738, 2147483648
    %v1748 = vmul.f32 %v1747, 1.442695
    %v1749 = vpow.pop %v1748
    %v1750 = vadd.f32 %v1749, 1.0
    %v1751 = vrcp.pop %v1750
    %v1752 = vmul.f32 1.0, %v1751
    %v1753 = vtanh.pop %v1739
    %v1754 = vxor.u32 %v1740, 2147483648
    %v1755 = vmul.f32 %v1754, 1.442695
    %v1756 = vpow.pop %v1755
    %v1757 = vadd.f32 %v1756, 1.0
    %v1758 = vrcp.pop %v1757
    %v1759 = vmul.f32 1.0, %v1758
    %v1760 = vmul.f32 %v1752, %v1586
    %v1761 = vmul.f32 %v1746, %v1753
    %v1762 = vadd.f32 %v1760, %v1761
    %v1763 = vtanh.pop %v1762
    %v1764 = vmul.f32 %v1759, %v1763
    %1765 = vst.msk [vmem:[#allocation2 + $0x18] sm:$0xff] %vm128, %v1764
    %1766 = vst.msk [vmem:[#allocation2 + $0x20] sm:$0xff] %vm1237, %v1764
    %v1767 = vadd.f32 %v621, %v857
    %v1768 = vadd.f32 %v623, %v859
    %v1769 = vadd.f32 %v734, %v970
    %v1770 = vadd.f32 %v736, %v972
    %1771 = vmatprep.subr.mxu0 %v999
    %1772 = vmatpush1.msra.mxu0 %v998
    %1773 = vmatprep.subr.mxu0 %v1003
    %1774 = vmatpush1.msra.mxu0 %v1002
    %1775 = vmatprep.subr.mxu0 %v1007
    %1776 = vmatpush1.msra.mxu0 %v1006
    %1777 = vmatprep.subr.mxu0 %v1011
    %1778 = vmatpush1.msra.mxu0 %v1010
    %1779 = vmatprep.subr.mxu0 %v1015
    %1780 = vmatpush1.msra.mxu0 %v1014
    %1781 = vmatprep.subr.mxu0 %v1019
    %1782 = vmatpush1.msra.mxu0 %v1018
    %1783 = vmatprep.subr.mxu0 %v1023
    %1784 = vmatpush1.msra.mxu0 %v1022
    %1785 = vmatprep.subr.mxu0 %v1027
    %1786 = vmatpush1.msra.mxu0 %v1026
    %1787 = vmatprep.subr.mxu0 %v1031
    %1788 = vmatpush1.msra.mxu0 %v1030
    %1789 = vmatprep.subr.mxu0 %v1035
    %1790 = vmatpush1.msra.mxu0 %v1034
    %1791 = vmatprep.subr.mxu0 %v1039
    %1792 = vmatpush1.msra.mxu0 %v1038
    %1793 = vmatprep.subr.mxu0 %v1043
    %1794 = vmatpush1.msra.mxu0 %v1042
    %1795 = vmatprep.subr.mxu0 %v1047
    %1796 = vmatpush1.msra.mxu0 %v1046
    %1797 = vmatprep.subr.mxu0 %v1051
    %1798 = vmatpush1.msra.mxu0 %v1050
    %1799 = vmatprep.subr.mxu0 %v1055
    %1800 = vmatpush1.msra.mxu0 %v1054
    %1801 = vmatprep.subr.mxu0 %v1059
    %1802 = vmatpush1.msra.mxu0 %v1058
    %1803 = vmatprep.subr.mxu0 0.0
    %1804 = vmatpush1.msra.mxu0 0.0
    %1805 = vmatprep.subr.mxu0 0.0
    %1806 = vmatpush1.msra.mxu0 0.0
    %1807 = vmatprep.subr.mxu0 0.0
    %1808 = vmatpush1.msra.mxu0 0.0
    %1809 = vmatprep.subr.mxu0 0.0
    %1810 = vmatpush1.msra.mxu0 0.0
    %1811 = vmatprep.subr.mxu0 0.0
    %1812 = vmatpush1.msra.mxu0 0.0
    %1813 = vmatprep.subr.mxu0 0.0
    %1814 = vmatpush1.msra.mxu0 0.0
    %1815 = vmatprep.subr.mxu0 0.0
    %1816 = vmatpush1.msra.mxu0 0.0
    %1817 = vmatprep.subr.mxu0 0.0
    %1818 = vmatpush1.msra.mxu0 0.0
    %1819 = vmatprep.subr.mxu0 0.0
    %1820 = vmatpush1.msra.mxu0 0.0
    %1821 = vmatprep.subr.mxu0 0.0
    %1822 = vmatpush1.msra.mxu0 0.0
    %1823 = vmatprep.subr.mxu0 0.0
    %1824 = vmatpush1.msra.mxu0 0.0
    %1825 = vmatprep.subr.mxu0 0.0
    %1826 = vmatpush1.msra.mxu0 0.0
    %1827 = vmatprep.subr.mxu0 0.0
    %1828 = vmatpush1.msra.mxu0 0.0
    %1829 = vmatprep.subr.mxu0 0.0
    %1830 = vmatpush1.msra.mxu0 0.0
    %1831 = vmatprep.subr.mxu0 0.0
    %1832 = vmatpush1.msra.mxu0 0.0
    %1833 = vmatprep.subr.mxu0 0.0
    %1834 = vmatpush1.msra.mxu0 0.0
    %1835 = vmatprep.mubr.f32.mxu0 0.0
    %1836 = vmatmul.mubr.f32.gmra.mrb[0].mxu0 %v1764
    %v1837 = vpop.f32.mrb[0].mxu0
    %v1838 = vadd.f32 0.0, %v1837
    %v1839 = vpop.f32.mrb[0].mxu0
    %v1840 = vadd.f32 0.0, %v1839
    %1841 = vdwg.mxu0
    %1842 = vmatprep.subr.mxu0 %v1001
    %1843 = vmatpush1.msra.mxu0 %v1000
    %1844 = vmatprep.subr.mxu0 %v1005
    %1845 = vmatpush1.msra.mxu0 %v1004
    %1846 = vmatprep.subr.mxu0 %v1009
    %1847 = vmatpush1.msra.mxu0 %v1008
    %1848 = vmatprep.subr.mxu0 %v1013
    %1849 = vmatpush1.msra.mxu0 %v1012
    %1850 = vmatprep.subr.mxu0 %v1017
    %1851 = vmatpush1.msra.mxu0 %v1016
    %1852 = vmatprep.subr.mxu0 %v1021
    %1853 = vmatpush1.msra.mxu0 %v1020
    %1854 = vmatprep.subr.mxu0 %v1025
    %1855 = vmatpush1.msra.mxu0 %v1024
    %1856 = vmatprep.subr.mxu0 %v1029
    %1857 = vmatpush1.msra.mxu0 %v1028
    %1858 = vmatprep.subr.mxu0 %v1033
    %1859 = vmatpush1.msra.mxu0 %v1032
    %1860 = vmatprep.subr.mxu0 %v1037
    %1861 = vmatpush1.msra.mxu0 %v1036
    %1862 = vmatprep.subr.mxu0 %v1041
    %1863 = vmatpush1.msra.mxu0 %v1040
    %1864 = vmatprep.subr.mxu0 %v1045
    %1865 = vmatpush1.msra.mxu0 %v1044
    %1866 = vmatprep.subr.mxu0 %v1049
    %1867 = vmatpush1.msra.mxu0 %v1048
    %1868 = vmatprep.subr.mxu0 %v1053
    %1869 = vmatpush1.msra.mxu0 %v1052
    %1870 = vmatprep.subr.mxu0 %v1057
    %1871 = vmatpush1.msra.mxu0 %v1056
    %1872 = vmatprep.subr.mxu0 %v1061
    %1873 = vmatpush1.msra.mxu0 %v1060
    %1874 = vmatprep.subr.mxu0 0.0
    %1875 = vmatpush1.msra.mxu0 0.0
    %1876 = vmatprep.subr.mxu0 0.0
    %1877 = vmatpush1.msra.mxu0 0.0
    %1878 = vmatprep.subr.mxu0 0.0
    %1879 = vmatpush1.msra.mxu0 0.0
    %1880 = vmatprep.subr.mxu0 0.0
    %1881 = vmatpush1.msra.mxu0 0.0
    %1882 = vmatprep.subr.mxu0 0.0
    %1883 = vmatpush1.msra.mxu0 0.0
    %1884 = vmatprep.subr.mxu0 0.0
    %1885 = vmatpush1.msra.mxu0 0.0
    %1886 = vmatprep.subr.mxu0 0.0
    %1887 = vmatpush1.msra.mxu0 0.0
    %1888 = vmatprep.subr.mxu0 0.0
    %1889 = vmatpush1.msra.mxu0 0.0
    %1890 = vmatprep.subr.mxu0 0.0
    %1891 = vmatpush1.msra.mxu0 0.0
    %1892 = vmatprep.subr.mxu0 0.0
    %1893 = vmatpush1.msra.mxu0 0.0
    %1894 = vmatprep.subr.mxu0 0.0
    %1895 = vmatpush1.msra.mxu0 0.0
    %1896 = vmatprep.subr.mxu0 0.0
    %1897 = vmatpush1.msra.mxu0 0.0
    %1898 = vmatprep.subr.mxu0 0.0
    %1899 = vmatpush1.msra.mxu0 0.0
    %1900 = vmatprep.subr.mxu0 0.0
    %1901 = vmatpush1.msra.mxu0 0.0
    %1902 = vmatprep.subr.mxu0 0.0
    %1903 = vmatpush1.msra.mxu0 0.0
    %1904 = vmatprep.subr.mxu0 0.0
    %1905 = vmatpush1.msra.mxu0 0.0
    %1906 = vmatprep.mubr.f32.mxu0 0.0
    %1907 = vmatmul.mubr.f32.gmra.mrb[0].mxu0 %v1764
    %v1908 = vpop.f32.mrb[0].mxu0
    %v1909 = vadd.f32 0.0, %v1908
    %v1910 = vpop.f32.mrb[0].mxu0
    %v1911 = vadd.f32 0.0, %v1910
    %1912 = vdwg.mxu0
    %v1913 = vadd.f32 %v1767, %v1838
    %v1914 = vadd.f32 %v1768, %v1840
    %v1915 = vadd.f32 %v1769, %v1909
    %v1916 = vadd.f32 %v1770, %v1911
    %v1917 = vxor.u32 %v1913, 2147483648
    %v1918 = vmul.f32 %v1917, 1.442695
    %v1919 = vpow.pop %v1918
    %v1920 = vadd.f32 %v1919, 1.0
    %v1921 = vrcp.pop %v1920
    %v1922 = vmul.f32 1.0, %v1921
    %v1923 = vxor.u32 %v1914, 2147483648
    %v1924 = vmul.f32 %v1923, 1.442695
    %v1925 = vpow.pop %v1924
    %v1926 = vadd.f32 %v1925, 1.0
    %v1927 = vrcp.pop %v1926
    %v1928 = vmul.f32 1.0, %v1927
    %v1929 = vtanh.pop %v1915
    %v1930 = vxor.u32 %v1916, 2147483648
    %v1931 = vmul.f32 %v1930, 1.442695
    %v1932 = vpow.pop %v1931
    %v1933 = vadd.f32 %v1932, 1.0
    %v1934 = vrcp.pop %v1933
    %v1935 = vmul.f32 1.0, %v1934
    %v1936 = vmul.f32 %v1928, %v1762
    %v1937 = vmul.f32 %v1922, %v1929
    %v1938 = vadd.f32 %v1936, %v1937
    %v1939 = vtanh.pop %v1938
    %v1940 = vmul.f32 %v1935, %v1939
    %1941 = vst.msk [vmem:[#allocation2 + $0x20] sm:$0xff] %vm128, %v1940
    %1942 = vst.msk [vmem:[#allocation2 + $0x18] sm:$0xff] %vm1237, %v1940
    %v1943 = vadd.f32 %v627, %v851
    %v1944 = vadd.f32 %v629, %v853
    %v1945 = vadd.f32 %v740, %v964
    %v1946 = vadd.f32 %v742, %v966
    %1947 = vmatprep.subr.mxu0 %v999
    %1948 = vmatpush1.msra.mxu0 %v998
    %1949 = vmatprep.subr.mxu0 %v1003
    %1950 = vmatpush1.msra.mxu0 %v1002
    %1951 = vmatprep.subr.mxu0 %v1007
    %1952 = vmatpush1.msra.mxu0 %v1006
    %1953 = vmatprep.subr.mxu0 %v1011
    %1954 = vmatpush1.msra.mxu0 %v1010
    %1955 = vmatprep.subr.mxu0 %v1015
    %1956 = vmatpush1.msra.mxu0 %v1014
    %1957 = vmatprep.subr.mxu0 %v1019
    %1958 = vmatpush1.msra.mxu0 %v1018
    %1959 = vmatprep.subr.mxu0 %v1023
    %1960 = vmatpush1.msra.mxu0 %v1022
    %1961 = vmatprep.subr.mxu0 %v1027
    %1962 = vmatpush1.msra.mxu0 %v1026
    %1963 = vmatprep.subr.mxu0 %v1031
    %1964 = vmatpush1.msra.mxu0 %v1030
    %1965 = vmatprep.subr.mxu0 %v1035
    %1966 = vmatpush1.msra.mxu0 %v1034
    %1967 = vmatprep.subr.mxu0 %v1039
    %1968 = vmatpush1.msra.mxu0 %v1038
    %1969 = vmatprep.subr.mxu0 %v1043
    %1970 = vmatpush1.msra.mxu0 %v1042
    %1971 = vmatprep.subr.mxu0 %v1047
    %1972 = vmatpush1.msra.mxu0 %v1046
    %1973 = vmatprep.subr.mxu0 %v1051
    %1974 = vmatpush1.msra.mxu0 %v1050
    %1975 = vmatprep.subr.mxu0 %v1055
    %1976 = vmatpush1.msra.mxu0 %v1054
    %1977 = vmatprep.subr.mxu0 %v1059
    %1978 = vmatpush1.msra.mxu0 %v1058
    %1979 = vmatprep.subr.mxu0 0.0
    %1980 = vmatpush1.msra.mxu0 0.0
    %1981 = vmatprep.subr.mxu0 0.0
    %1982 = vmatpush1.msra.mxu0 0.0
    %1983 = vmatprep.subr.mxu0 0.0
    %1984 = vmatpush1.msra.mxu0 0.0
    %1985 = vmatprep.subr.mxu0 0.0
    %1986 = vmatpush1.msra.mxu0 0.0
    %1987 = vmatprep.subr.mxu0 0.0
    %1988 = vmatpush1.msra.mxu0 0.0
    %1989 = vmatprep.subr.mxu0 0.0
    %1990 = vmatpush1.msra.mxu0 0.0
    %1991 = vmatprep.subr.mxu0 0.0
    %1992 = vmatpush1.msra.mxu0 0.0
    %1993 = vmatprep.subr.mxu0 0.0
    %1994 = vmatpush1.msra.mxu0 0.0
    %1995 = vmatprep.subr.mxu0 0.0
    %1996 = vmatpush1.msra.mxu0 0.0
    %1997 = vmatprep.subr.mxu0 0.0
    %1998 = vmatpush1.msra.mxu0 0.0
    %1999 = vmatprep.subr.mxu0 0.0
    %2000 = vmatpush1.msra.mxu0 0.0
    %2001 = vmatprep.subr.mxu0 0.0
    %2002 = vmatpush1.msra.mxu0 0.0
    %2003 = vmatprep.subr.mxu0 0.0
    %2004 = vmatpush1.msra.mxu0 0.0
    %2005 = vmatprep.subr.mxu0 0.0
    %2006 = vmatpush1.msra.mxu0 0.0
    %2007 = vmatprep.subr.mxu0 0.0
    %2008 = vmatpush1.msra.mxu0 0.0
    %2009 = vmatprep.subr.mxu0 0.0
    %2010 = vmatpush1.msra.mxu0 0.0
    %2011 = vmatprep.mubr.f32.mxu0 0.0
    %2012 = vmatmul.mubr.f32.gmra.mrb[0].mxu0 %v1940
    %v2013 = vpop.f32.mrb[0].mxu0
    %v2014 = vadd.f32 0.0, %v2013
    %v2015 = vpop.f32.mrb[0].mxu0
    %v2016 = vadd.f32 0.0, %v2015
    %2017 = vdwg.mxu0
    %2018 = vmatprep.subr.mxu0 %v1001
    %2019 = vmatpush1.msra.mxu0 %v1000
    %2020 = vmatprep.subr.mxu0 %v1005
    %2021 = vmatpush1.msra.mxu0 %v1004
    %2022 = vmatprep.subr.mxu0 %v1009
    %2023 = vmatpush1.msra.mxu0 %v1008
    %2024 = vmatprep.subr.mxu0 %v1013
    %2025 = vmatpush1.msra.mxu0 %v1012
    %2026 = vmatprep.subr.mxu0 %v1017
    %2027 = vmatpush1.msra.mxu0 %v1016
    %2028 = vmatprep.subr.mxu0 %v1021
    %2029 = vmatpush1.msra.mxu0 %v1020
    %2030 = vmatprep.subr.mxu0 %v1025
    %2031 = vmatpush1.msra.mxu0 %v1024
    %2032 = vmatprep.subr.mxu0 %v1029
    %2033 = vmatpush1.msra.mxu0 %v1028
    %2034 = vmatprep.subr.mxu0 %v1033
    %2035 = vmatpush1.msra.mxu0 %v1032
    %2036 = vmatprep.subr.mxu0 %v1037
    %2037 = vmatpush1.msra.mxu0 %v1036
    %2038 = vmatprep.subr.mxu0 %v1041
    %2039 = vmatpush1.msra.mxu0 %v1040
    %2040 = vmatprep.subr.mxu0 %v1045
    %2041 = vmatpush1.msra.mxu0 %v1044
    %2042 = vmatprep.subr.mxu0 %v1049
    %2043 = vmatpush1.msra.mxu0 %v1048
    %2044 = vmatprep.subr.mxu0 %v1053
    %2045 = vmatpush1.msra.mxu0 %v1052
    %2046 = vmatprep.subr.mxu0 %v1057
    %2047 = vmatpush1.msra.mxu0 %v1056
    %2048 = vmatprep.subr.mxu0 %v1061
    %2049 = vmatpush1.msra.mxu0 %v1060
    %2050 = vmatprep.subr.mxu0 0.0
    %2051 = vmatpush1.msra.mxu0 0.0
    %2052 = vmatprep.subr.mxu0 0.0
    %2053 = vmatpush1.msra.mxu0 0.0
    %2054 = vmatprep.subr.mxu0 0.0
    %2055 = vmatpush1.msra.mxu0 0.0
    %2056 = vmatprep.subr.mxu0 0.0
    %2057 = vmatpush1.msra.mxu0 0.0
    %2058 = vmatprep.subr.mxu0 0.0
    %2059 = vmatpush1.msra.mxu0 0.0
    %2060 = vmatprep.subr.mxu0 0.0
    %2061 = vmatpush1.msra.mxu0 0.0
    %2062 = vmatprep.subr.mxu0 0.0
    %2063 = vmatpush1.msra.mxu0 0.0
    %2064 = vmatprep.subr.mxu0 0.0
    %2065 = vmatpush1.msra.mxu0 0.0
    %2066 = vmatprep.subr.mxu0 0.0
    %2067 = vmatpush1.msra.mxu0 0.0
    %2068 = vmatprep.subr.mxu0 0.0
    %2069 = vmatpush1.msra.mxu0 0.0
    %2070 = vmatprep.subr.mxu0 0.0
    %2071 = vmatpush1.msra.mxu0 0.0
    %2072 = vmatprep.subr.mxu0 0.0
    %2073 = vmatpush1.msra.mxu0 0.0
    %2074 = vmatprep.subr.mxu0 0.0
    %2075 = vmatpush1.msra.mxu0 0.0
    %2076 = vmatprep.subr.mxu0 0.0
    %2077 = vmatpush1.msra.mxu0 0.0
    %2078 = vmatprep.subr.mxu0 0.0
    %2079 = vmatpush1.msra.mxu0 0.0
    %2080 = vmatprep.subr.mxu0 0.0
    %2081 = vmatpush1.msra.mxu0 0.0
    %2082 = vmatprep.mubr.f32.mxu0 0.0
    %2083 = vmatmul.mubr.f32.gmra.mrb[0].mxu0 %v1940
    %v2084 = vpop.f32.mrb[0].mxu0
    %v2085 = vadd.f32 0.0, %v2084
    %v2086 = vpop.f32.mrb[0].mxu0
    %v2087 = vadd.f32 0.0, %v2086
    %2088 = vdwg.mxu0
    %v2089 = vadd.f32 %v1943, %v2014
    %v2090 = vadd.f32 %v1944, %v2016
    %v2091 = vadd.f32 %v1945, %v2085
    %v2092 = vadd.f32 %v1946, %v2087
    %v2093 = vxor.u32 %v2089, 2147483648
    %v2094 = vmul.f32 %v2093, 1.442695
    %v2095 = vpow.pop %v2094
    %v2096 = vadd.f32 %v2095, 1.0
    %v2097 = vrcp.pop %v2096
    %v2098 = vmul.f32 1.0, %v2097
    %v2099 = vxor.u32 %v2090, 2147483648
    %v2100 = vmul.f32 %v2099, 1.442695
    %v2101 = vpow.pop %v2100
    %v2102 = vadd.f32 %v2101, 1.0
    %v2103 = vrcp.pop %v2102
    %v2104 = vmul.f32 1.0, %v2103
    %v2105 = vtanh.pop %v2091
    %v2106 = vxor.u32 %v2092, 2147483648
    %v2107 = vmul.f32 %v2106, 1.442695
    %v2108 = vpow.pop %v2107
    %v2109 = vadd.f32 %v2108, 1.0
    %v2110 = vrcp.pop %v2109
    %v2111 = vmul.f32 1.0, %v2110
    %v2112 = vmul.f32 %v2104, %v1938
    %v2113 = vmul.f32 %v2098, %v2105
    %v2114 = vadd.f32 %v2112, %v2113
    %v2115 = vtanh.pop %v2114
    %v2116 = vmul.f32 %v2111, %v2115
    %2117 = vst.msk [vmem:[#allocation2 + $0x28] sm:$0xff] %vm128, %v2116
    %2118 = vst.msk [vmem:[#allocation2 + $0x10] sm:$0xff] %vm1237, %v2116
    %v2119 = vadd.f32 %v633, %v845
    %v2120 = vadd.f32 %v635, %v847
    %v2121 = vadd.f32 %v746, %v958
    %v2122 = vadd.f32 %v748, %v960
    %2123 = vmatprep.subr.mxu0 %v999
    %2124 = vmatpush1.msra.mxu0 %v998
    %2125 = vmatprep.subr.mxu0 %v1003
    %2126 = vmatpush1.msra.mxu0 %v1002
    %2127 = vmatprep.subr.mxu0 %v1007
    %2128 = vmatpush1.msra.mxu0 %v1006
    %2129 = vmatprep.subr.mxu0 %v1011
    %2130 = vmatpush1.msra.mxu0 %v1010
    %2131 = vmatprep.subr.mxu0 %v1015
    %2132 = vmatpush1.msra.mxu0 %v1014
    %2133 = vmatprep.subr.mxu0 %v1019
    %2134 = vmatpush1.msra.mxu0 %v1018
    %2135 = vmatprep.subr.mxu0 %v1023
    %2136 = vmatpush1.msra.mxu0 %v1022
    %2137 = vmatprep.subr.mxu0 %v1027
    %2138 = vmatpush1.msra.mxu0 %v1026
    %2139 = vmatprep.subr.mxu0 %v1031
    %2140 = vmatpush1.msra.mxu0 %v1030
    %2141 = vmatprep.subr.mxu0 %v1035
    %2142 = vmatpush1.msra.mxu0 %v1034
    %2143 = vmatprep.subr.mxu0 %v1039
    %2144 = vmatpush1.msra.mxu0 %v1038
    %2145 = vmatprep.subr.mxu0 %v1043
    %2146 = vmatpush1.msra.mxu0 %v1042
    %2147 = vmatprep.subr.mxu0 %v1047
    %2148 = vmatpush1.msra.mxu0 %v1046
    %2149 = vmatprep.subr.mxu0 %v1051
    %2150 = vmatpush1.msra.mxu0 %v1050
    %2151 = vmatprep.subr.mxu0 %v1055
    %2152 = vmatpush1.msra.mxu0 %v1054
    %2153 = vmatprep.subr.mxu0 %v1059
    %2154 = vmatpush1.msra.mxu0 %v1058
    %2155 = vmatprep.subr.mxu0 0.0
    %2156 = vmatpush1.msra.mxu0 0.0
    %2157 = vmatprep.subr.mxu0 0.0
    %2158 = vmatpush1.msra.mxu0 0.0
    %2159 = vmatprep.subr.mxu0 0.0
    %2160 = vmatpush1.msra.mxu0 0.0
    %2161 = vmatprep.subr.mxu0 0.0
    %2162 = vmatpush1.msra.mxu0 0.0
    %2163 = vmatprep.subr.mxu0 0.0
    %2164 = vmatpush1.msra.mxu0 0.0
    %2165 = vmatprep.subr.mxu0 0.0
    %2166 = vmatpush1.msra.mxu0 0.0
    %2167 = vmatprep.subr.mxu0 0.0
    %2168 = vmatpush1.msra.mxu0 0.0
    %2169 = vmatprep.subr.mxu0 0.0
    %2170 = vmatpush1.msra.mxu0 0.0
    %2171 = vmatprep.subr.mxu0 0.0
    %2172 = vmatpush1.msra.mxu0 0.0
    %2173 = vmatprep.subr.mxu0 0.0
    %2174 = vmatpush1.msra.mxu0 0.0
    %2175 = vmatprep.subr.mxu0 0.0
    %2176 = vmatpush1.msra.mxu0 0.0
    %2177 = vmatprep.subr.mxu0 0.0
    %2178 = vmatpush1.msra.mxu0 0.0
    %2179 = vmatprep.subr.mxu0 0.0
    %2180 = vmatpush1.msra.mxu0 0.0
    %2181 = vmatprep.subr.mxu0 0.0
    %2182 = vmatpush1.msra.mxu0 0.0
    %2183 = vmatprep.subr.mxu0 0.0
    %2184 = vmatpush1.msra.mxu0 0.0
    %2185 = vmatprep.subr.mxu0 0.0
    %2186 = vmatpush1.msra.mxu0 0.0
    %2187 = vmatprep.mubr.f32.mxu0 0.0
    %2188 = vmatmul.mubr.f32.gmra.mrb[0].mxu0 %v2116
    %v2189 = vpop.f32.mrb[0].mxu0
    %v2190 = vadd.f32 0.0, %v2189
    %v2191 = vpop.f32.mrb[0].mxu0
    %v2192 = vadd.f32 0.0, %v2191
    %2193 = vdwg.mxu0
    %2194 = vmatprep.subr.mxu0 %v1001
    %2195 = vmatpush1.msra.mxu0 %v1000
    %2196 = vmatprep.subr.mxu0 %v1005
    %2197 = vmatpush1.msra.mxu0 %v1004
    %2198 = vmatprep.subr.mxu0 %v1009
    %2199 = vmatpush1.msra.mxu0 %v1008
    %2200 = vmatprep.subr.mxu0 %v1013
    %2201 = vmatpush1.msra.mxu0 %v1012
    %2202 = vmatprep.subr.mxu0 %v1017
    %2203 = vmatpush1.msra.mxu0 %v1016
    %2204 = vmatprep.subr.mxu0 %v1021
    %2205 = vmatpush1.msra.mxu0 %v1020
    %2206 = vmatprep.subr.mxu0 %v1025
    %2207 = vmatpush1.msra.mxu0 %v1024
    %2208 = vmatprep.subr.mxu0 %v1029
    %2209 = vmatpush1.msra.mxu0 %v1028
    %2210 = vmatprep.subr.mxu0 %v1033
    %2211 = vmatpush1.msra.mxu0 %v1032
    %2212 = vmatprep.subr.mxu0 %v1037
    %2213 = vmatpush1.msra.mxu0 %v1036
    %2214 = vmatprep.subr.mxu0 %v1041
    %2215 = vmatpush1.msra.mxu0 %v1040
    %2216 = vmatprep.subr.mxu0 %v1045
    %2217 = vmatpush1.msra.mxu0 %v1044
    %2218 = vmatprep.subr.mxu0 %v1049
    %2219 = vmatpush1.msra.mxu0 %v1048
    %2220 = vmatprep.subr.mxu0 %v1053
    %2221 = vmatpush1.msra.mxu0 %v1052
    %2222 = vmatprep.subr.mxu0 %v1057
    %2223 = vmatpush1.msra.mxu0 %v1056
    %2224 = vmatprep.subr.mxu0 %v1061
    %2225 = vmatpush1.msra.mxu0 %v1060
    %2226 = vmatprep.subr.mxu0 0.0
    %2227 = vmatpush1.msra.mxu0 0.0
    %2228 = vmatprep.subr.mxu0 0.0
    %2229 = vmatpush1.msra.mxu0 0.0
    %2230 = vmatprep.subr.mxu0 0.0
    %2231 = vmatpush1.msra.mxu0 0.0
    %2232 = vmatprep.subr.mxu0 0.0
    %2233 = vmatpush1.msra.mxu0 0.0
    %2234 = vmatprep.subr.mxu0 0.0
    %2235 = vmatpush1.msra.mxu0 0.0
    %2236 = vmatprep.subr.mxu0 0.0
    %2237 = vmatpush1.msra.mxu0 0.0
    %2238 = vmatprep.subr.mxu0 0.0
    %2239 = vmatpush1.msra.mxu0 0.0
    %2240 = vmatprep.subr.mxu0 0.0
    %2241 = vmatpush1.msra.mxu0 0.0
    %2242 = vmatprep.subr.mxu0 0.0
    %2243 = vmatpush1.msra.mxu0 0.0
    %2244 = vmatprep.subr.mxu0 0.0
    %2245 = vmatpush1.msra.mxu0 0.0
    %2246 = vmatprep.subr.mxu0 0.0
    %2247 = vmatpush1.msra.mxu0 0.0
    %2248 = vmatprep.subr.mxu0 0.0
    %2249 = vmatpush1.msra.mxu0 0.0
    %2250 = vmatprep.subr.mxu0 0.0
    %2251 = vmatpush1.msra.mxu0 0.0
    %2252 = vmatprep.subr.mxu0 0.0
    %2253 = vmatpush1.msra.mxu0 0.0
    %2254 = vmatprep.subr.mxu0 0.0
    %2255 = vmatpush1.msra.mxu0 0.0
    %2256 = vmatprep.subr.mxu0 0.0
    %2257 = vmatpush1.msra.mxu0 0.0
    %2258 = vmatprep.mubr.f32.mxu0 0.0
    %2259 = vmatmul.mubr.f32.gmra.mrb[0].mxu0 %v2116
    %v2260 = vpop.f32.mrb[0].mxu0
    %v2261 = vadd.f32 0.0, %v2260
    %v2262 = vpop.f32.mrb[0].mxu0
    %v2263 = vadd.f32 0.0, %v2262
    %2264 = vdwg.mxu0
    %v2265 = vadd.f32 %v2119, %v2190
    %v2266 = vadd.f32 %v2120, %v2192
    %v2267 = vadd.f32 %v2121, %v2261
    %v2268 = vadd.f32 %v2122, %v2263
    %v2269 = vxor.u32 %v2265, 2147483648
    %v2270 = vmul.f32 %v2269, 1.442695
    %v2271 = vpow.pop %v2270
    %v2272 = vadd.f32 %v2271, 1.0
    %v2273 = vrcp.pop %v2272
    %v2274 = vmul.f32 1.0, %v2273
    %v2275 = vxor.u32 %v2266, 2147483648
    %v2276 = vmul.f32 %v2275, 1.442695
    %v2277 = vpow.pop %v2276
    %v2278 = vadd.f32 %v2277, 1.0
    %v2279 = vrcp.pop %v2278
    %v2280 = vmul.f32 1.0, %v2279
    %v2281 = vtanh.pop %v2267
    %v2282 = vxor.u32 %v2268, 2147483648
    %v2283 = vmul.f32 %v2282, 1.442695
    %v2284 = vpow.pop %v2283
    %v2285 = vadd.f32 %v2284, 1.0
    %v2286 = vrcp.pop %v2285
    %v2287 = vmul.f32 1.0, %v2286
    %v2288 = vmul.f32 %v2280, %v2114
    %v2289 = vmul.f32 %v2274, %v2281
    %v2290 = vadd.f32 %v2288, %v2289
    %v2291 = vtanh.pop %v2290
    %v2292 = vmul.f32 %v2287, %v2291
    %2293 = vst.msk [vmem:[#allocation2 + $0x30] sm:$0xff] %vm128, %v2292
    %2294 = vst.msk [vmem:[#allocation2 + $0x8] sm:$0xff] %vm1237, %v2292
    %v2295 = vadd.f32 %v639, %v839
    %v2296 = vadd.f32 %v641, %v841
    %v2297 = vadd.f32 %v752, %v952
    %v2298 = vadd.f32 %v754, %v954
    %2299 = vmatprep.subr.mxu0 %v999
    %2300 = vmatpush1.msra.mxu0 %v998
    %2301 = vmatprep.subr.mxu0 %v1003
    %2302 = vmatpush1.msra.mxu0 %v1002
    %2303 = vmatprep.subr.mxu0 %v1007
    %2304 = vmatpush1.msra.mxu0 %v1006
    %2305 = vmatprep.subr.mxu0 %v1011
    %2306 = vmatpush1.msra.mxu0 %v1010
    %2307 = vmatprep.subr.mxu0 %v1015
    %2308 = vmatpush1.msra.mxu0 %v1014
    %2309 = vmatprep.subr.mxu0 %v1019
    %2310 = vmatpush1.msra.mxu0 %v1018
    %2311 = vmatprep.subr.mxu0 %v1023
    %2312 = vmatpush1.msra.mxu0 %v1022
    %2313 = vmatprep.subr.mxu0 %v1027
    %2314 = vmatpush1.msra.mxu0 %v1026
    %2315 = vmatprep.subr.mxu0 %v1031
    %2316 = vmatpush1.msra.mxu0 %v1030
    %2317 = vmatprep.subr.mxu0 %v1035
    %2318 = vmatpush1.msra.mxu0 %v1034
    %2319 = vmatprep.subr.mxu0 %v1039
    %2320 = vmatpush1.msra.mxu0 %v1038
    %2321 = vmatprep.subr.mxu0 %v1043
    %2322 = vmatpush1.msra.mxu0 %v1042
    %2323 = vmatprep.subr.mxu0 %v1047
    %2324 = vmatpush1.msra.mxu0 %v1046
    %2325 = vmatprep.subr.mxu0 %v1051
    %2326 = vmatpush1.msra.mxu0 %v1050
    %2327 = vmatprep.subr.mxu0 %v1055
    %2328 = vmatpush1.msra.mxu0 %v1054
    %2329 = vmatprep.subr.mxu0 %v1059
    %2330 = vmatpush1.msra.mxu0 %v1058
    %2331 = vmatprep.subr.mxu0 0.0
    %2332 = vmatpush1.msra.mxu0 0.0
    %2333 = vmatprep.subr.mxu0 0.0
    %2334 = vmatpush1.msra.mxu0 0.0
    %2335 = vmatprep.subr.mxu0 0.0
    %2336 = vmatpush1.msra.mxu0 0.0
    %2337 = vmatprep.subr.mxu0 0.0
    %2338 = vmatpush1.msra.mxu0 0.0
    %2339 = vmatprep.subr.mxu0 0.0
    %2340 = vmatpush1.msra.mxu0 0.0
    %2341 = vmatprep.subr.mxu0 0.0
    %2342 = vmatpush1.msra.mxu0 0.0
    %2343 = vmatprep.subr.mxu0 0.0
    %2344 = vmatpush1.msra.mxu0 0.0
    %2345 = vmatprep.subr.mxu0 0.0
    %2346 = vmatpush1.msra.mxu0 0.0
    %2347 = vmatprep.subr.mxu0 0.0
    %2348 = vmatpush1.msra.mxu0 0.0
    %2349 = vmatprep.subr.mxu0 0.0
    %2350 = vmatpush1.msra.mxu0 0.0
    %2351 = vmatprep.subr.mxu0 0.0
    %2352 = vmatpush1.msra.mxu0 0.0
    %2353 = vmatprep.subr.mxu0 0.0
    %2354 = vmatpush1.msra.mxu0 0.0
    %2355 = vmatprep.subr.mxu0 0.0
    %2356 = vmatpush1.msra.mxu0 0.0
    %2357 = vmatprep.subr.mxu0 0.0
    %2358 = vmatpush1.msra.mxu0 0.0
    %2359 = vmatprep.subr.mxu0 0.0
    %2360 = vmatpush1.msra.mxu0 0.0
    %2361 = vmatprep.subr.mxu0 0.0
    %2362 = vmatpush1.msra.mxu0 0.0
    %2363 = vmatprep.mubr.f32.mxu0 0.0
    %2364 = vmatmul.mubr.f32.gmra.mrb[0].mxu0 %v2292
    %v2365 = vpop.f32.mrb[0].mxu0
    %v2366 = vadd.f32 0.0, %v2365
    %v2367 = vpop.f32.mrb[0].mxu0
    %v2368 = vadd.f32 0.0, %v2367
    %2369 = vdwg.mxu0
    %2370 = vmatprep.subr.mxu0 %v1001
    %2371 = vmatpush1.msra.mxu0 %v1000
    %2372 = vmatprep.subr.mxu0 %v1005
    %2373 = vmatpush1.msra.mxu0 %v1004
    %2374 = vmatprep.subr.mxu0 %v1009
    %2375 = vmatpush1.msra.mxu0 %v1008
    %2376 = vmatprep.subr.mxu0 %v1013
    %2377 = vmatpush1.msra.mxu0 %v1012
    %2378 = vmatprep.subr.mxu0 %v1017
    %2379 = vmatpush1.msra.mxu0 %v1016
    %2380 = vmatprep.subr.mxu0 %v1021
    %2381 = vmatpush1.msra.mxu0 %v1020
    %2382 = vmatprep.subr.mxu0 %v1025
    %2383 = vmatpush1.msra.mxu0 %v1024
    %2384 = vmatprep.subr.mxu0 %v1029
    %2385 = vmatpush1.msra.mxu0 %v1028
    %2386 = vmatprep.subr.mxu0 %v1033
    %2387 = vmatpush1.msra.mxu0 %v1032
    %2388 = vmatprep.subr.mxu0 %v1037
    %2389 = vmatpush1.msra.mxu0 %v1036
    %2390 = vmatprep.subr.mxu0 %v1041
    %2391 = vmatpush1.msra.mxu0 %v1040
    %2392 = vmatprep.subr.mxu0 %v1045
    %2393 = vmatpush1.msra.mxu0 %v1044
    %2394 = vmatprep.subr.mxu0 %v1049
    %2395 = vmatpush1.msra.mxu0 %v1048
    %2396 = vmatprep.subr.mxu0 %v1053
    %2397 = vmatpush1.msra.mxu0 %v1052
    %2398 = vmatprep.subr.mxu0 %v1057
    %2399 = vmatpush1.msra.mxu0 %v1056
    %2400 = vmatprep.subr.mxu0 %v1061
    %2401 = vmatpush1.msra.mxu0 %v1060
    %2402 = vmatprep.subr.mxu0 0.0
    %2403 = vmatpush1.msra.mxu0 0.0
    %2404 = vmatprep.subr.mxu0 0.0
    %2405 = vmatpush1.msra.mxu0 0.0
    %2406 = vmatprep.subr.mxu0 0.0
    %2407 = vmatpush1.msra.mxu0 0.0
    %2408 = vmatprep.subr.mxu0 0.0
    %2409 = vmatpush1.msra.mxu0 0.0
    %2410 = vmatprep.subr.mxu0 0.0
    %2411 = vmatpush1.msra.mxu0 0.0
    %2412 = vmatprep.subr.mxu0 0.0
    %2413 = vmatpush1.msra.mxu0 0.0
    %2414 = vmatprep.subr.mxu0 0.0
    %2415 = vmatpush1.msra.mxu0 0.0
    %2416 = vmatprep.subr.mxu0 0.0
    %2417 = vmatpush1.msra.mxu0 0.0
    %2418 = vmatprep.subr.mxu0 0.0
    %2419 = vmatpush1.msra.mxu0 0.0
    %2420 = vmatprep.subr.mxu0 0.0
    %2421 = vmatpush1.msra.mxu0 0.0
    %2422 = vmatprep.subr.mxu0 0.0
    %2423 = vmatpush1.msra.mxu0 0.0
    %2424 = vmatprep.subr.mxu0 0.0
    %2425 = vmatpush1.msra.mxu0 0.0
    %2426 = vmatprep.subr.mxu0 0.0
    %2427 = vmatpush1.msra.mxu0 0.0
    %2428 = vmatprep.subr.mxu0 0.0
    %2429 = vmatpush1.msra.mxu0 0.0
    %2430 = vmatprep.subr.mxu0 0.0
    %2431 = vmatpush1.msra.mxu0 0.0
    %2432 = vmatprep.subr.mxu0 0.0
    %2433 = vmatpush1.msra.mxu0 0.0
    %2434 = vmatprep.mubr.f32.mxu0 0.0
    %2435 = vmatmul.mubr.f32.gmra.mrb[0].mxu0 %v2292
    %v2436 = vpop.f32.mrb[0].mxu0
    %v2437 = vadd.f32 0.0, %v2436
    %v2438 = vpop.f32.mrb[0].mxu0
    %v2439 = vadd.f32 0.0, %v2438
    %2440 = vdwg.mxu0
    %v2441 = vadd.f32 %v2295, %v2366
    %v2442 = vadd.f32 %v2296, %v2368
    %v2443 = vadd.f32 %v2297, %v2437
    %v2444 = vadd.f32 %v2298, %v2439
    %v2445 = vxor.u32 %v2441, 2147483648
    %v2446 = vmul.f32 %v2445, 1.442695
    %v2447 = vpow.pop %v2446
    %v2448 = vadd.f32 %v2447, 1.0
    %v2449 = vrcp.pop %v2448
    %v2450 = vmul.f32 1.0, %v2449
    %v2451 = vxor.u32 %v2442, 2147483648
    %v2452 = vmul.f32 %v2451, 1.442695
    %v2453 = vpow.pop %v2452
    %v2454 = vadd.f32 %v2453, 1.0
    %v2455 = vrcp.pop %v2454
    %v2456 = vmul.f32 1.0, %v2455
    %v2457 = vtanh.pop %v2443
    %v2458 = vxor.u32 %v2444, 2147483648
    %v2459 = vmul.f32 %v2458, 1.442695
    %v2460 = vpow.pop %v2459
    %v2461 = vadd.f32 %v2460, 1.0
    %v2462 = vrcp.pop %v2461
    %v2463 = vmul.f32 1.0, %v2462
    %v2464 = vmul.f32 %v2456, %v2290
    %v2465 = vmul.f32 %v2450, %v2457
    %v2466 = vadd.f32 %v2464, %v2465
    %v2467 = vtanh.pop %v2466
    %v2468 = vmul.f32 %v2463, %v2467
    %2469 = vst.msk [vmem:[#allocation2 + $0x38] sm:$0xff] %vm128, %v2468
    %2470 = vst.msk [vmem:[#allocation2] sm:$0xff] %vm1237, %v2468
    %v2471 = vld [vmem:[#allocation2] sm:$0xff]
    %v2472 = vld [vmem:[#allocation2 + $0x8] sm:$0xff]
    %v2473 = vld [vmem:[#allocation2 + $0x10] sm:$0xff]
    %v2474 = vld [vmem:[#allocation2 + $0x18] sm:$0xff]
    %v2475 = vld [vmem:[#allocation2 + $0x20] sm:$0xff]
    %v2476 = vld [vmem:[#allocation2 + $0x28] sm:$0xff]
    %v2477 = vld [vmem:[#allocation2 + $0x30] sm:$0xff]
    %v2478 = vld [vmem:[#allocation2 + $0x38] sm:$0xff]
    %v2479 = vld [vmem:[%s7] sm:$0xff]
    %v2480 = vld [vmem:[%s7 + $0x8] sm:$0xff]
    %v2481 = vld [vmem:[%s7 + $0x10] sm:$0xff]
    %v2482 = vld [vmem:[%s7 + $0x18] sm:$0xff]
    %v2483 = vld [vmem:[%s7 + $0x20] sm:$0xff]
    %v2484 = vld [vmem:[%s7 + $0x28] sm:$0xff]
    %v2485 = vld [vmem:[%s7 + $0x30] sm:$0xff]
    %v2486 = vld [vmem:[%s7 + $0x38] sm:$0xff]
    %v2487 = vld [vmem:[%s7 + $0x40] sm:$0xff]
    %v2488 = vld [vmem:[%s7 + $0x48] sm:$0xff]
    %v2489 = vld [vmem:[%s7 + $0x50] sm:$0xff]
    %v2490 = vld [vmem:[%s7 + $0x58] sm:$0xff]
    %v2491 = vld [vmem:[%s7 + $0x60] sm:$0xff]
    %v2492 = vld [vmem:[%s7 + $0x68] sm:$0xff]
    %v2493 = vld [vmem:[%s7 + $0x70] sm:$0xff]
    %v2494 = vld [vmem:[%s7 + $0x78] sm:$0xff]
    %v2495 = vld [vmem:[%s7 + $0x80] sm:$0xff]
    %v2496 = vld [vmem:[%s7 + $0x88] sm:$0xff]
    %v2497 = vld [vmem:[%s7 + $0x90] sm:$0xff]
    %v2498 = vld [vmem:[%s7 + $0x98] sm:$0xff]
    %v2499 = vld [vmem:[%s7 + $0xa0] sm:$0xff]
    %v2500 = vld [vmem:[%s7 + $0xa8] sm:$0xff]
    %v2501 = vld [vmem:[%s7 + $0xb0] sm:$0xff]
    %v2502 = vld [vmem:[%s7 + $0xb8] sm:$0xff]
    %v2503 = vld [vmem:[%s7 + $0xc0] sm:$0xff]
    %v2504 = vld [vmem:[%s7 + $0xc8] sm:$0xff]
    %v2505 = vld [vmem:[%s7 + $0xd0] sm:$0xff]
    %v2506 = vld [vmem:[%s7 + $0xd8] sm:$0xff]
    %v2507 = vld [vmem:[%s7 + $0xe0] sm:$0xff]
    %v2508 = vld [vmem:[%s7 + $0xe8] sm:$0xff]
    %v2509 = vld [vmem:[%s7 + $0xf0] sm:$0xff]
    %v2510 = vld [vmem:[%s7 + $0xf8] sm:$0xff]
    %v2511 = vld [vmem:[%s7 + $0x100] sm:$0xff]
    %v2512 = vld [vmem:[%s7 + $0x108] sm:$0xff]
    %v2513 = vld [vmem:[%s7 + $0x110] sm:$0xff]
    %v2514 = vld [vmem:[%s7 + $0x118] sm:$0xff]
    %v2515 = vld [vmem:[%s7 + $0x120] sm:$0xff]
    %v2516 = vld [vmem:[%s7 + $0x128] sm:$0xff]
    %v2517 = vld [vmem:[%s7 + $0x130] sm:$0xff]
    %v2518 = vld [vmem:[%s7 + $0x138] sm:$0xff]
    %v2519 = vld [vmem:[%s7 + $0x140] sm:$0xff]
    %v2520 = vld [vmem:[%s7 + $0x148] sm:$0xff]
    %v2521 = vld [vmem:[%s7 + $0x150] sm:$0xff]
    %v2522 = vld [vmem:[%s7 + $0x158] sm:$0xff]
    %v2523 = vld [vmem:[%s7 + $0x160] sm:$0xff]
    %v2524 = vld [vmem:[%s7 + $0x168] sm:$0xff]
    %v2525 = vld [vmem:[%s7 + $0x170] sm:$0xff]
    %v2526 = vld [vmem:[%s7 + $0x178] sm:$0xff]
    %v2527 = vld [vmem:[%s7 + $0x180] sm:$0xff]
    %v2528 = vld [vmem:[%s7 + $0x188] sm:$0xff]
    %v2529 = vld [vmem:[%s7 + $0x190] sm:$0xff]
    %v2530 = vld [vmem:[%s7 + $0x198] sm:$0xff]
    %v2531 = vld [vmem:[%s7 + $0x1a0] sm:$0xff]
    %v2532 = vld [vmem:[%s7 + $0x1a8] sm:$0xff]
    %v2533 = vld [vmem:[%s7 + $0x1b0] sm:$0xff]
    %v2534 = vld [vmem:[%s7 + $0x1b8] sm:$0xff]
    %v2535 = vld [vmem:[%s7 + $0x1c0] sm:$0xff]
    %v2536 = vld [vmem:[%s7 + $0x1c8] sm:$0xff]
    %v2537 = vld [vmem:[%s7 + $0x1d0] sm:$0xff]
    %v2538 = vld [vmem:[%s7 + $0x1d8] sm:$0xff]
    %v2539 = vld [vmem:[%s7 + $0x1e0] sm:$0xff]
    %v2540 = vld [vmem:[%s7 + $0x1e8] sm:$0xff]
    %v2541 = vld [vmem:[%s7 + $0x1f0] sm:$0xff]
    %v2542 = vld [vmem:[%s7 + $0x1f8] sm:$0xff]
    %v2543 = vld [vmem:[%s10] sm:$0xf]
    %v2545 = vlaneseq
    %v2546 = vshrl.u32 %v2545, 7
    %v2547 = vsub.s32 0, %v2546
    %v2548 = vrot.slane %v2543, %v2547
    %v2549 = vlaneseq
    %v2550 = vshrl.u32 %v2549, 7
    %v2551 = vsub.s32 1, %v2550
    %v2552 = vrot.slane %v2543, %v2551
    %v2553 = vlaneseq
    %v2554 = vshrl.u32 %v2553, 7
    %v2555 = vsub.s32 2, %v2554
    %v2556 = vrot.slane %v2543, %v2555
    %v2557 = vlaneseq
    %v2558 = vshrl.u32 %v2557, 7
    %v2559 = vsub.s32 3, %v2558
    %v2560 = vrot.slane %v2543, %v2559
    %2565 = vmatprep.subr.mxu0 %v2480
    %2566 = vmatpush1.msra.mxu0 %v2479
    %2567 = vmatprep.subr.mxu0 %v2484
    %2568 = vmatpush1.msra.mxu0 %v2483
    %2569 = vmatprep.subr.mxu0 %v2488
    %2570 = vmatpush1.msra.mxu0 %v2487
    %2571 = vmatprep.subr.mxu0 %v2492
    %2572 = vmatpush1.msra.mxu0 %v2491
    %2573 = vmatprep.subr.mxu0 %v2496
    %2574 = vmatpush1.msra.mxu0 %v2495
    %2575 = vmatprep.subr.mxu0 %v2500
    %2576 = vmatpush1.msra.mxu0 %v2499
    %2577 = vmatprep.subr.mxu0 %v2504
    %2578 = vmatpush1.msra.mxu0 %v2503
    %2579 = vmatprep.subr.mxu0 %v2508
    %2580 = vmatpush1.msra.mxu0 %v2507
    %2581 = vmatprep.subr.mxu0 %v2512
    %2582 = vmatpush1.msra.mxu0 %v2511
    %2583 = vmatprep.subr.mxu0 %v2516
    %2584 = vmatpush1.msra.mxu0 %v2515
    %2585 = vmatprep.subr.mxu0 %v2520
    %2586 = vmatpush1.msra.mxu0 %v2519
    %2587 = vmatprep.subr.mxu0 %v2524
    %2588 = vmatpush1.msra.mxu0 %v2523
    %2589 = vmatprep.subr.mxu0 %v2528
    %2590 = vmatpush1.msra.mxu0 %v2527
    %2591 = vmatprep.subr.mxu0 %v2532
    %2592 = vmatpush1.msra.mxu0 %v2531
    %2593 = vmatprep.subr.mxu0 %v2536
    %2594 = vmatpush1.msra.mxu0 %v2535
    %2595 = vmatprep.subr.mxu0 %v2540
    %2596 = vmatpush1.msra.mxu0 %v2539
    %2597 = vmatprep.subr.mxu0 0.0
    %2598 = vmatpush1.msra.mxu0 0.0
    %2599 = vmatprep.subr.mxu0 0.0
    %2600 = vmatpush1.msra.mxu0 0.0
    %2601 = vmatprep.subr.mxu0 0.0
    %2602 = vmatpush1.msra.mxu0 0.0
    %2603 = vmatprep.subr.mxu0 0.0
    %2604 = vmatpush1.msra.mxu0 0.0
    %2605 = vmatprep.subr.mxu0 0.0
    %2606 = vmatpush1.msra.mxu0 0.0
    %2607 = vmatprep.subr.mxu0 0.0
    %2608 = vmatpush1.msra.mxu0 0.0
    %2609 = vmatprep.subr.mxu0 0.0
    %2610 = vmatpush1.msra.mxu0 0.0
    %2611 = vmatprep.subr.mxu0 0.0
    %2612 = vmatpush1.msra.mxu0 0.0
    %2613 = vmatprep.subr.mxu0 0.0
    %2614 = vmatpush1.msra.mxu0 0.0
    %2615 = vmatprep.subr.mxu0 0.0
    %2616 = vmatpush1.msra.mxu0 0.0
    %2617 = vmatprep.subr.mxu0 0.0
    %2618 = vmatpush1.msra.mxu0 0.0
    %2619 = vmatprep.subr.mxu0 0.0
    %2620 = vmatpush1.msra.mxu0 0.0
    %2621 = vmatprep.subr.mxu0 0.0
    %2622 = vmatpush1.msra.mxu0 0.0
    %2623 = vmatprep.subr.mxu0 0.0
    %2624 = vmatpush1.msra.mxu0 0.0
    %2625 = vmatprep.subr.mxu0 0.0
    %2626 = vmatpush1.msra.mxu0 0.0
    %2627 = vmatprep.subr.mxu0 0.0
    %2628 = vmatpush1.msra.mxu0 0.0
    %2629 = vmatprep.mubr.f32.mxu0 0.0
    %2630 = vmatmul.mubr.f32.gmra.mrb[0].mxu0 %v2471
    %v2631 = vpop.f32.mrb[0].mxu0
    %v2632 = vadd.f32 %v2548, %v2631
    %v2633 = vpop.f32.mrb[0].mxu0
    %v2634 = vadd.f32 %v2552, %v2633
    %2635 = vmatprep.mubr.f32.mxu0 0.0
    %2636 = vmatmul.mubr.f32.gmra.mrb[0].mxu0 %v2472
    %v2637 = vpop.f32.mrb[0].mxu0
    %v2638 = vadd.f32 %v2548, %v2637
    %v2639 = vpop.f32.mrb[0].mxu0
    %v2640 = vadd.f32 %v2552, %v2639
    %2641 = vmatprep.mubr.f32.mxu0 0.0
    %2642 = vmatmul.mubr.f32.gmra.mrb[0].mxu0 %v2473
    %v2643 = vpop.f32.mrb[0].mxu0
    %v2644 = vadd.f32 %v2548, %v2643
    %v2645 = vpop.f32.mrb[0].mxu0
    %v2646 = vadd.f32 %v2552, %v2645
    %2647 = vmatprep.mubr.f32.mxu0 0.0
    %2648 = vmatmul.mubr.f32.gmra.mrb[0].mxu0 %v2474
    %v2649 = vpop.f32.mrb[0].mxu0
    %v2650 = vadd.f32 %v2548, %v2649
    %v2651 = vpop.f32.mrb[0].mxu0
    %v2652 = vadd.f32 %v2552, %v2651
    %2653 = vmatprep.mubr.f32.mxu0 0.0
    %2654 = vmatmul.mubr.f32.gmra.mrb[0].mxu0 %v2475
    %v2655 = vpop.f32.mrb[0].mxu0
    %v2656 = vadd.f32 %v2548, %v2655
    %v2657 = vpop.f32.mrb[0].mxu0
    %v2658 = vadd.f32 %v2552, %v2657
    %2659 = vmatprep.mubr.f32.mxu0 0.0
    %2660 = vmatmul.mubr.f32.gmra.mrb[0].mxu0 %v2476
    %v2661 = vpop.f32.mrb[0].mxu0
    %v2662 = vadd.f32 %v2548, %v2661
    %v2663 = vpop.f32.mrb[0].mxu0
    %v2664 = vadd.f32 %v2552, %v2663
    %2665 = vmatprep.mubr.f32.mxu0 0.0
    %2666 = vmatmul.mubr.f32.gmra.mrb[0].mxu0 %v2477
    %v2667 = vpop.f32.mrb[0].mxu0
    %v2668 = vadd.f32 %v2548, %v2667
    %v2669 = vpop.f32.mrb[0].mxu0
    %v2670 = vadd.f32 %v2552, %v2669
    %2671 = vmatprep.mubr.f32.mxu0 0.0
    %2672 = vmatmul.mubr.f32.gmra.mrb[0].mxu0 %v2478
    %v2673 = vpop.f32.mrb[0].mxu0
    %v2674 = vadd.f32 %v2548, %v2673
    %v2675 = vpop.f32.mrb[0].mxu0
    %v2676 = vadd.f32 %v2552, %v2675
    %2677 = vdwg.mxu0
    %2678 = vmatprep.subr.mxu0 %v2482
    %2679 = vmatpush1.msra.mxu0 %v2481
    %2680 = vmatprep.subr.mxu0 %v2486
    %2681 = vmatpush1.msra.mxu0 %v2485
    %2682 = vmatprep.subr.mxu0 %v2490
    %2683 = vmatpush1.msra.mxu0 %v2489
    %2684 = vmatprep.subr.mxu0 %v2494
    %2685 = vmatpush1.msra.mxu0 %v2493
    %2686 = vmatprep.subr.mxu0 %v2498
    %2687 = vmatpush1.msra.mxu0 %v2497
    %2688 = vmatprep.subr.mxu0 %v2502
    %2689 = vmatpush1.msra.mxu0 %v2501
    %2690 = vmatprep.subr.mxu0 %v2506
    %2691 = vmatpush1.msra.mxu0 %v2505
    %2692 = vmatprep.subr.mxu0 %v2510
    %2693 = vmatpush1.msra.mxu0 %v2509
    %2694 = vmatprep.subr.mxu0 %v2514
    %2695 = vmatpush1.msra.mxu0 %v2513
    %2696 = vmatprep.subr.mxu0 %v2518
    %2697 = vmatpush1.msra.mxu0 %v2517
    %2698 = vmatprep.subr.mxu0 %v2522
    %2699 = vmatpush1.msra.mxu0 %v2521
    %2700 = vmatprep.subr.mxu0 %v2526
    %2701 = vmatpush1.msra.mxu0 %v2525
    %2702 = vmatprep.subr.mxu0 %v2530
    %2703 = vmatpush1.msra.mxu0 %v2529
    %2704 = vmatprep.subr.mxu0 %v2534
    %2705 = vmatpush1.msra.mxu0 %v2533
    %2706 = vmatprep.subr.mxu0 %v2538
    %2707 = vmatpush1.msra.mxu0 %v2537
    %2708 = vmatprep.subr.mxu0 %v2542
    %2709 = vmatpush1.msra.mxu0 %v2541
    %2710 = vmatprep.subr.mxu0 0.0
    %2711 = vmatpush1.msra.mxu0 0.0
    %2712 = vmatprep.subr.mxu0 0.0
    %2713 = vmatpush1.msra.mxu0 0.0
    %2714 = vmatprep.subr.mxu0 0.0
    %2715 = vmatpush1.msra.mxu0 0.0
    %2716 = vmatprep.subr.mxu0 0.0
    %2717 = vmatpush1.msra.mxu0 0.0
    %2718 = vmatprep.subr.mxu0 0.0
    %2719 = vmatpush1.msra.mxu0 0.0
    %2720 = vmatprep.subr.mxu0 0.0
    %2721 = vmatpush1.msra.mxu0 0.0
    %2722 = vmatprep.subr.mxu0 0.0
    %2723 = vmatpush1.msra.mxu0 0.0
    %2724 = vmatprep.subr.mxu0 0.0
    %2725 = vmatpush1.msra.mxu0 0.0
    %2726 = vmatprep.subr.mxu0 0.0
    %2727 = vmatpush1.msra.mxu0 0.0
    %2728 = vmatprep.subr.mxu0 0.0
    %2729 = vmatpush1.msra.mxu0 0.0
    %2730 = vmatprep.subr.mxu0 0.0
    %2731 = vmatpush1.msra.mxu0 0.0
    %2732 = vmatprep.subr.mxu0 0.0
    %2733 = vmatpush1.msra.mxu0 0.0
    %2734 = vmatprep.subr.mxu0 0.0
    %2735 = vmatpush1.msra.mxu0 0.0
    %2736 = vmatprep.subr.mxu0 0.0
    %2737 = vmatpush1.msra.mxu0 0.0
    %2738 = vmatprep.subr.mxu0 0.0
    %2739 = vmatpush1.msra.mxu0 0.0
    %2740 = vmatprep.subr.mxu0 0.0
    %2741 = vmatpush1.msra.mxu0 0.0
    %2742 = vmatprep.mubr.f32.mxu0 0.0
    %2743 = vmatmul.mubr.f32.gmra.mrb[0].mxu0 %v2471
    %v2744 = vpop.f32.mrb[0].mxu0
    %v2745 = vadd.f32 %v2556, %v2744
    %v2746 = vpop.f32.mrb[0].mxu0
    %v2747 = vadd.f32 %v2560, %v2746
    %2748 = vmatprep.mubr.f32.mxu0 0.0
    %2749 = vmatmul.mubr.f32.gmra.mrb[0].mxu0 %v2472
    %v2750 = vpop.f32.mrb[0].mxu0
    %v2751 = vadd.f32 %v2556, %v2750
    %v2752 = vpop.f32.mrb[0].mxu0
    %v2753 = vadd.f32 %v2560, %v2752
    %2754 = vmatprep.mubr.f32.mxu0 0.0
    %2755 = vmatmul.mubr.f32.gmra.mrb[0].mxu0 %v2473
    %v2756 = vpop.f32.mrb[0].mxu0
    %v2757 = vadd.f32 %v2556, %v2756
    %v2758 = vpop.f32.mrb[0].mxu0
    %v2759 = vadd.f32 %v2560, %v2758
    %2760 = vmatprep.mubr.f32.mxu0 0.0
    %2761 = vmatmul.mubr.f32.gmra.mrb[0].mxu0 %v2474
    %v2762 = vpop.f32.mrb[0].mxu0
    %v2763 = vadd.f32 %v2556, %v2762
    %v2764 = vpop.f32.mrb[0].mxu0
    %v2765 = vadd.f32 %v2560, %v2764
    %2766 = vmatprep.mubr.f32.mxu0 0.0
    %2767 = vmatmul.mubr.f32.gmra.mrb[0].mxu0 %v2475
    %v2768 = vpop.f32.mrb[0].mxu0
    %v2769 = vadd.f32 %v2556, %v2768
    %v2770 = vpop.f32.mrb[0].mxu0
    %v2771 = vadd.f32 %v2560, %v2770
    %2772 = vmatprep.mubr.f32.mxu0 0.0
    %2773 = vmatmul.mubr.f32.gmra.mrb[0].mxu0 %v2476
    %v2774 = vpop.f32.mrb[0].mxu0
    %v2775 = vadd.f32 %v2556, %v2774
    %v2776 = vpop.f32.mrb[0].mxu0
    %v2777 = vadd.f32 %v2560, %v2776
    %2778 = vmatprep.mubr.f32.mxu0 0.0
    %2779 = vmatmul.mubr.f32.gmra.mrb[0].mxu0 %v2477
    %v2780 = vpop.f32.mrb[0].mxu0
    %v2781 = vadd.f32 %v2556, %v2780
    %v2782 = vpop.f32.mrb[0].mxu0
    %v2783 = vadd.f32 %v2560, %v2782
    %2784 = vmatprep.mubr.f32.mxu0 0.0
    %2785 = vmatmul.mubr.f32.gmra.mrb[0].mxu0 %v2478
    %v2786 = vpop.f32.mrb[0].mxu0
    %v2787 = vadd.f32 %v2556, %v2786
    %v2788 = vpop.f32.mrb[0].mxu0
    %v2789 = vadd.f32 %v2560, %v2788
    %2790 = vdwg.mxu0
    %v2791 = vld [vmem:[#allocation8] sm:$0xff]
    %v2792 = vld [vmem:[#allocation8 + $0x8] sm:$0xff]
    %v2793 = vld [vmem:[#allocation8 + $0x10] sm:$0xff]
    %v2794 = vld [vmem:[#allocation8 + $0x18] sm:$0xff]
    %v2795 = vld [vmem:[#allocation8 + $0x20] sm:$0xff]
    %v2796 = vld [vmem:[#allocation8 + $0x28] sm:$0xff]
    %v2797 = vld [vmem:[#allocation8 + $0x30] sm:$0xff]
    %v2798 = vld [vmem:[#allocation8 + $0x38] sm:$0xff]
    %v2799 = vld [vmem:[#allocation8 + $0x40] sm:$0xff]
    %v2800 = vld [vmem:[#allocation8 + $0x48] sm:$0xff]
    %v2801 = vld [vmem:[#allocation8 + $0x50] sm:$0xff]
    %v2802 = vld [vmem:[#allocation8 + $0x58] sm:$0xff]
    %v2803 = vld [vmem:[#allocation8 + $0x60] sm:$0xff]
    %v2804 = vld [vmem:[#allocation8 + $0x68] sm:$0xff]
    %v2805 = vld [vmem:[#allocation8 + $0x70] sm:$0xff]
    %v2806 = vld [vmem:[#allocation8 + $0x78] sm:$0xff]
    %v2807 = vld [vmem:[#allocation8 + $0x80] sm:$0xff]
    %v2808 = vld [vmem:[#allocation8 + $0x88] sm:$0xff]
    %v2809 = vld [vmem:[#allocation8 + $0x90] sm:$0xff]
    %v2810 = vld [vmem:[#allocation8 + $0x98] sm:$0xff]
    %v2811 = vld [vmem:[#allocation8 + $0xa0] sm:$0xff]
    %v2812 = vld [vmem:[#allocation8 + $0xa8] sm:$0xff]
    %v2813 = vld [vmem:[#allocation8 + $0xb0] sm:$0xff]
    %v2814 = vld [vmem:[#allocation8 + $0xb8] sm:$0xff]
    %v2815 = vld [vmem:[#allocation8 + $0xc0] sm:$0xff]
    %v2816 = vld [vmem:[#allocation8 + $0xc8] sm:$0xff]
    %v2817 = vld [vmem:[#allocation8 + $0xd0] sm:$0xff]
    %v2818 = vld [vmem:[#allocation8 + $0xd8] sm:$0xff]
    %v2819 = vld [vmem:[#allocation8 + $0xe0] sm:$0xff]
    %v2820 = vld [vmem:[#allocation8 + $0xe8] sm:$0xff]
    %v2821 = vld [vmem:[#allocation8 + $0xf0] sm:$0xff]
    %v2822 = vld [vmem:[#allocation8 + $0xf8] sm:$0xff]
    %v2823 = vld [vmem:[#allocation8 + $0x100] sm:$0xff]
    %v2824 = vld [vmem:[#allocation8 + $0x108] sm:$0xff]
    %v2825 = vld [vmem:[#allocation8 + $0x110] sm:$0xff]
    %v2826 = vld [vmem:[#allocation8 + $0x118] sm:$0xff]
    %v2827 = vld [vmem:[#allocation8 + $0x120] sm:$0xff]
    %v2828 = vld [vmem:[#allocation8 + $0x128] sm:$0xff]
    %v2829 = vld [vmem:[#allocation8 + $0x130] sm:$0xff]
    %v2830 = vld [vmem:[#allocation8 + $0x138] sm:$0xff]
    %v2831 = vld [vmem:[#allocation8 + $0x140] sm:$0xff]
    %v2832 = vld [vmem:[#allocation8 + $0x148] sm:$0xff]
    %v2833 = vld [vmem:[#allocation8 + $0x150] sm:$0xff]
    %v2834 = vld [vmem:[#allocation8 + $0x158] sm:$0xff]
    %v2835 = vld [vmem:[#allocation8 + $0x160] sm:$0xff]
    %v2836 = vld [vmem:[#allocation8 + $0x168] sm:$0xff]
    %v2837 = vld [vmem:[#allocation8 + $0x170] sm:$0xff]
    %v2838 = vld [vmem:[#allocation8 + $0x178] sm:$0xff]
    %v2839 = vld [vmem:[#allocation8 + $0x180] sm:$0xff]
    %v2840 = vld [vmem:[#allocation8 + $0x188] sm:$0xff]
    %v2841 = vld [vmem:[#allocation8 + $0x190] sm:$0xff]
    %v2842 = vld [vmem:[#allocation8 + $0x198] sm:$0xff]
    %v2843 = vld [vmem:[#allocation8 + $0x1a0] sm:$0xff]
    %v2844 = vld [vmem:[#allocation8 + $0x1a8] sm:$0xff]
    %v2845 = vld [vmem:[#allocation8 + $0x1b0] sm:$0xff]
    %v2846 = vld [vmem:[#allocation8 + $0x1b8] sm:$0xff]
    %v2847 = vld [vmem:[#allocation8 + $0x1c0] sm:$0xff]
    %v2848 = vld [vmem:[#allocation8 + $0x1c8] sm:$0xff]
    %v2849 = vld [vmem:[#allocation8 + $0x1d0] sm:$0xff]
    %v2850 = vld [vmem:[#allocation8 + $0x1d8] sm:$0xff]
    %v2851 = vld [vmem:[#allocation8 + $0x1e0] sm:$0xff]
    %v2852 = vld [vmem:[#allocation8 + $0x1e8] sm:$0xff]
    %v2853 = vld [vmem:[#allocation8 + $0x1f0] sm:$0xff]
    %v2854 = vld [vmem:[#allocation8 + $0x1f8] sm:$0xff]
    %2855 = vmatprep.subr.mxu0 %v2792
    %2856 = vmatpush1.msra.mxu0 %v2791
    %2857 = vmatprep.subr.mxu0 %v2796
    %2858 = vmatpush1.msra.mxu0 %v2795
    %2859 = vmatprep.subr.mxu0 %v2800
    %2860 = vmatpush1.msra.mxu0 %v2799
    %2861 = vmatprep.subr.mxu0 %v2804
    %2862 = vmatpush1.msra.mxu0 %v2803
    %2863 = vmatprep.subr.mxu0 %v2808
    %2864 = vmatpush1.msra.mxu0 %v2807
    %2865 = vmatprep.subr.mxu0 %v2812
    %2866 = vmatpush1.msra.mxu0 %v2811
    %2867 = vmatprep.subr.mxu0 %v2816
    %2868 = vmatpush1.msra.mxu0 %v2815
    %2869 = vmatprep.subr.mxu0 %v2820
    %2870 = vmatpush1.msra.mxu0 %v2819
    %2871 = vmatprep.subr.mxu0 %v2824
    %2872 = vmatpush1.msra.mxu0 %v2823
    %2873 = vmatprep.subr.mxu0 %v2828
    %2874 = vmatpush1.msra.mxu0 %v2827
    %2875 = vmatprep.subr.mxu0 %v2832
    %2876 = vmatpush1.msra.mxu0 %v2831
    %2877 = vmatprep.subr.mxu0 %v2836
    %2878 = vmatpush1.msra.mxu0 %v2835
    %2879 = vmatprep.subr.mxu0 %v2840
    %2880 = vmatpush1.msra.mxu0 %v2839
    %2881 = vmatprep.subr.mxu0 %v2844
    %2882 = vmatpush1.msra.mxu0 %v2843
    %2883 = vmatprep.subr.mxu0 %v2848
    %2884 = vmatpush1.msra.mxu0 %v2847
    %2885 = vmatprep.subr.mxu0 %v2852
    %2886 = vmatpush1.msra.mxu0 %v2851
    %2887 = vmatprep.subr.mxu0 0.0
    %2888 = vmatpush1.msra.mxu0 0.0
    %2889 = vmatprep.subr.mxu0 0.0
    %2890 = vmatpush1.msra.mxu0 0.0
    %2891 = vmatprep.subr.mxu0 0.0
    %2892 = vmatpush1.msra.mxu0 0.0
    %2893 = vmatprep.subr.mxu0 0.0
    %2894 = vmatpush1.msra.mxu0 0.0
    %2895 = vmatprep.subr.mxu0 0.0
    %2896 = vmatpush1.msra.mxu0 0.0
    %2897 = vmatprep.subr.mxu0 0.0
    %2898 = vmatpush1.msra.mxu0 0.0
    %2899 = vmatprep.subr.mxu0 0.0
    %2900 = vmatpush1.msra.mxu0 0.0
    %2901 = vmatprep.subr.mxu0 0.0
    %2902 = vmatpush1.msra.mxu0 0.0
    %2903 = vmatprep.subr.mxu0 0.0
    %2904 = vmatpush1.msra.mxu0 0.0
    %2905 = vmatprep.subr.mxu0 0.0
    %2906 = vmatpush1.msra.mxu0 0.0
    %2907 = vmatprep.subr.mxu0 0.0
    %2908 = vmatpush1.msra.mxu0 0.0
    %2909 = vmatprep.subr.mxu0 0.0
    %2910 = vmatpush1.msra.mxu0 0.0
    %2911 = vmatprep.subr.mxu0 0.0
    %2912 = vmatpush1.msra.mxu0 0.0
    %2913 = vmatprep.subr.mxu0 0.0
    %2914 = vmatpush1.msra.mxu0 0.0
    %2915 = vmatprep.subr.mxu0 0.0
    %2916 = vmatpush1.msra.mxu0 0.0
    %2917 = vmatprep.subr.mxu0 0.0
    %2918 = vmatpush1.msra.mxu0 0.0
    %2919 = vmatprep.mubr.f32.mxu0 0.0
    %2920 = vmatmul.mubr.f32.gmra.mrb[0].mxu0 %v2471
    %v2921 = vpop.f32.mrb[0].mxu0
    %v2922 = vadd.f32 0.0, %v2921
    %v2923 = vpop.f32.mrb[0].mxu0
    %v2924 = vadd.f32 0.0, %v2923
    %2925 = vmatprep.mubr.f32.mxu0 0.0
    %2926 = vmatmul.mubr.f32.gmra.mrb[0].mxu0 %v2472
    %v2927 = vpop.f32.mrb[0].mxu0
    %v2928 = vadd.f32 0.0, %v2927
    %v2929 = vpop.f32.mrb[0].mxu0
    %v2930 = vadd.f32 0.0, %v2929
    %2931 = vmatprep.mubr.f32.mxu0 0.0
    %2932 = vmatmul.mubr.f32.gmra.mrb[0].mxu0 %v2473
    %v2933 = vpop.f32.mrb[0].mxu0
    %v2934 = vadd.f32 0.0, %v2933
    %v2935 = vpop.f32.mrb[0].mxu0
    %v2936 = vadd.f32 0.0, %v2935
    %2937 = vmatprep.mubr.f32.mxu0 0.0
    %2938 = vmatmul.mubr.f32.gmra.mrb[0].mxu0 %v2474
    %v2939 = vpop.f32.mrb[0].mxu0
    %v2940 = vadd.f32 0.0, %v2939
    %v2941 = vpop.f32.mrb[0].mxu0
    %v2942 = vadd.f32 0.0, %v2941
    %2943 = vmatprep.mubr.f32.mxu0 0.0
    %2944 = vmatmul.mubr.f32.gmra.mrb[0].mxu0 %v2475
    %v2945 = vpop.f32.mrb[0].mxu0
    %v2946 = vadd.f32 0.0, %v2945
    %v2947 = vpop.f32.mrb[0].mxu0
    %v2948 = vadd.f32 0.0, %v2947
    %2949 = vmatprep.mubr.f32.mxu0 0.0
    %2950 = vmatmul.mubr.f32.gmra.mrb[0].mxu0 %v2476
    %v2951 = vpop.f32.mrb[0].mxu0
    %v2952 = vadd.f32 0.0, %v2951
    %v2953 = vpop.f32.mrb[0].mxu0
    %v2954 = vadd.f32 0.0, %v2953
    %2955 = vmatprep.mubr.f32.mxu0 0.0
    %2956 = vmatmul.mubr.f32.gmra.mrb[0].mxu0 %v2477
    %v2957 = vpop.f32.mrb[0].mxu0
    %v2958 = vadd.f32 0.0, %v2957
    %v2959 = vpop.f32.mrb[0].mxu0
    %v2960 = vadd.f32 0.0, %v2959
    %2961 = vmatprep.mubr.f32.mxu0 0.0
    %2962 = vmatmul.mubr.f32.gmra.mrb[0].mxu0 %v2478
    %v2963 = vpop.f32.mrb[0].mxu0
    %v2964 = vadd.f32 0.0, %v2963
    %v2965 = vpop.f32.mrb[0].mxu0
    %v2966 = vadd.f32 0.0, %v2965
    %2967 = vdwg.mxu0
    %2968 = vmatprep.subr.mxu0 %v2794
    %2969 = vmatpush1.msra.mxu0 %v2793
    %2970 = vmatprep.subr.mxu0 %v2798
    %2971 = vmatpush1.msra.mxu0 %v2797
    %2972 = vmatprep.subr.mxu0 %v2802
    %2973 = vmatpush1.msra.mxu0 %v2801
    %2974 = vmatprep.subr.mxu0 %v2806
    %2975 = vmatpush1.msra.mxu0 %v2805
    %2976 = vmatprep.subr.mxu0 %v2810
    %2977 = vmatpush1.msra.mxu0 %v2809
    %2978 = vmatprep.subr.mxu0 %v2814
    %2979 = vmatpush1.msra.mxu0 %v2813
    %2980 = vmatprep.subr.mxu0 %v2818
    %2981 = vmatpush1.msra.mxu0 %v2817
    %2982 = vmatprep.subr.mxu0 %v2822
    %2983 = vmatpush1.msra.mxu0 %v2821
    %2984 = vmatprep.subr.mxu0 %v2826
    %2985 = vmatpush1.msra.mxu0 %v2825
    %2986 = vmatprep.subr.mxu0 %v2830
    %2987 = vmatpush1.msra.mxu0 %v2829
    %2988 = vmatprep.subr.mxu0 %v2834
    %2989 = vmatpush1.msra.mxu0 %v2833
    %2990 = vmatprep.subr.mxu0 %v2838
    %2991 = vmatpush1.msra.mxu0 %v2837
    %2992 = vmatprep.subr.mxu0 %v2842
    %2993 = vmatpush1.msra.mxu0 %v2841
    %2994 = vmatprep.subr.mxu0 %v2846
    %2995 = vmatpush1.msra.mxu0 %v2845
    %2996 = vmatprep.subr.mxu0 %v2850
    %2997 = vmatpush1.msra.mxu0 %v2849
    %2998 = vmatprep.subr.mxu0 %v2854
    %2999 = vmatpush1.msra.mxu0 %v2853
    %3000 = vmatprep.subr.mxu0 0.0
    %3001 = vmatpush1.msra.mxu0 0.0
    %3002 = vmatprep.subr.mxu0 0.0
    %3003 = vmatpush1.msra.mxu0 0.0
    %3004 = vmatprep.subr.mxu0 0.0
    %3005 = vmatpush1.msra.mxu0 0.0
    %3006 = vmatprep.subr.mxu0 0.0
    %3007 = vmatpush1.msra.mxu0 0.0
    %3008 = vmatprep.subr.mxu0 0.0
    %3009 = vmatpush1.msra.mxu0 0.0
    %3010 = vmatprep.subr.mxu0 0.0
    %3011 = vmatpush1.msra.mxu0 0.0
    %3012 = vmatprep.subr.mxu0 0.0
    %3013 = vmatpush1.msra.mxu0 0.0
    %3014 = vmatprep.subr.mxu0 0.0
    %3015 = vmatpush1.msra.mxu0 0.0
    %3016 = vmatprep.subr.mxu0 0.0
    %3017 = vmatpush1.msra.mxu0 0.0
    %3018 = vmatprep.subr.mxu0 0.0
    %3019 = vmatpush1.msra.mxu0 0.0
    %3020 = vmatprep.subr.mxu0 0.0
    %3021 = vmatpush1.msra.mxu0 0.0
    %3022 = vmatprep.subr.mxu0 0.0
    %3023 = vmatpush1.msra.mxu0 0.0
    %3024 = vmatprep.subr.mxu0 0.0
    %3025 = vmatpush1.msra.mxu0 0.0
    %3026 = vmatprep.subr.mxu0 0.0
    %3027 = vmatpush1.msra.mxu0 0.0
    %3028 = vmatprep.subr.mxu0 0.0
    %3029 = vmatpush1.msra.mxu0 0.0
    %3030 = vmatprep.subr.mxu0 0.0
    %3031 = vmatpush1.msra.mxu0 0.0
    %3032 = vmatprep.mubr.f32.mxu0 0.0
    %3033 = vmatmul.mubr.f32.gmra.mrb[0].mxu0 %v2471
    %v3034 = vpop.f32.mrb[0].mxu0
    %v3035 = vadd.f32 0.0, %v3034
    %v3036 = vpop.f32.mrb[0].mxu0
    %v3037 = vadd.f32 0.0, %v3036
    %3038 = vmatprep.mubr.f32.mxu0 0.0
    %3039 = vmatmul.mubr.f32.gmra.mrb[0].mxu0 %v2472
    %v3040 = vpop.f32.mrb[0].mxu0
    %v3041 = vadd.f32 0.0, %v3040
    %v3042 = vpop.f32.mrb[0].mxu0
    %v3043 = vadd.f32 0.0, %v3042
    %3044 = vmatprep.mubr.f32.mxu0 0.0
    %3045 = vmatmul.mubr.f32.gmra.mrb[0].mxu0 %v2473
    %v3046 = vpop.f32.mrb[0].mxu0
    %v3047 = vadd.f32 0.0, %v3046
    %v3048 = vpop.f32.mrb[0].mxu0
    %v3049 = vadd.f32 0.0, %v3048
    %3050 = vmatprep.mubr.f32.mxu0 0.0
    %3051 = vmatmul.mubr.f32.gmra.mrb[0].mxu0 %v2474
    %v3052 = vpop.f32.mrb[0].mxu0
    %v3053 = vadd.f32 0.0, %v3052
    %v3054 = vpop.f32.mrb[0].mxu0
    %v3055 = vadd.f32 0.0, %v3054
    %3056 = vmatprep.mubr.f32.mxu0 0.0
    %3057 = vmatmul.mubr.f32.gmra.mrb[0].mxu0 %v2475
    %v3058 = vpop.f32.mrb[0].mxu0
    %v3059 = vadd.f32 0.0, %v3058
    %v3060 = vpop.f32.mrb[0].mxu0
    %v3061 = vadd.f32 0.0, %v3060
    %3062 = vmatprep.mubr.f32.mxu0 0.0
    %3063 = vmatmul.mubr.f32.gmra.mrb[0].mxu0 %v2476
    %v3064 = vpop.f32.mrb[0].mxu0
    %v3065 = vadd.f32 0.0, %v3064
    %v3066 = vpop.f32.mrb[0].mxu0
    %v3067 = vadd.f32 0.0, %v3066
    %3068 = vmatprep.mubr.f32.mxu0 0.0
    %3069 = vmatmul.mubr.f32.gmra.mrb[0].mxu0 %v2477
    %v3070 = vpop.f32.mrb[0].mxu0
    %v3071 = vadd.f32 0.0, %v3070
    %v3072 = vpop.f32.mrb[0].mxu0
    %v3073 = vadd.f32 0.0, %v3072
    %3074 = vmatprep.mubr.f32.mxu0 0.0
    %3075 = vmatmul.mubr.f32.gmra.mrb[0].mxu0 %v2478
    %v3076 = vpop.f32.mrb[0].mxu0
    %v3077 = vadd.f32 0.0, %v3076
    %v3078 = vpop.f32.mrb[0].mxu0
    %v3079 = vadd.f32 0.0, %v3078
    %3080 = vdwg.mxu0
    %v3081 = vld [vmem:[#allocation9] sm:$0xff]
    %v3082 = vld [vmem:[#allocation9 + $0x8] sm:$0xff]
    %v3083 = vld [vmem:[#allocation9 + $0x10] sm:$0xff]
    %v3084 = vld [vmem:[#allocation9 + $0x18] sm:$0xff]
    %v3085 = vld [vmem:[#allocation9 + $0x20] sm:$0xff]
    %v3086 = vld [vmem:[#allocation9 + $0x28] sm:$0xff]
    %v3087 = vld [vmem:[#allocation9 + $0x30] sm:$0xff]
    %v3088 = vld [vmem:[#allocation9 + $0x38] sm:$0xff]
    %v3089 = vld [vmem:[#allocation9 + $0x40] sm:$0xff]
    %v3090 = vld [vmem:[#allocation9 + $0x48] sm:$0xff]
    %v3091 = vld [vmem:[#allocation9 + $0x50] sm:$0xff]
    %v3092 = vld [vmem:[#allocation9 + $0x58] sm:$0xff]
    %v3093 = vld [vmem:[#allocation9 + $0x60] sm:$0xff]
    %v3094 = vld [vmem:[#allocation9 + $0x68] sm:$0xff]
    %v3095 = vld [vmem:[#allocation9 + $0x70] sm:$0xff]
    %v3096 = vld [vmem:[#allocation9 + $0x78] sm:$0xff]
    %v3097 = vld [vmem:[#allocation9 + $0x80] sm:$0xff]
    %v3098 = vld [vmem:[#allocation9 + $0x88] sm:$0xff]
    %v3099 = vld [vmem:[#allocation9 + $0x90] sm:$0xff]
    %v3100 = vld [vmem:[#allocation9 + $0x98] sm:$0xff]
    %v3101 = vld [vmem:[#allocation9 + $0xa0] sm:$0xff]
    %v3102 = vld [vmem:[#allocation9 + $0xa8] sm:$0xff]
    %v3103 = vld [vmem:[#allocation9 + $0xb0] sm:$0xff]
    %v3104 = vld [vmem:[#allocation9 + $0xb8] sm:$0xff]
    %v3105 = vld [vmem:[#allocation9 + $0xc0] sm:$0xff]
    %v3106 = vld [vmem:[#allocation9 + $0xc8] sm:$0xff]
    %v3107 = vld [vmem:[#allocation9 + $0xd0] sm:$0xff]
    %v3108 = vld [vmem:[#allocation9 + $0xd8] sm:$0xff]
    %v3109 = vld [vmem:[#allocation9 + $0xe0] sm:$0xff]
    %v3110 = vld [vmem:[#allocation9 + $0xe8] sm:$0xff]
    %v3111 = vld [vmem:[#allocation9 + $0xf0] sm:$0xff]
    %v3112 = vld [vmem:[#allocation9 + $0xf8] sm:$0xff]
    %v3113 = vld [vmem:[#allocation9 + $0x100] sm:$0xff]
    %v3114 = vld [vmem:[#allocation9 + $0x108] sm:$0xff]
    %v3115 = vld [vmem:[#allocation9 + $0x110] sm:$0xff]
    %v3116 = vld [vmem:[#allocation9 + $0x118] sm:$0xff]
    %v3117 = vld [vmem:[#allocation9 + $0x120] sm:$0xff]
    %v3118 = vld [vmem:[#allocation9 + $0x128] sm:$0xff]
    %v3119 = vld [vmem:[#allocation9 + $0x130] sm:$0xff]
    %v3120 = vld [vmem:[#allocation9 + $0x138] sm:$0xff]
    %v3121 = vld [vmem:[#allocation9 + $0x140] sm:$0xff]
    %v3122 = vld [vmem:[#allocation9 + $0x148] sm:$0xff]
    %v3123 = vld [vmem:[#allocation9 + $0x150] sm:$0xff]
    %v3124 = vld [vmem:[#allocation9 + $0x158] sm:$0xff]
    %v3125 = vld [vmem:[#allocation9 + $0x160] sm:$0xff]
    %v3126 = vld [vmem:[#allocation9 + $0x168] sm:$0xff]
    %v3127 = vld [vmem:[#allocation9 + $0x170] sm:$0xff]
    %v3128 = vld [vmem:[#allocation9 + $0x178] sm:$0xff]
    %v3129 = vld [vmem:[#allocation9 + $0x180] sm:$0xff]
    %v3130 = vld [vmem:[#allocation9 + $0x188] sm:$0xff]
    %v3131 = vld [vmem:[#allocation9 + $0x190] sm:$0xff]
    %v3132 = vld [vmem:[#allocation9 + $0x198] sm:$0xff]
    %v3133 = vld [vmem:[#allocation9 + $0x1a0] sm:$0xff]
    %v3134 = vld [vmem:[#allocation9 + $0x1a8] sm:$0xff]
    %v3135 = vld [vmem:[#allocation9 + $0x1b0] sm:$0xff]
    %v3136 = vld [vmem:[#allocation9 + $0x1b8] sm:$0xff]
    %v3137 = vld [vmem:[#allocation9 + $0x1c0] sm:$0xff]
    %v3138 = vld [vmem:[#allocation9 + $0x1c8] sm:$0xff]
    %v3139 = vld [vmem:[#allocation9 + $0x1d0] sm:$0xff]
    %v3140 = vld [vmem:[#allocation9 + $0x1d8] sm:$0xff]
    %v3141 = vld [vmem:[#allocation9 + $0x1e0] sm:$0xff]
    %v3142 = vld [vmem:[#allocation9 + $0x1e8] sm:$0xff]
    %v3143 = vld [vmem:[#allocation9 + $0x1f0] sm:$0xff]
    %v3144 = vld [vmem:[#allocation9 + $0x1f8] sm:$0xff]
    %v3145 = vadd.f32 %v2632, %v2964
    %v3146 = vadd.f32 %v2634, %v2966
    %v3147 = vadd.f32 %v2745, %v3077
    %v3148 = vadd.f32 %v2747, %v3079
    %3149 = vmatprep.subr.mxu0 %v3082
    %3150 = vmatpush1.msra.mxu0 %v3081
    %3151 = vmatprep.subr.mxu0 %v3086
    %3152 = vmatpush1.msra.mxu0 %v3085
    %3153 = vmatprep.subr.mxu0 %v3090
    %3154 = vmatpush1.msra.mxu0 %v3089
    %3155 = vmatprep.subr.mxu0 %v3094
    %3156 = vmatpush1.msra.mxu0 %v3093
    %3157 = vmatprep.subr.mxu0 %v3098
    %3158 = vmatpush1.msra.mxu0 %v3097
    %3159 = vmatprep.subr.mxu0 %v3102
    %3160 = vmatpush1.msra.mxu0 %v3101
    %3161 = vmatprep.subr.mxu0 %v3106
    %3162 = vmatpush1.msra.mxu0 %v3105
    %3163 = vmatprep.subr.mxu0 %v3110
    %3164 = vmatpush1.msra.mxu0 %v3109
    %3165 = vmatprep.subr.mxu0 %v3114
    %3166 = vmatpush1.msra.mxu0 %v3113
    %3167 = vmatprep.subr.mxu0 %v3118
    %3168 = vmatpush1.msra.mxu0 %v3117
    %3169 = vmatprep.subr.mxu0 %v3122
    %3170 = vmatpush1.msra.mxu0 %v3121
    %3171 = vmatprep.subr.mxu0 %v3126
    %3172 = vmatpush1.msra.mxu0 %v3125
    %3173 = vmatprep.subr.mxu0 %v3130
    %3174 = vmatpush1.msra.mxu0 %v3129
    %3175 = vmatprep.subr.mxu0 %v3134
    %3176 = vmatpush1.msra.mxu0 %v3133
    %3177 = vmatprep.subr.mxu0 %v3138
    %3178 = vmatpush1.msra.mxu0 %v3137
    %3179 = vmatprep.subr.mxu0 %v3142
    %3180 = vmatpush1.msra.mxu0 %v3141
    %3181 = vmatprep.subr.mxu0 0.0
    %3182 = vmatpush1.msra.mxu0 0.0
    %3183 = vmatprep.subr.mxu0 0.0
    %3184 = vmatpush1.msra.mxu0 0.0
    %3185 = vmatprep.subr.mxu0 0.0
    %3186 = vmatpush1.msra.mxu0 0.0
    %3187 = vmatprep.subr.mxu0 0.0
    %3188 = vmatpush1.msra.mxu0 0.0
    %3189 = vmatprep.subr.mxu0 0.0
    %3190 = vmatpush1.msra.mxu0 0.0
    %3191 = vmatprep.subr.mxu0 0.0
    %3192 = vmatpush1.msra.mxu0 0.0
    %3193 = vmatprep.subr.mxu0 0.0
    %3194 = vmatpush1.msra.mxu0 0.0
    %3195 = vmatprep.subr.mxu0 0.0
    %3196 = vmatpush1.msra.mxu0 0.0
    %3197 = vmatprep.subr.mxu0 0.0
    %3198 = vmatpush1.msra.mxu0 0.0
    %3199 = vmatprep.subr.mxu0 0.0
    %3200 = vmatpush1.msra.mxu0 0.0
    %3201 = vmatprep.subr.mxu0 0.0
    %3202 = vmatpush1.msra.mxu0 0.0
    %3203 = vmatprep.subr.mxu0 0.0
    %3204 = vmatpush1.msra.mxu0 0.0
    %3205 = vmatprep.subr.mxu0 0.0
    %3206 = vmatpush1.msra.mxu0 0.0
    %3207 = vmatprep.subr.mxu0 0.0
    %3208 = vmatpush1.msra.mxu0 0.0
    %3209 = vmatprep.subr.mxu0 0.0
    %3210 = vmatpush1.msra.mxu0 0.0
    %3211 = vmatprep.subr.mxu0 0.0
    %3212 = vmatpush1.msra.mxu0 0.0
    %3213 = vmatprep.mubr.f32.mxu0 0.0
    %3214 = vmatmul.mubr.f32.gmra.mrb[0].mxu0 0.0
    %v3215 = vpop.f32.mrb[0].mxu0
    %v3216 = vadd.f32 0.0, %v3215
    %v3217 = vpop.f32.mrb[0].mxu0
    %v3218 = vadd.f32 0.0, %v3217
    %3219 = vdwg.mxu0
    %3220 = vmatprep.subr.mxu0 %v3084
    %3221 = vmatpush1.msra.mxu0 %v3083
    %3222 = vmatprep.subr.mxu0 %v3088
    %3223 = vmatpush1.msra.mxu0 %v3087
    %3224 = vmatprep.subr.mxu0 %v3092
    %3225 = vmatpush1.msra.mxu0 %v3091
    %3226 = vmatprep.subr.mxu0 %v3096
    %3227 = vmatpush1.msra.mxu0 %v3095
    %3228 = vmatprep.subr.mxu0 %v3100
    %3229 = vmatpush1.msra.mxu0 %v3099
    %3230 = vmatprep.subr.mxu0 %v3104
    %3231 = vmatpush1.msra.mxu0 %v3103
    %3232 = vmatprep.subr.mxu0 %v3108
    %3233 = vmatpush1.msra.mxu0 %v3107
    %3234 = vmatprep.subr.mxu0 %v3112
    %3235 = vmatpush1.msra.mxu0 %v3111
    %3236 = vmatprep.subr.mxu0 %v3116
    %3237 = vmatpush1.msra.mxu0 %v3115
    %3238 = vmatprep.subr.mxu0 %v3120
    %3239 = vmatpush1.msra.mxu0 %v3119
    %3240 = vmatprep.subr.mxu0 %v3124
    %3241 = vmatpush1.msra.mxu0 %v3123
    %3242 = vmatprep.subr.mxu0 %v3128
    %3243 = vmatpush1.msra.mxu0 %v3127
    %3244 = vmatprep.subr.mxu0 %v3132
    %3245 = vmatpush1.msra.mxu0 %v3131
    %3246 = vmatprep.subr.mxu0 %v3136
    %3247 = vmatpush1.msra.mxu0 %v3135
    %3248 = vmatprep.subr.mxu0 %v3140
    %3249 = vmatpush1.msra.mxu0 %v3139
    %3250 = vmatprep.subr.mxu0 %v3144
    %3251 = vmatpush1.msra.mxu0 %v3143
    %3252 = vmatprep.subr.mxu0 0.0
    %3253 = vmatpush1.msra.mxu0 0.0
    %3254 = vmatprep.subr.mxu0 0.0
    %3255 = vmatpush1.msra.mxu0 0.0
    %3256 = vmatprep.subr.mxu0 0.0
    %3257 = vmatpush1.msra.mxu0 0.0
    %3258 = vmatprep.subr.mxu0 0.0
    %3259 = vmatpush1.msra.mxu0 0.0
    %3260 = vmatprep.subr.mxu0 0.0
    %3261 = vmatpush1.msra.mxu0 0.0
    %3262 = vmatprep.subr.mxu0 0.0
    %3263 = vmatpush1.msra.mxu0 0.0
    %3264 = vmatprep.subr.mxu0 0.0
    %3265 = vmatpush1.msra.mxu0 0.0
    %3266 = vmatprep.subr.mxu0 0.0
    %3267 = vmatpush1.msra.mxu0 0.0
    %3268 = vmatprep.subr.mxu0 0.0
    %3269 = vmatpush1.msra.mxu0 0.0
    %3270 = vmatprep.subr.mxu0 0.0
    %3271 = vmatpush1.msra.mxu0 0.0
    %3272 = vmatprep.subr.mxu0 0.0
    %3273 = vmatpush1.msra.mxu0 0.0
    %3274 = vmatprep.subr.mxu0 0.0
    %3275 = vmatpush1.msra.mxu0 0.0
    %3276 = vmatprep.subr.mxu0 0.0
    %3277 = vmatpush1.msra.mxu0 0.0
    %3278 = vmatprep.subr.mxu0 0.0
    %3279 = vmatpush1.msra.mxu0 0.0
    %3280 = vmatprep.subr.mxu0 0.0
    %3281 = vmatpush1.msra.mxu0 0.0
    %3282 = vmatprep.subr.mxu0 0.0
    %3283 = vmatpush1.msra.mxu0 0.0
    %3284 = vmatprep.mubr.f32.mxu0 0.0
    %3285 = vmatmul.mubr.f32.gmra.mrb[0].mxu0 0.0
    %v3286 = vpop.f32.mrb[0].mxu0
    %v3287 = vadd.f32 0.0, %v3286
    %v3288 = vpop.f32.mrb[0].mxu0
    %v3289 = vadd.f32 0.0, %v3288
    %3290 = vdwg.mxu0
    %v3291 = vadd.f32 %v3145, %v3216
    %v3292 = vadd.f32 %v3146, %v3218
    %v3293 = vadd.f32 %v3147, %v3287
    %v3294 = vadd.f32 %v3148, %v3289
    %v3295 = vxor.u32 %v3291, 2147483648
    %v3296 = vmul.f32 %v3295, 1.442695
    %v3297 = vpow.pop %v3296
    %v3298 = vadd.f32 %v3297, 1.0
    %v3299 = vrcp.pop %v3298
    %v3300 = vmul.f32 1.0, %v3299
    %v3301 = vxor.u32 %v3292, 2147483648
    %v3302 = vmul.f32 %v3301, 1.442695
    %v3303 = vpow.pop %v3302
    %v3304 = vadd.f32 %v3303, 1.0
    %v3305 = vrcp.pop %v3304
    %v3306 = vmul.f32 1.0, %v3305
    %v3307 = vtanh.pop %v3293
    %v3308 = vxor.u32 %v3294, 2147483648
    %v3309 = vmul.f32 %v3308, 1.442695
    %v3310 = vpow.pop %v3309
    %v3311 = vadd.f32 %v3310, 1.0
    %v3312 = vrcp.pop %v3311
    %v3313 = vmul.f32 1.0, %v3312
    %v3314 = vmul.f32 %v3306, 0.0
    %v3315 = vmul.f32 %v3300, %v3307
    %v3316 = vadd.f32 %v3314, %v3315
    %v3317 = vtanh.pop %v3316
    %v3318 = vmul.f32 %v3313, %v3317
    %3319 = vst.msk [vmem:[#allocation3] sm:$0xff] %vm128, %v3318
    %3320 = vst.msk [vmem:[#allocation3 + $0x38] sm:$0xff] %vm1237, %v3318
    %v3321 = vadd.f32 %v2638, %v2958
    %v3322 = vadd.f32 %v2640, %v2960
    %v3323 = vadd.f32 %v2751, %v3071
    %v3324 = vadd.f32 %v2753, %v3073
    %3325 = vmatprep.subr.mxu0 %v3082
    %3326 = vmatpush1.msra.mxu0 %v3081
    %3327 = vmatprep.subr.mxu0 %v3086
    %3328 = vmatpush1.msra.mxu0 %v3085
    %3329 = vmatprep.subr.mxu0 %v3090
    %3330 = vmatpush1.msra.mxu0 %v3089
    %3331 = vmatprep.subr.mxu0 %v3094
    %3332 = vmatpush1.msra.mxu0 %v3093
    %3333 = vmatprep.subr.mxu0 %v3098
    %3334 = vmatpush1.msra.mxu0 %v3097
    %3335 = vmatprep.subr.mxu0 %v3102
    %3336 = vmatpush1.msra.mxu0 %v3101
    %3337 = vmatprep.subr.mxu0 %v3106
    %3338 = vmatpush1.msra.mxu0 %v3105
    %3339 = vmatprep.subr.mxu0 %v3110
    %3340 = vmatpush1.msra.mxu0 %v3109
    %3341 = vmatprep.subr.mxu0 %v3114
    %3342 = vmatpush1.msra.mxu0 %v3113
    %3343 = vmatprep.subr.mxu0 %v3118
    %3344 = vmatpush1.msra.mxu0 %v3117
    %3345 = vmatprep.subr.mxu0 %v3122
    %3346 = vmatpush1.msra.mxu0 %v3121
    %3347 = vmatprep.subr.mxu0 %v3126
    %3348 = vmatpush1.msra.mxu0 %v3125
    %3349 = vmatprep.subr.mxu0 %v3130
    %3350 = vmatpush1.msra.mxu0 %v3129
    %3351 = vmatprep.subr.mxu0 %v3134
    %3352 = vmatpush1.msra.mxu0 %v3133
    %3353 = vmatprep.subr.mxu0 %v3138
    %3354 = vmatpush1.msra.mxu0 %v3137
    %3355 = vmatprep.subr.mxu0 %v3142
    %3356 = vmatpush1.msra.mxu0 %v3141
    %3357 = vmatprep.subr.mxu0 0.0
    %3358 = vmatpush1.msra.mxu0 0.0
    %3359 = vmatprep.subr.mxu0 0.0
    %3360 = vmatpush1.msra.mxu0 0.0
    %3361 = vmatprep.subr.mxu0 0.0
    %3362 = vmatpush1.msra.mxu0 0.0
    %3363 = vmatprep.subr.mxu0 0.0
    %3364 = vmatpush1.msra.mxu0 0.0
    %3365 = vmatprep.subr.mxu0 0.0
    %3366 = vmatpush1.msra.mxu0 0.0
    %3367 = vmatprep.subr.mxu0 0.0
    %3368 = vmatpush1.msra.mxu0 0.0
    %3369 = vmatprep.subr.mxu0 0.0
    %3370 = vmatpush1.msra.mxu0 0.0
    %3371 = vmatprep.subr.mxu0 0.0
    %3372 = vmatpush1.msra.mxu0 0.0
    %3373 = vmatprep.subr.mxu0 0.0
    %3374 = vmatpush1.msra.mxu0 0.0
    %3375 = vmatprep.subr.mxu0 0.0
    %3376 = vmatpush1.msra.mxu0 0.0
    %3377 = vmatprep.subr.mxu0 0.0
    %3378 = vmatpush1.msra.mxu0 0.0
    %3379 = vmatprep.subr.mxu0 0.0
    %3380 = vmatpush1.msra.mxu0 0.0
    %3381 = vmatprep.subr.mxu0 0.0
    %3382 = vmatpush1.msra.mxu0 0.0
    %3383 = vmatprep.subr.mxu0 0.0
    %3384 = vmatpush1.msra.mxu0 0.0
    %3385 = vmatprep.subr.mxu0 0.0
    %3386 = vmatpush1.msra.mxu0 0.0
    %3387 = vmatprep.subr.mxu0 0.0
    %3388 = vmatpush1.msra.mxu0 0.0
    %3389 = vmatprep.mubr.f32.mxu0 0.0
    %3390 = vmatmul.mubr.f32.gmra.mrb[0].mxu0 %v3318
    %v3391 = vpop.f32.mrb[0].mxu0
    %v3392 = vadd.f32 0.0, %v3391
    %v3393 = vpop.f32.mrb[0].mxu0
    %v3394 = vadd.f32 0.0, %v3393
    %3395 = vdwg.mxu0
    %3396 = vmatprep.subr.mxu0 %v3084
    %3397 = vmatpush1.msra.mxu0 %v3083
    %3398 = vmatprep.subr.mxu0 %v3088
    %3399 = vmatpush1.msra.mxu0 %v3087
    %3400 = vmatprep.subr.mxu0 %v3092
    %3401 = vmatpush1.msra.mxu0 %v3091
    %3402 = vmatprep.subr.mxu0 %v3096
    %3403 = vmatpush1.msra.mxu0 %v3095
    %3404 = vmatprep.subr.mxu0 %v3100
    %3405 = vmatpush1.msra.mxu0 %v3099
    %3406 = vmatprep.subr.mxu0 %v3104
    %3407 = vmatpush1.msra.mxu0 %v3103
    %3408 = vmatprep.subr.mxu0 %v3108
    %3409 = vmatpush1.msra.mxu0 %v3107
    %3410 = vmatprep.subr.mxu0 %v3112
    %3411 = vmatpush1.msra.mxu0 %v3111
    %3412 = vmatprep.subr.mxu0 %v3116
    %3413 = vmatpush1.msra.mxu0 %v3115
    %3414 = vmatprep.subr.mxu0 %v3120
    %3415 = vmatpush1.msra.mxu0 %v3119
    %3416 = vmatprep.subr.mxu0 %v3124
    %3417 = vmatpush1.msra.mxu0 %v3123
    %3418 = vmatprep.subr.mxu0 %v3128
    %3419 = vmatpush1.msra.mxu0 %v3127
    %3420 = vmatprep.subr.mxu0 %v3132
    %3421 = vmatpush1.msra.mxu0 %v3131
    %3422 = vmatprep.subr.mxu0 %v3136
    %3423 = vmatpush1.msra.mxu0 %v3135
    %3424 = vmatprep.subr.mxu0 %v3140
    %3425 = vmatpush1.msra.mxu0 %v3139
    %3426 = vmatprep.subr.mxu0 %v3144
    %3427 = vmatpush1.msra.mxu0 %v3143
    %3428 = vmatprep.subr.mxu0 0.0
    %3429 = vmatpush1.msra.mxu0 0.0
    %3430 = vmatprep.subr.mxu0 0.0
    %3431 = vmatpush1.msra.mxu0 0.0
    %3432 = vmatprep.subr.mxu0 0.0
    %3433 = vmatpush1.msra.mxu0 0.0
    %3434 = vmatprep.subr.mxu0 0.0
    %3435 = vmatpush1.msra.mxu0 0.0
    %3436 = vmatprep.subr.mxu0 0.0
    %3437 = vmatpush1.msra.mxu0 0.0
    %3438 = vmatprep.subr.mxu0 0.0
    %3439 = vmatpush1.msra.mxu0 0.0
    %3440 = vmatprep.subr.mxu0 0.0
    %3441 = vmatpush1.msra.mxu0 0.0
    %3442 = vmatprep.subr.mxu0 0.0
    %3443 = vmatpush1.msra.mxu0 0.0
    %3444 = vmatprep.subr.mxu0 0.0
    %3445 = vmatpush1.msra.mxu0 0.0
    %3446 = vmatprep.subr.mxu0 0.0
    %3447 = vmatpush1.msra.mxu0 0.0
    %3448 = vmatprep.subr.mxu0 0.0
    %3449 = vmatpush1.msra.mxu0 0.0
    %3450 = vmatprep.subr.mxu0 0.0
    %3451 = vmatpush1.msra.mxu0 0.0
    %3452 = vmatprep.subr.mxu0 0.0
    %3453 = vmatpush1.msra.mxu0 0.0
    %3454 = vmatprep.subr.mxu0 0.0
    %3455 = vmatpush1.msra.mxu0 0.0
    %3456 = vmatprep.subr.mxu0 0.0
    %3457 = vmatpush1.msra.mxu0 0.0
    %3458 = vmatprep.subr.mxu0 0.0
    %3459 = vmatpush1.msra.mxu0 0.0
    %3460 = vmatprep.mubr.f32.mxu0 0.0
    %3461 = vmatmul.mubr.f32.gmra.mrb[0].mxu0 %v3318
    %v3462 = vpop.f32.mrb[0].mxu0
    %v3463 = vadd.f32 0.0, %v3462
    %v3464 = vpop.f32.mrb[0].mxu0
    %v3465 = vadd.f32 0.0, %v3464
    %3466 = vdwg.mxu0
    %v3467 = vadd.f32 %v3321, %v3392
    %v3468 = vadd.f32 %v3322, %v3394
    %v3469 = vadd.f32 %v3323, %v3463
    %v3470 = vadd.f32 %v3324, %v3465
    %v3471 = vxor.u32 %v3467, 2147483648
    %v3472 = vmul.f32 %v3471, 1.442695
    %v3473 = vpow.pop %v3472
    %v3474 = vadd.f32 %v3473, 1.0
    %v3475 = vrcp.pop %v3474
    %v3476 = vmul.f32 1.0, %v3475
    %v3477 = vxor.u32 %v3468, 2147483648
    %v3478 = vmul.f32 %v3477, 1.442695
    %v3479 = vpow.pop %v3478
    %v3480 = vadd.f32 %v3479, 1.0
    %v3481 = vrcp.pop %v3480
    %v3482 = vmul.f32 1.0, %v3481
    %v3483 = vtanh.pop %v3469
    %v3484 = vxor.u32 %v3470, 2147483648
    %v3485 = vmul.f32 %v3484, 1.442695
    %v3486 = vpow.pop %v3485
    %v3487 = vadd.f32 %v3486, 1.0
    %v3488 = vrcp.pop %v3487
    %v3489 = vmul.f32 1.0, %v3488
    %v3490 = vmul.f32 %v3482, %v3316
    %v3491 = vmul.f32 %v3476, %v3483
    %v3492 = vadd.f32 %v3490, %v3491
    %v3493 = vtanh.pop %v3492
    %v3494 = vmul.f32 %v3489, %v3493
    %3495 = vst.msk [vmem:[#allocation3 + $0x8] sm:$0xff] %vm128, %v3494
    %3496 = vst.msk [vmem:[#allocation3 + $0x30] sm:$0xff] %vm1237, %v3494
    %v3497 = vadd.f32 %v2644, %v2952
    %v3498 = vadd.f32 %v2646, %v2954
    %v3499 = vadd.f32 %v2757, %v3065
    %v3500 = vadd.f32 %v2759, %v3067
    %3501 = vmatprep.subr.mxu0 %v3082
    %3502 = vmatpush1.msra.mxu0 %v3081
    %3503 = vmatprep.subr.mxu0 %v3086
    %3504 = vmatpush1.msra.mxu0 %v3085
    %3505 = vmatprep.subr.mxu0 %v3090
    %3506 = vmatpush1.msra.mxu0 %v3089
    %3507 = vmatprep.subr.mxu0 %v3094
    %3508 = vmatpush1.msra.mxu0 %v3093
    %3509 = vmatprep.subr.mxu0 %v3098
    %3510 = vmatpush1.msra.mxu0 %v3097
    %3511 = vmatprep.subr.mxu0 %v3102
    %3512 = vmatpush1.msra.mxu0 %v3101
    %3513 = vmatprep.subr.mxu0 %v3106
    %3514 = vmatpush1.msra.mxu0 %v3105
    %3515 = vmatprep.subr.mxu0 %v3110
    %3516 = vmatpush1.msra.mxu0 %v3109
    %3517 = vmatprep.subr.mxu0 %v3114
    %3518 = vmatpush1.msra.mxu0 %v3113
    %3519 = vmatprep.subr.mxu0 %v3118
    %3520 = vmatpush1.msra.mxu0 %v3117
    %3521 = vmatprep.subr.mxu0 %v3122
    %3522 = vmatpush1.msra.mxu0 %v3121
    %3523 = vmatprep.subr.mxu0 %v3126
    %3524 = vmatpush1.msra.mxu0 %v3125
    %3525 = vmatprep.subr.mxu0 %v3130
    %3526 = vmatpush1.msra.mxu0 %v3129
    %3527 = vmatprep.subr.mxu0 %v3134
    %3528 = vmatpush1.msra.mxu0 %v3133
    %3529 = vmatprep.subr.mxu0 %v3138
    %3530 = vmatpush1.msra.mxu0 %v3137
    %3531 = vmatprep.subr.mxu0 %v3142
    %3532 = vmatpush1.msra.mxu0 %v3141
    %3533 = vmatprep.subr.mxu0 0.0
    %3534 = vmatpush1.msra.mxu0 0.0
    %3535 = vmatprep.subr.mxu0 0.0
    %3536 = vmatpush1.msra.mxu0 0.0
    %3537 = vmatprep.subr.mxu0 0.0
    %3538 = vmatpush1.msra.mxu0 0.0
    %3539 = vmatprep.subr.mxu0 0.0
    %3540 = vmatpush1.msra.mxu0 0.0
    %3541 = vmatprep.subr.mxu0 0.0
    %3542 = vmatpush1.msra.mxu0 0.0
    %3543 = vmatprep.subr.mxu0 0.0
    %3544 = vmatpush1.msra.mxu0 0.0
    %3545 = vmatprep.subr.mxu0 0.0
    %3546 = vmatpush1.msra.mxu0 0.0
    %3547 = vmatprep.subr.mxu0 0.0
    %3548 = vmatpush1.msra.mxu0 0.0
    %3549 = vmatprep.subr.mxu0 0.0
    %3550 = vmatpush1.msra.mxu0 0.0
    %3551 = vmatprep.subr.mxu0 0.0
    %3552 = vmatpush1.msra.mxu0 0.0
    %3553 = vmatprep.subr.mxu0 0.0
    %3554 = vmatpush1.msra.mxu0 0.0
    %3555 = vmatprep.subr.mxu0 0.0
    %3556 = vmatpush1.msra.mxu0 0.0
    %3557 = vmatprep.subr.mxu0 0.0
    %3558 = vmatpush1.msra.mxu0 0.0
    %3559 = vmatprep.subr.mxu0 0.0
    %3560 = vmatpush1.msra.mxu0 0.0
    %3561 = vmatprep.subr.mxu0 0.0
    %3562 = vmatpush1.msra.mxu0 0.0
    %3563 = vmatprep.subr.mxu0 0.0
    %3564 = vmatpush1.msra.mxu0 0.0
    %3565 = vmatprep.mubr.f32.mxu0 0.0
    %3566 = vmatmul.mubr.f32.gmra.mrb[0].mxu0 %v3494
    %v3567 = vpop.f32.mrb[0].mxu0
    %v3568 = vadd.f32 0.0, %v3567
    %v3569 = vpop.f32.mrb[0].mxu0
    %v3570 = vadd.f32 0.0, %v3569
    %3571 = vdwg.mxu0
    %3572 = vmatprep.subr.mxu0 %v3084
    %3573 = vmatpush1.msra.mxu0 %v3083
    %3574 = vmatprep.subr.mxu0 %v3088
    %3575 = vmatpush1.msra.mxu0 %v3087
    %3576 = vmatprep.subr.mxu0 %v3092
    %3577 = vmatpush1.msra.mxu0 %v3091
    %3578 = vmatprep.subr.mxu0 %v3096
    %3579 = vmatpush1.msra.mxu0 %v3095
    %3580 = vmatprep.subr.mxu0 %v3100
    %3581 = vmatpush1.msra.mxu0 %v3099
    %3582 = vmatprep.subr.mxu0 %v3104
    %3583 = vmatpush1.msra.mxu0 %v3103
    %3584 = vmatprep.subr.mxu0 %v3108
    %3585 = vmatpush1.msra.mxu0 %v3107
    %3586 = vmatprep.subr.mxu0 %v3112
    %3587 = vmatpush1.msra.mxu0 %v3111
    %3588 = vmatprep.subr.mxu0 %v3116
    %3589 = vmatpush1.msra.mxu0 %v3115
    %3590 = vmatprep.subr.mxu0 %v3120
    %3591 = vmatpush1.msra.mxu0 %v3119
    %3592 = vmatprep.subr.mxu0 %v3124
    %3593 = vmatpush1.msra.mxu0 %v3123
    %3594 = vmatprep.subr.mxu0 %v3128
    %3595 = vmatpush1.msra.mxu0 %v3127
    %3596 = vmatprep.subr.mxu0 %v3132
    %3597 = vmatpush1.msra.mxu0 %v3131
    %3598 = vmatprep.subr.mxu0 %v3136
    %3599 = vmatpush1.msra.mxu0 %v3135
    %3600 = vmatprep.subr.mxu0 %v3140
    %3601 = vmatpush1.msra.mxu0 %v3139
    %3602 = vmatprep.subr.mxu0 %v3144
    %3603 = vmatpush1.msra.mxu0 %v3143
    %3604 = vmatprep.subr.mxu0 0.0
    %3605 = vmatpush1.msra.mxu0 0.0
    %3606 = vmatprep.subr.mxu0 0.0
    %3607 = vmatpush1.msra.mxu0 0.0
    %3608 = vmatprep.subr.mxu0 0.0
    %3609 = vmatpush1.msra.mxu0 0.0
    %3610 = vmatprep.subr.mxu0 0.0
    %3611 = vmatpush1.msra.mxu0 0.0
    %3612 = vmatprep.subr.mxu0 0.0
    %3613 = vmatpush1.msra.mxu0 0.0
    %3614 = vmatprep.subr.mxu0 0.0
    %3615 = vmatpush1.msra.mxu0 0.0
    %3616 = vmatprep.subr.mxu0 0.0
    %3617 = vmatpush1.msra.mxu0 0.0
    %3618 = vmatprep.subr.mxu0 0.0
    %3619 = vmatpush1.msra.mxu0 0.0
    %3620 = vmatprep.subr.mxu0 0.0
    %3621 = vmatpush1.msra.mxu0 0.0
    %3622 = vmatprep.subr.mxu0 0.0
    %3623 = vmatpush1.msra.mxu0 0.0
    %3624 = vmatprep.subr.mxu0 0.0
    %3625 = vmatpush1.msra.mxu0 0.0
    %3626 = vmatprep.subr.mxu0 0.0
    %3627 = vmatpush1.msra.mxu0 0.0
    %3628 = vmatprep.subr.mxu0 0.0
    %3629 = vmatpush1.msra.mxu0 0.0
    %3630 = vmatprep.subr.mxu0 0.0
    %3631 = vmatpush1.msra.mxu0 0.0
    %3632 = vmatprep.subr.mxu0 0.0
    %3633 = vmatpush1.msra.mxu0 0.0
    %3634 = vmatprep.subr.mxu0 0.0
    %3635 = vmatpush1.msra.mxu0 0.0
    %3636 = vmatprep.mubr.f32.mxu0 0.0
    %3637 = vmatmul.mubr.f32.gmra.mrb[0].mxu0 %v3494
    %v3638 = vpop.f32.mrb[0].mxu0
    %v3639 = vadd.f32 0.0, %v3638
    %v3640 = vpop.f32.mrb[0].mxu0
    %v3641 = vadd.f32 0.0, %v3640
    %3642 = vdwg.mxu0
    %v3643 = vadd.f32 %v3497, %v3568
    %v3644 = vadd.f32 %v3498, %v3570
    %v3645 = vadd.f32 %v3499, %v3639
    %v3646 = vadd.f32 %v3500, %v3641
    %v3647 = vxor.u32 %v3643, 2147483648
    %v3648 = vmul.f32 %v3647, 1.442695
    %v3649 = vpow.pop %v3648
    %v3650 = vadd.f32 %v3649, 1.0
    %v3651 = vrcp.pop %v3650
    %v3652 = vmul.f32 1.0, %v3651
    %v3653 = vxor.u32 %v3644, 2147483648
    %v3654 = vmul.f32 %v3653, 1.442695
    %v3655 = vpow.pop %v3654
    %v3656 = vadd.f32 %v3655, 1.0
    %v3657 = vrcp.pop %v3656
    %v3658 = vmul.f32 1.0, %v3657
    %v3659 = vtanh.pop %v3645
    %v3660 = vxor.u32 %v3646, 2147483648
    %v3661 = vmul.f32 %v3660, 1.442695
    %v3662 = vpow.pop %v3661
    %v3663 = vadd.f32 %v3662, 1.0
    %v3664 = vrcp.pop %v3663
    %v3665 = vmul.f32 1.0, %v3664
    %v3666 = vmul.f32 %v3658, %v3492
    %v3667 = vmul.f32 %v3652, %v3659
    %v3668 = vadd.f32 %v3666, %v3667
    %v3669 = vtanh.pop %v3668
    %v3670 = vmul.f32 %v3665, %v3669
    %3671 = vst.msk [vmem:[#allocation3 + $0x10] sm:$0xff] %vm128, %v3670
    %3672 = vst.msk [vmem:[#allocation3 + $0x28] sm:$0xff] %vm1237, %v3670
    %v3673 = vadd.f32 %v2650, %v2946
    %v3674 = vadd.f32 %v2652, %v2948
    %v3675 = vadd.f32 %v2763, %v3059
    %v3676 = vadd.f32 %v2765, %v3061
    %3677 = vmatprep.subr.mxu0 %v3082
    %3678 = vmatpush1.msra.mxu0 %v3081
    %3679 = vmatprep.subr.mxu0 %v3086
    %3680 = vmatpush1.msra.mxu0 %v3085
    %3681 = vmatprep.subr.mxu0 %v3090
    %3682 = vmatpush1.msra.mxu0 %v3089
    %3683 = vmatprep.subr.mxu0 %v3094
    %3684 = vmatpush1.msra.mxu0 %v3093
    %3685 = vmatprep.subr.mxu0 %v3098
    %3686 = vmatpush1.msra.mxu0 %v3097
    %3687 = vmatprep.subr.mxu0 %v3102
    %3688 = vmatpush1.msra.mxu0 %v3101
    %3689 = vmatprep.subr.mxu0 %v3106
    %3690 = vmatpush1.msra.mxu0 %v3105
    %3691 = vmatprep.subr.mxu0 %v3110
    %3692 = vmatpush1.msra.mxu0 %v3109
    %3693 = vmatprep.subr.mxu0 %v3114
    %3694 = vmatpush1.msra.mxu0 %v3113
    %3695 = vmatprep.subr.mxu0 %v3118
    %3696 = vmatpush1.msra.mxu0 %v3117
    %3697 = vmatprep.subr.mxu0 %v3122
    %3698 = vmatpush1.msra.mxu0 %v3121
    %3699 = vmatprep.subr.mxu0 %v3126
    %3700 = vmatpush1.msra.mxu0 %v3125
    %3701 = vmatprep.subr.mxu0 %v3130
    %3702 = vmatpush1.msra.mxu0 %v3129
    %3703 = vmatprep.subr.mxu0 %v3134
    %3704 = vmatpush1.msra.mxu0 %v3133
    %3705 = vmatprep.subr.mxu0 %v3138
    %3706 = vmatpush1.msra.mxu0 %v3137
    %3707 = vmatprep.subr.mxu0 %v3142
    %3708 = vmatpush1.msra.mxu0 %v3141
    %3709 = vmatprep.subr.mxu0 0.0
    %3710 = vmatpush1.msra.mxu0 0.0
    %3711 = vmatprep.subr.mxu0 0.0
    %3712 = vmatpush1.msra.mxu0 0.0
    %3713 = vmatprep.subr.mxu0 0.0
    %3714 = vmatpush1.msra.mxu0 0.0
    %3715 = vmatprep.subr.mxu0 0.0
    %3716 = vmatpush1.msra.mxu0 0.0
    %3717 = vmatprep.subr.mxu0 0.0
    %3718 = vmatpush1.msra.mxu0 0.0
    %3719 = vmatprep.subr.mxu0 0.0
    %3720 = vmatpush1.msra.mxu0 0.0
    %3721 = vmatprep.subr.mxu0 0.0
    %3722 = vmatpush1.msra.mxu0 0.0
    %3723 = vmatprep.subr.mxu0 0.0
    %3724 = vmatpush1.msra.mxu0 0.0
    %3725 = vmatprep.subr.mxu0 0.0
    %3726 = vmatpush1.msra.mxu0 0.0
    %3727 = vmatprep.subr.mxu0 0.0
    %3728 = vmatpush1.msra.mxu0 0.0
    %3729 = vmatprep.subr.mxu0 0.0
    %3730 = vmatpush1.msra.mxu0 0.0
    %3731 = vmatprep.subr.mxu0 0.0
    %3732 = vmatpush1.msra.mxu0 0.0
    %3733 = vmatprep.subr.mxu0 0.0
    %3734 = vmatpush1.msra.mxu0 0.0
    %3735 = vmatprep.subr.mxu0 0.0
    %3736 = vmatpush1.msra.mxu0 0.0
    %3737 = vmatprep.subr.mxu0 0.0
    %3738 = vmatpush1.msra.mxu0 0.0
    %3739 = vmatprep.subr.mxu0 0.0
    %3740 = vmatpush1.msra.mxu0 0.0
    %3741 = vmatprep.mubr.f32.mxu0 0.0
    %3742 = vmatmul.mubr.f32.gmra.mrb[0].mxu0 %v3670
    %v3743 = vpop.f32.mrb[0].mxu0
    %v3744 = vadd.f32 0.0, %v3743
    %v3745 = vpop.f32.mrb[0].mxu0
    %v3746 = vadd.f32 0.0, %v3745
    %3747 = vdwg.mxu0
    %3748 = vmatprep.subr.mxu0 %v3084
    %3749 = vmatpush1.msra.mxu0 %v3083
    %3750 = vmatprep.subr.mxu0 %v3088
    %3751 = vmatpush1.msra.mxu0 %v3087
    %3752 = vmatprep.subr.mxu0 %v3092
    %3753 = vmatpush1.msra.mxu0 %v3091
    %3754 = vmatprep.subr.mxu0 %v3096
    %3755 = vmatpush1.msra.mxu0 %v3095
    %3756 = vmatprep.subr.mxu0 %v3100
    %3757 = vmatpush1.msra.mxu0 %v3099
    %3758 = vmatprep.subr.mxu0 %v3104
    %3759 = vmatpush1.msra.mxu0 %v3103
    %3760 = vmatprep.subr.mxu0 %v3108
    %3761 = vmatpush1.msra.mxu0 %v3107
    %3762 = vmatprep.subr.mxu0 %v3112
    %3763 = vmatpush1.msra.mxu0 %v3111
    %3764 = vmatprep.subr.mxu0 %v3116
    %3765 = vmatpush1.msra.mxu0 %v3115
    %3766 = vmatprep.subr.mxu0 %v3120
    %3767 = vmatpush1.msra.mxu0 %v3119
    %3768 = vmatprep.subr.mxu0 %v3124
    %3769 = vmatpush1.msra.mxu0 %v3123
    %3770 = vmatprep.subr.mxu0 %v3128
    %3771 = vmatpush1.msra.mxu0 %v3127
    %3772 = vmatprep.subr.mxu0 %v3132
    %3773 = vmatpush1.msra.mxu0 %v3131
    %3774 = vmatprep.subr.mxu0 %v3136
    %3775 = vmatpush1.msra.mxu0 %v3135
    %3776 = vmatprep.subr.mxu0 %v3140
    %3777 = vmatpush1.msra.mxu0 %v3139
    %3778 = vmatprep.subr.mxu0 %v3144
    %3779 = vmatpush1.msra.mxu0 %v3143
    %3780 = vmatprep.subr.mxu0 0.0
    %3781 = vmatpush1.msra.mxu0 0.0
    %3782 = vmatprep.subr.mxu0 0.0
    %3783 = vmatpush1.msra.mxu0 0.0
    %3784 = vmatprep.subr.mxu0 0.0
    %3785 = vmatpush1.msra.mxu0 0.0
    %3786 = vmatprep.subr.mxu0 0.0
    %3787 = vmatpush1.msra.mxu0 0.0
    %3788 = vmatprep.subr.mxu0 0.0
    %3789 = vmatpush1.msra.mxu0 0.0
    %3790 = vmatprep.subr.mxu0 0.0
    %3791 = vmatpush1.msra.mxu0 0.0
    %3792 = vmatprep.subr.mxu0 0.0
    %3793 = vmatpush1.msra.mxu0 0.0
    %3794 = vmatprep.subr.mxu0 0.0
    %3795 = vmatpush1.msra.mxu0 0.0
    %3796 = vmatprep.subr.mxu0 0.0
    %3797 = vmatpush1.msra.mxu0 0.0
    %3798 = vmatprep.subr.mxu0 0.0
    %3799 = vmatpush1.msra.mxu0 0.0
    %3800 = vmatprep.subr.mxu0 0.0
    %3801 = vmatpush1.msra.mxu0 0.0
    %3802 = vmatprep.subr.mxu0 0.0
    %3803 = vmatpush1.msra.mxu0 0.0
    %3804 = vmatprep.subr.mxu0 0.0
    %3805 = vmatpush1.msra.mxu0 0.0
    %3806 = vmatprep.subr.mxu0 0.0
    %3807 = vmatpush1.msra.mxu0 0.0
    %3808 = vmatprep.subr.mxu0 0.0
    %3809 = vmatpush1.msra.mxu0 0.0
    %3810 = vmatprep.subr.mxu0 0.0
    %3811 = vmatpush1.msra.mxu0 0.0
    %3812 = vmatprep.mubr.f32.mxu0 0.0
    %3813 = vmatmul.mubr.f32.gmra.mrb[0].mxu0 %v3670
    %v3814 = vpop.f32.mrb[0].mxu0
    %v3815 = vadd.f32 0.0, %v3814
    %v3816 = vpop.f32.mrb[0].mxu0
    %v3817 = vadd.f32 0.0, %v3816
    %3818 = vdwg.mxu0
    %v3819 = vadd.f32 %v3673, %v3744
    %v3820 = vadd.f32 %v3674, %v3746
    %v3821 = vadd.f32 %v3675, %v3815
    %v3822 = vadd.f32 %v3676, %v3817
    %v3823 = vxor.u32 %v3819, 2147483648
    %v3824 = vmul.f32 %v3823, 1.442695
    %v3825 = vpow.pop %v3824
    %v3826 = vadd.f32 %v3825, 1.0
    %v3827 = vrcp.pop %v3826
    %v3828 = vmul.f32 1.0, %v3827
    %v3829 = vxor.u32 %v3820, 2147483648
    %v3830 = vmul.f32 %v3829, 1.442695
    %v3831 = vpow.pop %v3830
    %v3832 = vadd.f32 %v3831, 1.0
    %v3833 = vrcp.pop %v3832
    %v3834 = vmul.f32 1.0, %v3833
    %v3835 = vtanh.pop %v3821
    %v3836 = vxor.u32 %v3822, 2147483648
    %v3837 = vmul.f32 %v3836, 1.442695
    %v3838 = vpow.pop %v3837
    %v3839 = vadd.f32 %v3838, 1.0
    %v3840 = vrcp.pop %v3839
    %v3841 = vmul.f32 1.0, %v3840
    %v3842 = vmul.f32 %v3834, %v3668
    %v3843 = vmul.f32 %v3828, %v3835
    %v3844 = vadd.f32 %v3842, %v3843
    %v3845 = vtanh.pop %v3844
    %v3846 = vmul.f32 %v3841, %v3845
    %3847 = vst.msk [vmem:[#allocation3 + $0x18] sm:$0xff] %vm128, %v3846
    %3848 = vst.msk [vmem:[#allocation3 + $0x20] sm:$0xff] %vm1237, %v3846
    %v3849 = vadd.f32 %v2656, %v2940
    %v3850 = vadd.f32 %v2658, %v2942
    %v3851 = vadd.f32 %v2769, %v3053
    %v3852 = vadd.f32 %v2771, %v3055
    %3853 = vmatprep.subr.mxu0 %v3082
    %3854 = vmatpush1.msra.mxu0 %v3081
    %3855 = vmatprep.subr.mxu0 %v3086
    %3856 = vmatpush1.msra.mxu0 %v3085
    %3857 = vmatprep.subr.mxu0 %v3090
    %3858 = vmatpush1.msra.mxu0 %v3089
    %3859 = vmatprep.subr.mxu0 %v3094
    %3860 = vmatpush1.msra.mxu0 %v3093
    %3861 = vmatprep.subr.mxu0 %v3098
    %3862 = vmatpush1.msra.mxu0 %v3097
    %3863 = vmatprep.subr.mxu0 %v3102
    %3864 = vmatpush1.msra.mxu0 %v3101
    %3865 = vmatprep.subr.mxu0 %v3106
    %3866 = vmatpush1.msra.mxu0 %v3105
    %3867 = vmatprep.subr.mxu0 %v3110
    %3868 = vmatpush1.msra.mxu0 %v3109
    %3869 = vmatprep.subr.mxu0 %v3114
    %3870 = vmatpush1.msra.mxu0 %v3113
    %3871 = vmatprep.subr.mxu0 %v3118
    %3872 = vmatpush1.msra.mxu0 %v3117
    %3873 = vmatprep.subr.mxu0 %v3122
    %3874 = vmatpush1.msra.mxu0 %v3121
    %3875 = vmatprep.subr.mxu0 %v3126
    %3876 = vmatpush1.msra.mxu0 %v3125
    %3877 = vmatprep.subr.mxu0 %v3130
    %3878 = vmatpush1.msra.mxu0 %v3129
    %3879 = vmatprep.subr.mxu0 %v3134
    %3880 = vmatpush1.msra.mxu0 %v3133
    %3881 = vmatprep.subr.mxu0 %v3138
    %3882 = vmatpush1.msra.mxu0 %v3137
    %3883 = vmatprep.subr.mxu0 %v3142
    %3884 = vmatpush1.msra.mxu0 %v3141
    %3885 = vmatprep.subr.mxu0 0.0
    %3886 = vmatpush1.msra.mxu0 0.0
    %3887 = vmatprep.subr.mxu0 0.0
    %3888 = vmatpush1.msra.mxu0 0.0
    %3889 = vmatprep.subr.mxu0 0.0
    %3890 = vmatpush1.msra.mxu0 0.0
    %3891 = vmatprep.subr.mxu0 0.0
    %3892 = vmatpush1.msra.mxu0 0.0
    %3893 = vmatprep.subr.mxu0 0.0
    %3894 = vmatpush1.msra.mxu0 0.0
    %3895 = vmatprep.subr.mxu0 0.0
    %3896 = vmatpush1.msra.mxu0 0.0
    %3897 = vmatprep.subr.mxu0 0.0
    %3898 = vmatpush1.msra.mxu0 0.0
    %3899 = vmatprep.subr.mxu0 0.0
    %3900 = vmatpush1.msra.mxu0 0.0
    %3901 = vmatprep.subr.mxu0 0.0
    %3902 = vmatpush1.msra.mxu0 0.0
    %3903 = vmatprep.subr.mxu0 0.0
    %3904 = vmatpush1.msra.mxu0 0.0
    %3905 = vmatprep.subr.mxu0 0.0
    %3906 = vmatpush1.msra.mxu0 0.0
    %3907 = vmatprep.subr.mxu0 0.0
    %3908 = vmatpush1.msra.mxu0 0.0
    %3909 = vmatprep.subr.mxu0 0.0
    %3910 = vmatpush1.msra.mxu0 0.0
    %3911 = vmatprep.subr.mxu0 0.0
    %3912 = vmatpush1.msra.mxu0 0.0
    %3913 = vmatprep.subr.mxu0 0.0
    %3914 = vmatpush1.msra.mxu0 0.0
    %3915 = vmatprep.subr.mxu0 0.0
    %3916 = vmatpush1.msra.mxu0 0.0
    %3917 = vmatprep.mubr.f32.mxu0 0.0
    %3918 = vmatmul.mubr.f32.gmra.mrb[0].mxu0 %v3846
    %v3919 = vpop.f32.mrb[0].mxu0
    %v3920 = vadd.f32 0.0, %v3919
    %v3921 = vpop.f32.mrb[0].mxu0
    %v3922 = vadd.f32 0.0, %v3921
    %3923 = vdwg.mxu0
    %3924 = vmatprep.subr.mxu0 %v3084
    %3925 = vmatpush1.msra.mxu0 %v3083
    %3926 = vmatprep.subr.mxu0 %v3088
    %3927 = vmatpush1.msra.mxu0 %v3087
    %3928 = vmatprep.subr.mxu0 %v3092
    %3929 = vmatpush1.msra.mxu0 %v3091
    %3930 = vmatprep.subr.mxu0 %v3096
    %3931 = vmatpush1.msra.mxu0 %v3095
    %3932 = vmatprep.subr.mxu0 %v3100
    %3933 = vmatpush1.msra.mxu0 %v3099
    %3934 = vmatprep.subr.mxu0 %v3104
    %3935 = vmatpush1.msra.mxu0 %v3103
    %3936 = vmatprep.subr.mxu0 %v3108
    %3937 = vmatpush1.msra.mxu0 %v3107
    %3938 = vmatprep.subr.mxu0 %v3112
    %3939 = vmatpush1.msra.mxu0 %v3111
    %3940 = vmatprep.subr.mxu0 %v3116
    %3941 = vmatpush1.msra.mxu0 %v3115
    %3942 = vmatprep.subr.mxu0 %v3120
    %3943 = vmatpush1.msra.mxu0 %v3119
    %3944 = vmatprep.subr.mxu0 %v3124
    %3945 = vmatpush1.msra.mxu0 %v3123
    %3946 = vmatprep.subr.mxu0 %v3128
    %3947 = vmatpush1.msra.mxu0 %v3127
    %3948 = vmatprep.subr.mxu0 %v3132
    %3949 = vmatpush1.msra.mxu0 %v3131
    %3950 = vmatprep.subr.mxu0 %v3136
    %3951 = vmatpush1.msra.mxu0 %v3135
    %3952 = vmatprep.subr.mxu0 %v3140
    %3953 = vmatpush1.msra.mxu0 %v3139
    %3954 = vmatprep.subr.mxu0 %v3144
    %3955 = vmatpush1.msra.mxu0 %v3143
    %3956 = vmatprep.subr.mxu0 0.0
    %3957 = vmatpush1.msra.mxu0 0.0
    %3958 = vmatprep.subr.mxu0 0.0
    %3959 = vmatpush1.msra.mxu0 0.0
    %3960 = vmatprep.subr.mxu0 0.0
    %3961 = vmatpush1.msra.mxu0 0.0
    %3962 = vmatprep.subr.mxu0 0.0
    %3963 = vmatpush1.msra.mxu0 0.0
    %3964 = vmatprep.subr.mxu0 0.0
    %3965 = vmatpush1.msra.mxu0 0.0
    %3966 = vmatprep.subr.mxu0 0.0
    %3967 = vmatpush1.msra.mxu0 0.0
    %3968 = vmatprep.subr.mxu0 0.0
    %3969 = vmatpush1.msra.mxu0 0.0
    %3970 = vmatprep.subr.mxu0 0.0
    %3971 = vmatpush1.msra.mxu0 0.0
    %3972 = vmatprep.subr.mxu0 0.0
    %3973 = vmatpush1.msra.mxu0 0.0
    %3974 = vmatprep.subr.mxu0 0.0
    %3975 = vmatpush1.msra.mxu0 0.0
    %3976 = vmatprep.subr.mxu0 0.0
    %3977 = vmatpush1.msra.mxu0 0.0
    %3978 = vmatprep.subr.mxu0 0.0
    %3979 = vmatpush1.msra.mxu0 0.0
    %3980 = vmatprep.subr.mxu0 0.0
    %3981 = vmatpush1.msra.mxu0 0.0
    %3982 = vmatprep.subr.mxu0 0.0
    %3983 = vmatpush1.msra.mxu0 0.0
    %3984 = vmatprep.subr.mxu0 0.0
    %3985 = vmatpush1.msra.mxu0 0.0
    %3986 = vmatprep.subr.mxu0 0.0
    %3987 = vmatpush1.msra.mxu0 0.0
    %3988 = vmatprep.mubr.f32.mxu0 0.0
    %3989 = vmatmul.mubr.f32.gmra.mrb[0].mxu0 %v3846
    %v3990 = vpop.f32.mrb[0].mxu0
    %v3991 = vadd.f32 0.0, %v3990
    %v3992 = vpop.f32.mrb[0].mxu0
    %v3993 = vadd.f32 0.0, %v3992
    %3994 = vdwg.mxu0
    %v3995 = vadd.f32 %v3849, %v3920
    %v3996 = vadd.f32 %v3850, %v3922
    %v3997 = vadd.f32 %v3851, %v3991
    %v3998 = vadd.f32 %v3852, %v3993
    %v3999 = vxor.u32 %v3995, 2147483648
    %v4000 = vmul.f32 %v3999, 1.442695
    %v4001 = vpow.pop %v4000
    %v4002 = vadd.f32 %v4001, 1.0
    %v4003 = vrcp.pop %v4002
    %v4004 = vmul.f32 1.0, %v4003
    %v4005 = vxor.u32 %v3996, 2147483648
    %v4006 = vmul.f32 %v4005, 1.442695
    %v4007 = vpow.pop %v4006
    %v4008 = vadd.f32 %v4007, 1.0
    %v4009 = vrcp.pop %v4008
    %v4010 = vmul.f32 1.0, %v4009
    %v4011 = vtanh.pop %v3997
    %v4012 = vxor.u32 %v3998, 2147483648
    %v4013 = vmul.f32 %v4012, 1.442695
    %v4014 = vpow.pop %v4013
    %v4015 = vadd.f32 %v4014, 1.0
    %v4016 = vrcp.pop %v4015
    %v4017 = vmul.f32 1.0, %v4016
    %v4018 = vmul.f32 %v4010, %v3844
    %v4019 = vmul.f32 %v4004, %v4011
    %v4020 = vadd.f32 %v4018, %v4019
    %v4021 = vtanh.pop %v4020
    %v4022 = vmul.f32 %v4017, %v4021
    %4023 = vst.msk [vmem:[#allocation3 + $0x20] sm:$0xff] %vm128, %v4022
    %4024 = vst.msk [vmem:[#allocation3 + $0x18] sm:$0xff] %vm1237, %v4022
    %v4025 = vadd.f32 %v2662, %v2934
    %v4026 = vadd.f32 %v2664, %v2936
    %v4027 = vadd.f32 %v2775, %v3047
    %v4028 = vadd.f32 %v2777, %v3049
    %4029 = vmatprep.subr.mxu0 %v3082
    %4030 = vmatpush1.msra.mxu0 %v3081
    %4031 = vmatprep.subr.mxu0 %v3086
    %4032 = vmatpush1.msra.mxu0 %v3085
    %4033 = vmatprep.subr.mxu0 %v3090
    %4034 = vmatpush1.msra.mxu0 %v3089
    %4035 = vmatprep.subr.mxu0 %v3094
    %4036 = vmatpush1.msra.mxu0 %v3093
    %4037 = vmatprep.subr.mxu0 %v3098
    %4038 = vmatpush1.msra.mxu0 %v3097
    %4039 = vmatprep.subr.mxu0 %v3102
    %4040 = vmatpush1.msra.mxu0 %v3101
    %4041 = vmatprep.subr.mxu0 %v3106
    %4042 = vmatpush1.msra.mxu0 %v3105
    %4043 = vmatprep.subr.mxu0 %v3110
    %4044 = vmatpush1.msra.mxu0 %v3109
    %4045 = vmatprep.subr.mxu0 %v3114
    %4046 = vmatpush1.msra.mxu0 %v3113
    %4047 = vmatprep.subr.mxu0 %v3118
    %4048 = vmatpush1.msra.mxu0 %v3117
    %4049 = vmatprep.subr.mxu0 %v3122
    %4050 = vmatpush1.msra.mxu0 %v3121
    %4051 = vmatprep.subr.mxu0 %v3126
    %4052 = vmatpush1.msra.mxu0 %v3125
    %4053 = vmatprep.subr.mxu0 %v3130
    %4054 = vmatpush1.msra.mxu0 %v3129
    %4055 = vmatprep.subr.mxu0 %v3134
    %4056 = vmatpush1.msra.mxu0 %v3133
    %4057 = vmatprep.subr.mxu0 %v3138
    %4058 = vmatpush1.msra.mxu0 %v3137
    %4059 = vmatprep.subr.mxu0 %v3142
    %4060 = vmatpush1.msra.mxu0 %v3141
    %4061 = vmatprep.subr.mxu0 0.0
    %4062 = vmatpush1.msra.mxu0 0.0
    %4063 = vmatprep.subr.mxu0 0.0
    %4064 = vmatpush1.msra.mxu0 0.0
    %4065 = vmatprep.subr.mxu0 0.0
    %4066 = vmatpush1.msra.mxu0 0.0
    %4067 = vmatprep.subr.mxu0 0.0
    %4068 = vmatpush1.msra.mxu0 0.0
    %4069 = vmatprep.subr.mxu0 0.0
    %4070 = vmatpush1.msra.mxu0 0.0
    %4071 = vmatprep.subr.mxu0 0.0
    %4072 = vmatpush1.msra.mxu0 0.0
    %4073 = vmatprep.subr.mxu0 0.0
    %4074 = vmatpush1.msra.mxu0 0.0
    %4075 = vmatprep.subr.mxu0 0.0
    %4076 = vmatpush1.msra.mxu0 0.0
    %4077 = vmatprep.subr.mxu0 0.0
    %4078 = vmatpush1.msra.mxu0 0.0
    %4079 = vmatprep.subr.mxu0 0.0
    %4080 = vmatpush1.msra.mxu0 0.0
    %4081 = vmatprep.subr.mxu0 0.0
    %4082 = vmatpush1.msra.mxu0 0.0
    %4083 = vmatprep.subr.mxu0 0.0
    %4084 = vmatpush1.msra.mxu0 0.0
    %4085 = vmatprep.subr.mxu0 0.0
    %4086 = vmatpush1.msra.mxu0 0.0
    %4087 = vmatprep.subr.mxu0 0.0
    %4088 = vmatpush1.msra.mxu0 0.0
    %4089 = vmatprep.subr.mxu0 0.0
    %4090 = vmatpush1.msra.mxu0 0.0
    %4091 = vmatprep.subr.mxu0 0.0
    %4092 = vmatpush1.msra.mxu0 0.0
    %4093 = vmatprep.mubr.f32.mxu0 0.0
    %4094 = vmatmul.mubr.f32.gmra.mrb[0].mxu0 %v4022
    %v4095 = vpop.f32.mrb[0].mxu0
    %v4096 = vadd.f32 0.0, %v4095
    %v4097 = vpop.f32.mrb[0].mxu0
    %v4098 = vadd.f32 0.0, %v4097
    %4099 = vdwg.mxu0
    %4100 = vmatprep.subr.mxu0 %v3084
    %4101 = vmatpush1.msra.mxu0 %v3083
    %4102 = vmatprep.subr.mxu0 %v3088
    %4103 = vmatpush1.msra.mxu0 %v3087
    %4104 = vmatprep.subr.mxu0 %v3092
    %4105 = vmatpush1.msra.mxu0 %v3091
    %4106 = vmatprep.subr.mxu0 %v3096
    %4107 = vmatpush1.msra.mxu0 %v3095
    %4108 = vmatprep.subr.mxu0 %v3100
    %4109 = vmatpush1.msra.mxu0 %v3099
    %4110 = vmatprep.subr.mxu0 %v3104
    %4111 = vmatpush1.msra.mxu0 %v3103
    %4112 = vmatprep.subr.mxu0 %v3108
    %4113 = vmatpush1.msra.mxu0 %v3107
    %4114 = vmatprep.subr.mxu0 %v3112
    %4115 = vmatpush1.msra.mxu0 %v3111
    %4116 = vmatprep.subr.mxu0 %v3116
    %4117 = vmatpush1.msra.mxu0 %v3115
    %4118 = vmatprep.subr.mxu0 %v3120
    %4119 = vmatpush1.msra.mxu0 %v3119
    %4120 = vmatprep.subr.mxu0 %v3124
    %4121 = vmatpush1.msra.mxu0 %v3123
    %4122 = vmatprep.subr.mxu0 %v3128
    %4123 = vmatpush1.msra.mxu0 %v3127
    %4124 = vmatprep.subr.mxu0 %v3132
    %4125 = vmatpush1.msra.mxu0 %v3131
    %4126 = vmatprep.subr.mxu0 %v3136
    %4127 = vmatpush1.msra.mxu0 %v3135
    %4128 = vmatprep.subr.mxu0 %v3140
    %4129 = vmatpush1.msra.mxu0 %v3139
    %4130 = vmatprep.subr.mxu0 %v3144
    %4131 = vmatpush1.msra.mxu0 %v3143
    %4132 = vmatprep.subr.mxu0 0.0
    %4133 = vmatpush1.msra.mxu0 0.0
    %4134 = vmatprep.subr.mxu0 0.0
    %4135 = vmatpush1.msra.mxu0 0.0
    %4136 = vmatprep.subr.mxu0 0.0
    %4137 = vmatpush1.msra.mxu0 0.0
    %4138 = vmatprep.subr.mxu0 0.0
    %4139 = vmatpush1.msra.mxu0 0.0
    %4140 = vmatprep.subr.mxu0 0.0
    %4141 = vmatpush1.msra.mxu0 0.0
    %4142 = vmatprep.subr.mxu0 0.0
    %4143 = vmatpush1.msra.mxu0 0.0
    %4144 = vmatprep.subr.mxu0 0.0
    %4145 = vmatpush1.msra.mxu0 0.0
    %4146 = vmatprep.subr.mxu0 0.0
    %4147 = vmatpush1.msra.mxu0 0.0
    %4148 = vmatprep.subr.mxu0 0.0
    %4149 = vmatpush1.msra.mxu0 0.0
    %4150 = vmatprep.subr.mxu0 0.0
    %4151 = vmatpush1.msra.mxu0 0.0
    %4152 = vmatprep.subr.mxu0 0.0
    %4153 = vmatpush1.msra.mxu0 0.0
    %4154 = vmatprep.subr.mxu0 0.0
    %4155 = vmatpush1.msra.mxu0 0.0
    %4156 = vmatprep.subr.mxu0 0.0
    %4157 = vmatpush1.msra.mxu0 0.0
    %4158 = vmatprep.subr.mxu0 0.0
    %4159 = vmatpush1.msra.mxu0 0.0
    %4160 = vmatprep.subr.mxu0 0.0
    %4161 = vmatpush1.msra.mxu0 0.0
    %4162 = vmatprep.subr.mxu0 0.0
    %4163 = vmatpush1.msra.mxu0 0.0
    %4164 = vmatprep.mubr.f32.mxu0 0.0
    %4165 = vmatmul.mubr.f32.gmra.mrb[0].mxu0 %v4022
    %v4166 = vpop.f32.mrb[0].mxu0
    %v4167 = vadd.f32 0.0, %v4166
    %v4168 = vpop.f32.mrb[0].mxu0
    %v4169 = vadd.f32 0.0, %v4168
    %4170 = vdwg.mxu0
    %v4171 = vadd.f32 %v4025, %v4096
    %v4172 = vadd.f32 %v4026, %v4098
    %v4173 = vadd.f32 %v4027, %v4167
    %v4174 = vadd.f32 %v4028, %v4169
    %v4175 = vxor.u32 %v4171, 2147483648
    %v4176 = vmul.f32 %v4175, 1.442695
    %v4177 = vpow.pop %v4176
    %v4178 = vadd.f32 %v4177, 1.0
    %v4179 = vrcp.pop %v4178
    %v4180 = vmul.f32 1.0, %v4179
    %v4181 = vxor.u32 %v4172, 2147483648
    %v4182 = vmul.f32 %v4181, 1.442695
    %v4183 = vpow.pop %v4182
    %v4184 = vadd.f32 %v4183, 1.0
    %v4185 = vrcp.pop %v4184
    %v4186 = vmul.f32 1.0, %v4185
    %v4187 = vtanh.pop %v4173
    %v4188 = vxor.u32 %v4174, 2147483648
    %v4189 = vmul.f32 %v4188, 1.442695
    %v4190 = vpow.pop %v4189
    %v4191 = vadd.f32 %v4190, 1.0
    %v4192 = vrcp.pop %v4191
    %v4193 = vmul.f32 1.0, %v4192
    %v4194 = vmul.f32 %v4186, %v4020
    %v4195 = vmul.f32 %v4180, %v4187
    %v4196 = vadd.f32 %v4194, %v4195
    %v4197 = vtanh.pop %v4196
    %v4198 = vmul.f32 %v4193, %v4197
    %4199 = vst.msk [vmem:[#allocation3 + $0x28] sm:$0xff] %vm128, %v4198
    %4200 = vst.msk [vmem:[#allocation3 + $0x10] sm:$0xff] %vm1237, %v4198
    %v4201 = vadd.f32 %v2668, %v2928
    %v4202 = vadd.f32 %v2670, %v2930
    %v4203 = vadd.f32 %v2781, %v3041
    %v4204 = vadd.f32 %v2783, %v3043
    %4205 = vmatprep.subr.mxu0 %v3082
    %4206 = vmatpush1.msra.mxu0 %v3081
    %4207 = vmatprep.subr.mxu0 %v3086
    %4208 = vmatpush1.msra.mxu0 %v3085
    %4209 = vmatprep.subr.mxu0 %v3090
    %4210 = vmatpush1.msra.mxu0 %v3089
    %4211 = vmatprep.subr.mxu0 %v3094
    %4212 = vmatpush1.msra.mxu0 %v3093
    %4213 = vmatprep.subr.mxu0 %v3098
    %4214 = vmatpush1.msra.mxu0 %v3097
    %4215 = vmatprep.subr.mxu0 %v3102
    %4216 = vmatpush1.msra.mxu0 %v3101
    %4217 = vmatprep.subr.mxu0 %v3106
    %4218 = vmatpush1.msra.mxu0 %v3105
    %4219 = vmatprep.subr.mxu0 %v3110
    %4220 = vmatpush1.msra.mxu0 %v3109
    %4221 = vmatprep.subr.mxu0 %v3114
    %4222 = vmatpush1.msra.mxu0 %v3113
    %4223 = vmatprep.subr.mxu0 %v3118
    %4224 = vmatpush1.msra.mxu0 %v3117
    %4225 = vmatprep.subr.mxu0 %v3122
    %4226 = vmatpush1.msra.mxu0 %v3121
    %4227 = vmatprep.subr.mxu0 %v3126
    %4228 = vmatpush1.msra.mxu0 %v3125
    %4229 = vmatprep.subr.mxu0 %v3130
    %4230 = vmatpush1.msra.mxu0 %v3129
    %4231 = vmatprep.subr.mxu0 %v3134
    %4232 = vmatpush1.msra.mxu0 %v3133
    %4233 = vmatprep.subr.mxu0 %v3138
    %4234 = vmatpush1.msra.mxu0 %v3137
    %4235 = vmatprep.subr.mxu0 %v3142
    %4236 = vmatpush1.msra.mxu0 %v3141
    %4237 = vmatprep.subr.mxu0 0.0
    %4238 = vmatpush1.msra.mxu0 0.0
    %4239 = vmatprep.subr.mxu0 0.0
    %4240 = vmatpush1.msra.mxu0 0.0
    %4241 = vmatprep.subr.mxu0 0.0
    %4242 = vmatpush1.msra.mxu0 0.0
    %4243 = vmatprep.subr.mxu0 0.0
    %4244 = vmatpush1.msra.mxu0 0.0
    %4245 = vmatprep.subr.mxu0 0.0
    %4246 = vmatpush1.msra.mxu0 0.0
    %4247 = vmatprep.subr.mxu0 0.0
    %4248 = vmatpush1.msra.mxu0 0.0
    %4249 = vmatprep.subr.mxu0 0.0
    %4250 = vmatpush1.msra.mxu0 0.0
    %4251 = vmatprep.subr.mxu0 0.0
    %4252 = vmatpush1.msra.mxu0 0.0
    %4253 = vmatprep.subr.mxu0 0.0
    %4254 = vmatpush1.msra.mxu0 0.0
    %4255 = vmatprep.subr.mxu0 0.0
    %4256 = vmatpush1.msra.mxu0 0.0
    %4257 = vmatprep.subr.mxu0 0.0
    %4258 = vmatpush1.msra.mxu0 0.0
    %4259 = vmatprep.subr.mxu0 0.0
    %4260 = vmatpush1.msra.mxu0 0.0
    %4261 = vmatprep.subr.mxu0 0.0
    %4262 = vmatpush1.msra.mxu0 0.0
    %4263 = vmatprep.subr.mxu0 0.0
    %4264 = vmatpush1.msra.mxu0 0.0
    %4265 = vmatprep.subr.mxu0 0.0
    %4266 = vmatpush1.msra.mxu0 0.0
    %4267 = vmatprep.subr.mxu0 0.0
    %4268 = vmatpush1.msra.mxu0 0.0
    %4269 = vmatprep.mubr.f32.mxu0 0.0
    %4270 = vmatmul.mubr.f32.gmra.mrb[0].mxu0 %v4198
    %v4271 = vpop.f32.mrb[0].mxu0
    %v4272 = vadd.f32 0.0, %v4271
    %v4273 = vpop.f32.mrb[0].mxu0
    %v4274 = vadd.f32 0.0, %v4273
    %4275 = vdwg.mxu0
    %4276 = vmatprep.subr.mxu0 %v3084
    %4277 = vmatpush1.msra.mxu0 %v3083
    %4278 = vmatprep.subr.mxu0 %v3088
    %4279 = vmatpush1.msra.mxu0 %v3087
    %4280 = vmatprep.subr.mxu0 %v3092
    %4281 = vmatpush1.msra.mxu0 %v3091
    %4282 = vmatprep.subr.mxu0 %v3096
    %4283 = vmatpush1.msra.mxu0 %v3095
    %4284 = vmatprep.subr.mxu0 %v3100
    %4285 = vmatpush1.msra.mxu0 %v3099
    %4286 = vmatprep.subr.mxu0 %v3104
    %4287 = vmatpush1.msra.mxu0 %v3103
    %4288 = vmatprep.subr.mxu0 %v3108
    %4289 = vmatpush1.msra.mxu0 %v3107
    %4290 = vmatprep.subr.mxu0 %v3112
    %4291 = vmatpush1.msra.mxu0 %v3111
    %4292 = vmatprep.subr.mxu0 %v3116
    %4293 = vmatpush1.msra.mxu0 %v3115
    %4294 = vmatprep.subr.mxu0 %v3120
    %4295 = vmatpush1.msra.mxu0 %v3119
    %4296 = vmatprep.subr.mxu0 %v3124
    %4297 = vmatpush1.msra.mxu0 %v3123
    %4298 = vmatprep.subr.mxu0 %v3128
    %4299 = vmatpush1.msra.mxu0 %v3127
    %4300 = vmatprep.subr.mxu0 %v3132
    %4301 = vmatpush1.msra.mxu0 %v3131
    %4302 = vmatprep.subr.mxu0 %v3136
    %4303 = vmatpush1.msra.mxu0 %v3135
    %4304 = vmatprep.subr.mxu0 %v3140
    %4305 = vmatpush1.msra.mxu0 %v3139
    %4306 = vmatprep.subr.mxu0 %v3144
    %4307 = vmatpush1.msra.mxu0 %v3143
    %4308 = vmatprep.subr.mxu0 0.0
    %4309 = vmatpush1.msra.mxu0 0.0
    %4310 = vmatprep.subr.mxu0 0.0
    %4311 = vmatpush1.msra.mxu0 0.0
    %4312 = vmatprep.subr.mxu0 0.0
    %4313 = vmatpush1.msra.mxu0 0.0
    %4314 = vmatprep.subr.mxu0 0.0
    %4315 = vmatpush1.msra.mxu0 0.0
    %4316 = vmatprep.subr.mxu0 0.0
    %4317 = vmatpush1.msra.mxu0 0.0
    %4318 = vmatprep.subr.mxu0 0.0
    %4319 = vmatpush1.msra.mxu0 0.0
    %4320 = vmatprep.subr.mxu0 0.0
    %4321 = vmatpush1.msra.mxu0 0.0
    %4322 = vmatprep.subr.mxu0 0.0
    %4323 = vmatpush1.msra.mxu0 0.0
    %4324 = vmatprep.subr.mxu0 0.0
    %4325 = vmatpush1.msra.mxu0 0.0
    %4326 = vmatprep.subr.mxu0 0.0
    %4327 = vmatpush1.msra.mxu0 0.0
    %4328 = vmatprep.subr.mxu0 0.0
    %4329 = vmatpush1.msra.mxu0 0.0
    %4330 = vmatprep.subr.mxu0 0.0
    %4331 = vmatpush1.msra.mxu0 0.0
    %4332 = vmatprep.subr.mxu0 0.0
    %4333 = vmatpush1.msra.mxu0 0.0
    %4334 = vmatprep.subr.mxu0 0.0
    %4335 = vmatpush1.msra.mxu0 0.0
    %4336 = vmatprep.subr.mxu0 0.0
    %4337 = vmatpush1.msra.mxu0 0.0
    %4338 = vmatprep.subr.mxu0 0.0
    %4339 = vmatpush1.msra.mxu0 0.0
    %4340 = vmatprep.mubr.f32.mxu0 0.0
    %4341 = vmatmul.mubr.f32.gmra.mrb[0].mxu0 %v4198
    %v4342 = vpop.f32.mrb[0].mxu0
    %v4343 = vadd.f32 0.0, %v4342
    %v4344 = vpop.f32.mrb[0].mxu0
    %v4345 = vadd.f32 0.0, %v4344
    %4346 = vdwg.mxu0
    %v4347 = vadd.f32 %v4201, %v4272
    %v4348 = vadd.f32 %v4202, %v4274
    %v4349 = vadd.f32 %v4203, %v4343
    %v4350 = vadd.f32 %v4204, %v4345
    %v4351 = vxor.u32 %v4347, 2147483648
    %v4352 = vmul.f32 %v4351, 1.442695
    %v4353 = vpow.pop %v4352
    %v4354 = vadd.f32 %v4353, 1.0
    %v4355 = vrcp.pop %v4354
    %v4356 = vmul.f32 1.0, %v4355
    %v4357 = vxor.u32 %v4348, 2147483648
    %v4358 = vmul.f32 %v4357, 1.442695
    %v4359 = vpow.pop %v4358
    %v4360 = vadd.f32 %v4359, 1.0
    %v4361 = vrcp.pop %v4360
    %v4362 = vmul.f32 1.0, %v4361
    %v4363 = vtanh.pop %v4349
    %v4364 = vxor.u32 %v4350, 2147483648
    %v4365 = vmul.f32 %v4364, 1.442695
    %v4366 = vpow.pop %v4365
    %v4367 = vadd.f32 %v4366, 1.0
    %v4368 = vrcp.pop %v4367
    %v4369 = vmul.f32 1.0, %v4368
    %v4370 = vmul.f32 %v4362, %v4196
    %v4371 = vmul.f32 %v4356, %v4363
    %v4372 = vadd.f32 %v4370, %v4371
    %v4373 = vtanh.pop %v4372
    %v4374 = vmul.f32 %v4369, %v4373
    %4375 = vst.msk [vmem:[#allocation3 + $0x30] sm:$0xff] %vm128, %v4374
    %4376 = vst.msk [vmem:[#allocation3 + $0x8] sm:$0xff] %vm1237, %v4374
    %v4377 = vadd.f32 %v2674, %v2922
    %v4378 = vadd.f32 %v2676, %v2924
    %v4379 = vadd.f32 %v2787, %v3035
    %v4380 = vadd.f32 %v2789, %v3037
    %4381 = vmatprep.subr.mxu0 %v3082
    %4382 = vmatpush1.msra.mxu0 %v3081
    %4383 = vmatprep.subr.mxu0 %v3086
    %4384 = vmatpush1.msra.mxu0 %v3085
    %4385 = vmatprep.subr.mxu0 %v3090
    %4386 = vmatpush1.msra.mxu0 %v3089
    %4387 = vmatprep.subr.mxu0 %v3094
    %4388 = vmatpush1.msra.mxu0 %v3093
    %4389 = vmatprep.subr.mxu0 %v3098
    %4390 = vmatpush1.msra.mxu0 %v3097
    %4391 = vmatprep.subr.mxu0 %v3102
    %4392 = vmatpush1.msra.mxu0 %v3101
    %4393 = vmatprep.subr.mxu0 %v3106
    %4394 = vmatpush1.msra.mxu0 %v3105
    %4395 = vmatprep.subr.mxu0 %v3110
    %4396 = vmatpush1.msra.mxu0 %v3109
    %4397 = vmatprep.subr.mxu0 %v3114
    %4398 = vmatpush1.msra.mxu0 %v3113
    %4399 = vmatprep.subr.mxu0 %v3118
    %4400 = vmatpush1.msra.mxu0 %v3117
    %4401 = vmatprep.subr.mxu0 %v3122
    %4402 = vmatpush1.msra.mxu0 %v3121
    %4403 = vmatprep.subr.mxu0 %v3126
    %4404 = vmatpush1.msra.mxu0 %v3125
    %4405 = vmatprep.subr.mxu0 %v3130
    %4406 = vmatpush1.msra.mxu0 %v3129
    %4407 = vmatprep.subr.mxu0 %v3134
    %4408 = vmatpush1.msra.mxu0 %v3133
    %4409 = vmatprep.subr.mxu0 %v3138
    %4410 = vmatpush1.msra.mxu0 %v3137
    %4411 = vmatprep.subr.mxu0 %v3142
    %4412 = vmatpush1.msra.mxu0 %v3141
    %4413 = vmatprep.subr.mxu0 0.0
    %4414 = vmatpush1.msra.mxu0 0.0
    %4415 = vmatprep.subr.mxu0 0.0
    %4416 = vmatpush1.msra.mxu0 0.0
    %4417 = vmatprep.subr.mxu0 0.0
    %4418 = vmatpush1.msra.mxu0 0.0
    %4419 = vmatprep.subr.mxu0 0.0
    %4420 = vmatpush1.msra.mxu0 0.0
    %4421 = vmatprep.subr.mxu0 0.0
    %4422 = vmatpush1.msra.mxu0 0.0
    %4423 = vmatprep.subr.mxu0 0.0
    %4424 = vmatpush1.msra.mxu0 0.0
    %4425 = vmatprep.subr.mxu0 0.0
    %4426 = vmatpush1.msra.mxu0 0.0
    %4427 = vmatprep.subr.mxu0 0.0
    %4428 = vmatpush1.msra.mxu0 0.0
    %4429 = vmatprep.subr.mxu0 0.0
    %4430 = vmatpush1.msra.mxu0 0.0
    %4431 = vmatprep.subr.mxu0 0.0
    %4432 = vmatpush1.msra.mxu0 0.0
    %4433 = vmatprep.subr.mxu0 0.0
    %4434 = vmatpush1.msra.mxu0 0.0
    %4435 = vmatprep.subr.mxu0 0.0
    %4436 = vmatpush1.msra.mxu0 0.0
    %4437 = vmatprep.subr.mxu0 0.0
    %4438 = vmatpush1.msra.mxu0 0.0
    %4439 = vmatprep.subr.mxu0 0.0
    %4440 = vmatpush1.msra.mxu0 0.0
    %4441 = vmatprep.subr.mxu0 0.0
    %4442 = vmatpush1.msra.mxu0 0.0
    %4443 = vmatprep.subr.mxu0 0.0
    %4444 = vmatpush1.msra.mxu0 0.0
    %4445 = vmatprep.mubr.f32.mxu0 0.0
    %4446 = vmatmul.mubr.f32.gmra.mrb[0].mxu0 %v4374
    %v4447 = vpop.f32.mrb[0].mxu0
    %v4448 = vadd.f32 0.0, %v4447
    %v4449 = vpop.f32.mrb[0].mxu0
    %v4450 = vadd.f32 0.0, %v4449
    %4451 = vdwg.mxu0
    %4452 = vmatprep.subr.mxu0 %v3084
    %4453 = vmatpush1.msra.mxu0 %v3083
    %4454 = vmatprep.subr.mxu0 %v3088
    %4455 = vmatpush1.msra.mxu0 %v3087
    %4456 = vmatprep.subr.mxu0 %v3092
    %4457 = vmatpush1.msra.mxu0 %v3091
    %4458 = vmatprep.subr.mxu0 %v3096
    %4459 = vmatpush1.msra.mxu0 %v3095
    %4460 = vmatprep.subr.mxu0 %v3100
    %4461 = vmatpush1.msra.mxu0 %v3099
    %4462 = vmatprep.subr.mxu0 %v3104
    %4463 = vmatpush1.msra.mxu0 %v3103
    %4464 = vmatprep.subr.mxu0 %v3108
    %4465 = vmatpush1.msra.mxu0 %v3107
    %4466 = vmatprep.subr.mxu0 %v3112
    %4467 = vmatpush1.msra.mxu0 %v3111
    %4468 = vmatprep.subr.mxu0 %v3116
    %4469 = vmatpush1.msra.mxu0 %v3115
    %4470 = vmatprep.subr.mxu0 %v3120
    %4471 = vmatpush1.msra.mxu0 %v3119
    %4472 = vmatprep.subr.mxu0 %v3124
    %4473 = vmatpush1.msra.mxu0 %v3123
    %4474 = vmatprep.subr.mxu0 %v3128
    %4475 = vmatpush1.msra.mxu0 %v3127
    %4476 = vmatprep.subr.mxu0 %v3132
    %4477 = vmatpush1.msra.mxu0 %v3131
    %4478 = vmatprep.subr.mxu0 %v3136
    %4479 = vmatpush1.msra.mxu0 %v3135
    %4480 = vmatprep.subr.mxu0 %v3140
    %4481 = vmatpush1.msra.mxu0 %v3139
    %4482 = vmatprep.subr.mxu0 %v3144
    %4483 = vmatpush1.msra.mxu0 %v3143
    %4484 = vmatprep.subr.mxu0 0.0
    %4485 = vmatpush1.msra.mxu0 0.0
    %4486 = vmatprep.subr.mxu0 0.0
    %4487 = vmatpush1.msra.mxu0 0.0
    %4488 = vmatprep.subr.mxu0 0.0
    %4489 = vmatpush1.msra.mxu0 0.0
    %4490 = vmatprep.subr.mxu0 0.0
    %4491 = vmatpush1.msra.mxu0 0.0
    %4492 = vmatprep.subr.mxu0 0.0
    %4493 = vmatpush1.msra.mxu0 0.0
    %4494 = vmatprep.subr.mxu0 0.0
    %4495 = vmatpush1.msra.mxu0 0.0
    %4496 = vmatprep.subr.mxu0 0.0
    %4497 = vmatpush1.msra.mxu0 0.0
    %4498 = vmatprep.subr.mxu0 0.0
    %4499 = vmatpush1.msra.mxu0 0.0
    %4500 = vmatprep.subr.mxu0 0.0
    %4501 = vmatpush1.msra.mxu0 0.0
    %4502 = vmatprep.subr.mxu0 0.0
    %4503 = vmatpush1.msra.mxu0 0.0
    %4504 = vmatprep.subr.mxu0 0.0
    %4505 = vmatpush1.msra.mxu0 0.0
    %4506 = vmatprep.subr.mxu0 0.0
    %4507 = vmatpush1.msra.mxu0 0.0
    %4508 = vmatprep.subr.mxu0 0.0
    %4509 = vmatpush1.msra.mxu0 0.0
    %4510 = vmatprep.subr.mxu0 0.0
    %4511 = vmatpush1.msra.mxu0 0.0
    %4512 = vmatprep.subr.mxu0 0.0
    %4513 = vmatpush1.msra.mxu0 0.0
    %4514 = vmatprep.subr.mxu0 0.0
    %4515 = vmatpush1.msra.mxu0 0.0
    %4516 = vmatprep.mubr.f32.mxu0 0.0
    %4517 = vmatmul.mubr.f32.gmra.mrb[0].mxu0 %v4374
    %v4518 = vpop.f32.mrb[0].mxu0
    %v4519 = vadd.f32 0.0, %v4518
    %v4520 = vpop.f32.mrb[0].mxu0
    %v4521 = vadd.f32 0.0, %v4520
    %4522 = vdwg.mxu0
    %v4523 = vadd.f32 %v4377, %v4448
    %v4524 = vadd.f32 %v4378, %v4450
    %v4525 = vadd.f32 %v4379, %v4519
    %v4526 = vadd.f32 %v4380, %v4521
    %v4527 = vxor.u32 %v4523, 2147483648
    %v4528 = vmul.f32 %v4527, 1.442695
    %v4529 = vpow.pop %v4528
    %v4530 = vadd.f32 %v4529, 1.0
    %v4531 = vrcp.pop %v4530
    %v4532 = vmul.f32 1.0, %v4531
    %v4533 = vxor.u32 %v4524, 2147483648
    %v4534 = vmul.f32 %v4533, 1.442695
    %v4535 = vpow.pop %v4534
    %v4536 = vadd.f32 %v4535, 1.0
    %v4537 = vrcp.pop %v4536
    %v4538 = vmul.f32 1.0, %v4537
    %v4539 = vtanh.pop %v4525
    %v4540 = vxor.u32 %v4526, 2147483648
    %v4541 = vmul.f32 %v4540, 1.442695
    %v4542 = vpow.pop %v4541
    %v4543 = vadd.f32 %v4542, 1.0
    %v4544 = vrcp.pop %v4543
    %v4545 = vmul.f32 1.0, %v4544
    %v4546 = vmul.f32 %v4538, %v4372
    %v4547 = vmul.f32 %v4532, %v4539
    %v4548 = vadd.f32 %v4546, %v4547
    %v4549 = vtanh.pop %v4548
    %v4550 = vmul.f32 %v4545, %v4549
    %4551 = vst.msk [vmem:[#allocation3 + $0x38] sm:$0xff] %vm128, %v4550
    %4552 = vst.msk [vmem:[#allocation3] sm:$0xff] %vm1237, %v4550
    %v4553 = vld [vmem:[#allocation3] sm:$0xff]
    %v4554 = vld [vmem:[#allocation3 + $0x8] sm:$0xff]
    %v4555 = vld [vmem:[#allocation3 + $0x10] sm:$0xff]
    %v4556 = vld [vmem:[#allocation3 + $0x18] sm:$0xff]
    %v4557 = vld [vmem:[#allocation3 + $0x20] sm:$0xff]
    %v4558 = vld [vmem:[#allocation3 + $0x28] sm:$0xff]
    %v4559 = vld [vmem:[#allocation3 + $0x30] sm:$0xff]
    %v4560 = vld [vmem:[#allocation3 + $0x38] sm:$0xff]
    %v4561 = vld [vmem:[#allocation11] sm:$0xff]
    %v4562 = vld [vmem:[#allocation11 + $0x8] sm:$0xff]
    %v4563 = vld [vmem:[#allocation11 + $0x10] sm:$0xff]
    %v4564 = vld [vmem:[#allocation11 + $0x18] sm:$0xff]
    %v4565 = vld [vmem:[#allocation11 + $0x20] sm:$0xff]
    %v4566 = vld [vmem:[#allocation11 + $0x28] sm:$0xff]
    %v4567 = vld [vmem:[#allocation11 + $0x30] sm:$0xff]
    %v4568 = vld [vmem:[#allocation11 + $0x38] sm:$0xff]
    %v4569 = vld [vmem:[#allocation11 + $0x40] sm:$0xff]
    %v4570 = vld [vmem:[#allocation11 + $0x48] sm:$0xff]
    %v4571 = vld [vmem:[#allocation11 + $0x50] sm:$0xff]
    %v4572 = vld [vmem:[#allocation11 + $0x58] sm:$0xff]
    %v4573 = vld [vmem:[#allocation11 + $0x60] sm:$0xff]
    %v4574 = vld [vmem:[#allocation11 + $0x68] sm:$0xff]
    %v4575 = vld [vmem:[#allocation11 + $0x70] sm:$0xff]
    %v4576 = vld [vmem:[#allocation11 + $0x78] sm:$0xff]
    %v4577 = vld [vmem:[#allocation11 + $0x80] sm:$0xff]
    %v4578 = vld [vmem:[#allocation11 + $0x88] sm:$0xff]
    %v4579 = vld [vmem:[#allocation11 + $0x90] sm:$0xff]
    %v4580 = vld [vmem:[#allocation11 + $0x98] sm:$0xff]
    %v4581 = vld [vmem:[#allocation11 + $0xa0] sm:$0xff]
    %v4582 = vld [vmem:[#allocation11 + $0xa8] sm:$0xff]
    %v4583 = vld [vmem:[#allocation11 + $0xb0] sm:$0xff]
    %v4584 = vld [vmem:[#allocation11 + $0xb8] sm:$0xff]
    %v4585 = vld [vmem:[#allocation11 + $0xc0] sm:$0xff]
    %v4586 = vld [vmem:[#allocation11 + $0xc8] sm:$0xff]
    %v4587 = vld [vmem:[#allocation11 + $0xd0] sm:$0xff]
    %v4588 = vld [vmem:[#allocation11 + $0xd8] sm:$0xff]
    %v4589 = vld [vmem:[#allocation11 + $0xe0] sm:$0xff]
    %v4590 = vld [vmem:[#allocation11 + $0xe8] sm:$0xff]
    %v4591 = vld [vmem:[#allocation11 + $0xf0] sm:$0xff]
    %v4592 = vld [vmem:[#allocation11 + $0xf8] sm:$0xff]
    %v4593 = vld [vmem:[%s12] sm:$0x3]
    %v4595 = vlaneseq
    %v4596 = vshrl.u32 %v4595, 7
    %v4597 = vsub.s32 0, %v4596
    %v4598 = vrot.slane %v4593, %v4597
    %v4599 = vlaneseq
    %v4600 = vshrl.u32 %v4599, 7
    %v4601 = vsub.s32 1, %v4600
    %v4602 = vrot.slane %v4593, %v4601
    %4605 = vmatprep.subr.mxu0 %v4562
    %4606 = vmatpush1.msra.mxu0 %v4561
    %4607 = vmatprep.subr.mxu0 %v4564
    %4608 = vmatpush1.msra.mxu0 %v4563
    %4609 = vmatprep.subr.mxu0 %v4566
    %4610 = vmatpush1.msra.mxu0 %v4565
    %4611 = vmatprep.subr.mxu0 %v4568
    %4612 = vmatpush1.msra.mxu0 %v4567
    %4613 = vmatprep.subr.mxu0 %v4570
    %4614 = vmatpush1.msra.mxu0 %v4569
    %4615 = vmatprep.subr.mxu0 %v4572
    %4616 = vmatpush1.msra.mxu0 %v4571
    %4617 = vmatprep.subr.mxu0 %v4574
    %4618 = vmatpush1.msra.mxu0 %v4573
    %4619 = vmatprep.subr.mxu0 %v4576
    %4620 = vmatpush1.msra.mxu0 %v4575
    %4621 = vmatprep.subr.mxu0 %v4578
    %4622 = vmatpush1.msra.mxu0 %v4577
    %4623 = vmatprep.subr.mxu0 %v4580
    %4624 = vmatpush1.msra.mxu0 %v4579
    %4625 = vmatprep.subr.mxu0 %v4582
    %4626 = vmatpush1.msra.mxu0 %v4581
    %4627 = vmatprep.subr.mxu0 %v4584
    %4628 = vmatpush1.msra.mxu0 %v4583
    %4629 = vmatprep.subr.mxu0 %v4586
    %4630 = vmatpush1.msra.mxu0 %v4585
    %4631 = vmatprep.subr.mxu0 %v4588
    %4632 = vmatpush1.msra.mxu0 %v4587
    %4633 = vmatprep.subr.mxu0 %v4590
    %4634 = vmatpush1.msra.mxu0 %v4589
    %4635 = vmatprep.subr.mxu0 %v4592
    %4636 = vmatpush1.msra.mxu0 %v4591
    %4637 = vmatprep.subr.mxu0 0.0
    %4638 = vmatpush1.msra.mxu0 0.0
    %4639 = vmatprep.subr.mxu0 0.0
    %4640 = vmatpush1.msra.mxu0 0.0
    %4641 = vmatprep.subr.mxu0 0.0
    %4642 = vmatpush1.msra.mxu0 0.0
    %4643 = vmatprep.subr.mxu0 0.0
    %4644 = vmatpush1.msra.mxu0 0.0
    %4645 = vmatprep.subr.mxu0 0.0
    %4646 = vmatpush1.msra.mxu0 0.0
    %4647 = vmatprep.subr.mxu0 0.0
    %4648 = vmatpush1.msra.mxu0 0.0
    %4649 = vmatprep.subr.mxu0 0.0
    %4650 = vmatpush1.msra.mxu0 0.0
    %4651 = vmatprep.subr.mxu0 0.0
    %4652 = vmatpush1.msra.mxu0 0.0
    %4653 = vmatprep.subr.mxu0 0.0
    %4654 = vmatpush1.msra.mxu0 0.0
    %4655 = vmatprep.subr.mxu0 0.0
    %4656 = vmatpush1.msra.mxu0 0.0
    %4657 = vmatprep.subr.mxu0 0.0
    %4658 = vmatpush1.msra.mxu0 0.0
    %4659 = vmatprep.subr.mxu0 0.0
    %4660 = vmatpush1.msra.mxu0 0.0
    %4661 = vmatprep.subr.mxu0 0.0
    %4662 = vmatpush1.msra.mxu0 0.0
    %4663 = vmatprep.subr.mxu0 0.0
    %4664 = vmatpush1.msra.mxu0 0.0
    %4665 = vmatprep.subr.mxu0 0.0
    %4666 = vmatpush1.msra.mxu0 0.0
    %4667 = vmatprep.subr.mxu0 0.0
    %4668 = vmatpush1.msra.mxu0 0.0
    %4669 = vmatprep.mubr.f32.mxu0 0.0
    %4670 = vmatmul.mubr.f32.gmra.mrb[0].mxu0 %v4553
    %v4671 = vpop.f32.mrb[0].mxu0
    %v4672 = vadd.f32 %v4598, %v4671
    %v4673 = vpop.f32.mrb[0].mxu0
    %v4674 = vadd.f32 %v4602, %v4673
    %4675 = vmatprep.mubr.f32.mxu0 0.0
    %4676 = vmatmul.mubr.f32.gmra.mrb[0].mxu0 %v4554
    %v4677 = vpop.f32.mrb[0].mxu0
    %v4678 = vadd.f32 %v4598, %v4677
    %v4679 = vpop.f32.mrb[0].mxu0
    %v4680 = vadd.f32 %v4602, %v4679
    %4681 = vmatprep.mubr.f32.mxu0 0.0
    %4682 = vmatmul.mubr.f32.gmra.mrb[0].mxu0 %v4555
    %v4683 = vpop.f32.mrb[0].mxu0
    %v4684 = vadd.f32 %v4598, %v4683
    %v4685 = vpop.f32.mrb[0].mxu0
    %v4686 = vadd.f32 %v4602, %v4685
    %4687 = vmatprep.mubr.f32.mxu0 0.0
    %4688 = vmatmul.mubr.f32.gmra.mrb[0].mxu0 %v4556
    %v4689 = vpop.f32.mrb[0].mxu0
    %v4690 = vadd.f32 %v4598, %v4689
    %v4691 = vpop.f32.mrb[0].mxu0
    %v4692 = vadd.f32 %v4602, %v4691
    %4693 = vmatprep.mubr.f32.mxu0 0.0
    %4694 = vmatmul.mubr.f32.gmra.mrb[0].mxu0 %v4557
    %v4695 = vpop.f32.mrb[0].mxu0
    %v4696 = vadd.f32 %v4598, %v4695
    %v4697 = vpop.f32.mrb[0].mxu0
    %v4698 = vadd.f32 %v4602, %v4697
    %4699 = vmatprep.mubr.f32.mxu0 0.0
    %4700 = vmatmul.mubr.f32.gmra.mrb[0].mxu0 %v4558
    %v4701 = vpop.f32.mrb[0].mxu0
    %v4702 = vadd.f32 %v4598, %v4701
    %v4703 = vpop.f32.mrb[0].mxu0
    %v4704 = vadd.f32 %v4602, %v4703
    %4705 = vmatprep.mubr.f32.mxu0 0.0
    %4706 = vmatmul.mubr.f32.gmra.mrb[0].mxu0 %v4559
    %v4707 = vpop.f32.mrb[0].mxu0
    %v4708 = vadd.f32 %v4598, %v4707
    %v4709 = vpop.f32.mrb[0].mxu0
    %v4710 = vadd.f32 %v4602, %v4709
    %4711 = vmatprep.mubr.f32.mxu0 0.0
    %4712 = vmatmul.mubr.f32.gmra.mrb[0].mxu0 %v4560
    %v4713 = vpop.f32.mrb[0].mxu0
    %v4714 = vadd.f32 %v4598, %v4713
    %v4715 = vpop.f32.mrb[0].mxu0
    %v4716 = vadd.f32 %v4602, %v4715
    %4717 = vdwg.mxu0
    %4718 = vst [vmem:[%s13] sm:$0xff] %v4672
    %4719 = vst [vmem:[%s13 + $0x8] sm:$0xff] %v4674
    %4720 = vst [vmem:[%s13 + $0x10] sm:$0xff] %v4678
    %4721 = vst [vmem:[%s13 + $0x18] sm:$0xff] %v4680
    %4722 = vst [vmem:[%s13 + $0x20] sm:$0xff] %v4684
    %4723 = vst [vmem:[%s13 + $0x28] sm:$0xff] %v4686
    %4724 = vst [vmem:[%s13 + $0x30] sm:$0xff] %v4690
    %4725 = vst [vmem:[%s13 + $0x38] sm:$0xff] %v4692
    %4726 = vst [vmem:[%s13 + $0x40] sm:$0xff] %v4696
    %4727 = vst [vmem:[%s13 + $0x48] sm:$0xff] %v4698
    %4728 = vst [vmem:[%s13 + $0x50] sm:$0xff] %v4702
    %4729 = vst [vmem:[%s13 + $0x58] sm:$0xff] %v4704
    %4730 = vst [vmem:[%s13 + $0x60] sm:$0xff] %v4708
    %4731 = vst [vmem:[%s13 + $0x68] sm:$0xff] %v4710
    %4732 = vst [vmem:[%s13 + $0x70] sm:$0xff] %v4714
    %4733 = vst [vmem:[%s13 + $0x78] sm:$0xff] %v4716
    // Predicated region
    $region74: #{transcriber_rnn_forward.1} parent=1 // pred_check
      _
    $region75: #{transcriber_rnn_forward.1} parent=1 // pred_check_branch
      %4735 = sbr.rel (0) target = $region77
    $region76: #{transcriber_rnn_forward.1} parent=1 // pred_region
      _
    $region77: #{transcriber_rnn_forward.1} parent=1 // pred_fallthru
      _
    // Predicated region
    $region78: #{transcriber_rnn_forward.1} parent=1 // pred_check
      _
    $region79: #{transcriber_rnn_forward.1} parent=1 // pred_check_branch
      %4737 = sbr.rel (0) target = $region81
    $region80: #{transcriber_rnn_forward.1} parent=1 // pred_region
      _
    $region81: #{transcriber_rnn_forward.1} parent=1 // pred_fallthru
      _
    %4738 = vsyncpa [#allocation5], 1
    %4739 = vsyncpa [#allocation7], 1
    %4740 = vsyncpa [#allocation10], 1

</llo_original>
